<compile_context>
chip_gen: v7x
topology: tpu7x:2x2x1
jax: 0.10.0
libtpu: 0.0.40
codegen_flags: <defaults>
</compile_context>

<pallas_src>
import numpy as np
import jax
import jax.numpy as jnp
from jax.experimental import pallas as pl
from jax.experimental.pallas import tpu as pltpu

# ----------------------- small, module-consistent config ----------------------
B = 2            # batch
T = 1            # frames (T=1 keeps the reference PyTorch indexing well-defined)
MAX_N = 12       # cfg.num_boxes
D = 32           # cfg.emb_features
K = 5            # cfg.crop_size[0]
KKD = K * K * D  # fc_emb_1 input features (800)
KKD_PAD = 896    # zero-padded to a multiple of 128 lanes
NFB = 128        # cfg.num_features_boxes
NFG = NFB        # num_features_gcn == NFB
NFR = 128        # cfg.num_features_relation
NG = 2           # cfg.num_graph
GCN_LAYERS = 1   # cfg.gcn_layers (PyTorch loop always re-reads boxes_features,
                 # so only the last layer matters; 1 layer == reference)
NUM_ACTIONS = 8  # cfg.num_actions
OH, OW = 16, 16  # cfg.out_size
POS_THRESHOLD = 0.2
LN_EPS = 1e-5
BT = B * T
TOTAL = BT * MAX_N            # 24 rows after folding batch into the row dim
NPAIR = BT * MAX_N * MAX_N    # 288 (i, j) pairs incl. diagonal (sliced outside)
NEG = -1e30                   # finite "minus infinity" (NaN-safe softmax)


# ---------------- static host-side constants (pair enumeration) ---------------
def _pair_selectors():
    sel_i = np.zeros((NPAIR, TOTAL), np.float32)
    sel_j = np.zeros((NPAIR, TOTAL), np.float32)
    offdiag = []
    for bt in range(BT):
        for i in range(MAX_N):
            for j in range(MAX_N):
                r = bt * MAX_N * MAX_N + i * MAX_N + j
                sel_i[r, bt * MAX_N + i] = 1.0
                sel_j[r, bt * MAX_N + j] = 1.0
                if i != j:
                    offdiag.append(r)
    return sel_i, sel_j, np.asarray(offdiag, np.int32)


_SEL_I, _SEL_J, _OFFDIAG = _pair_selectors()
_SAME_SAMPLE = (np.arange(TOTAL)[:, None] // MAX_N) == (np.arange(TOTAL)[None, :] // MAX_N)


def _mm_nt(a, b):
    """a @ b.T on the MXU without materializing the transpose (f32 accumulate)."""
    return jax.lax.dot_general(
        a, b, (((1,), (1,)), ((), ())), preferred_element_type=jnp.float32)


def _layernorm(x, gamma, beta):
    mu = jnp.mean(x, axis=-1, keepdims=True)
    var = jnp.mean(jnp.square(x - mu), axis=-1, keepdims=True)
    return (x - mu) * jax.lax.rsqrt(var + LN_EPS) * gamma + beta


# --------------------------------- the kernel ---------------------------------
def _fgnn_kernel(roi_ref, boxes_ref, bias_ref, seli_ref, selj_ref,
                 w_emb_ref, b_emb_ref, g_emb_ref, be_emb_ref,
                 wtp_ref, btp_ref, wg_ref, g_gcn_ref, b_gcn_ref,
                 wh_ref, ba_ref, bm_ref, wf_ref, bf_ref,
                 actn_ref, inter_ref):
    bf16 = jnp.bfloat16

    # ---- fc_emb_1 -> LayerNorm -> ReLU -------------------------------------
    emb = _mm_nt(roi_ref[...].astype(bf16), w_emb_ref[...]) + b_emb_ref[...]
    emb = _layernorm(emb, g_emb_ref[...], be_emb_ref[...])
    emb = jnp.maximum(emb, 0.0)                       # (TOTAL, NFB) f32

    # ---- pairwise squared centre distances (no sqrt) + one combined bias ----
    boxes = boxes_ref[...]                            # (TOTAL, 4)
    cx = (boxes[:, 0:1] + boxes[:, 2:3]) * 0.5
    cy = (boxes[:, 1:2] + boxes[:, 3:4]) * 0.5
    dx = cx - cx.T
    dy = cy - cy.T
    far = (dx * dx + dy * dy) > np.float32((POS_THRESHOLD * OW) ** 2)
    # 0 for allowed (same sample, valid column, near); <= -1e30 otherwise.
    bias_total = jnp.where(far, NEG, 0.0) + bias_ref[...]   # (TOTAL, TOTAL) f32

    # ---- GCN: fused theta/phi projection for all NG graphs ------------------
    emb_bf = emb.astype(bf16)
    proj = _mm_nt(emb_bf, wtp_ref[...]) + btp_ref[...]  # (TOTAL, 2*NG*NFR) f32
    inv_sqrt_nfr = np.float32(1.0 / np.sqrt(NFR))
    wg = wg_ref[...]                                  # (NG, NFG, NFG) bf16
    g_gcn = g_gcn_ref[...]
    b_gcn = b_gcn_ref[...]

    gsum = jnp.zeros((TOTAL, NFG), jnp.float32)
    for g in range(NG):
        theta = proj[:, g * NFR:(g + 1) * NFR]
        phi = proj[:, (NG + g) * NFR:(NG + g + 1) * NFR]
        sim = _mm_nt(theta, phi) * inv_sqrt_nfr + bias_total   # (TOTAL, TOTAL)
        sim = sim - jnp.max(sim, axis=-1, keepdims=True)
        p = jnp.exp(sim)
        rel = p * pl.reciprocal(jnp.sum(p, axis=-1, keepdims=True), approx=True)
        agg = jnp.dot(rel, emb, preferred_element_type=jnp.float32)   # (TOTAL, NFG)
        out = _mm_nt(agg.astype(bf16), wg[g])         # fc_gcn (no bias)
        out = _layernorm(out, g_gcn[g][None, :], b_gcn[g][None, :])
        gsum = gsum + jnp.maximum(out, 0.0)

    # ---- residual + fused heads ---------------------------------------------
    states = gsum + emb                               # (TOTAL, NFG)
    states_bf = states.astype(bf16)

    # ONE matmul for both heads: columns [a1 | a2 | actions], tile-aligned slices.
    heads = _mm_nt(states_bf, wh_ref[...])            # (TOTAL, 2*NFG + NUM_ACTIONS)
    actn_ref[...] = heads[:, 2 * NFG:2 * NFG + NUM_ACTIONS] + ba_ref[...]

    # interaction head, fully fused:
    #   cat(s_i, s_j) @ Wm^T == s_i @ Wm1^T + s_j @ Wm2^T;  pair rows are built
    #   with constant 0/1 selection matmuls (no 3-D reshape), then ONE matmul
    #   against Wf computed transposed -> lane-dense (2, NPAIR) store.
    a1 = heads[:, :NFG].astype(bf16)
    a2 = heads[:, NFG:2 * NFG].astype(bf16)
    mid = jnp.dot(seli_ref[...], a1, preferred_element_type=jnp.float32)
    mid = mid + jnp.dot(selj_ref[...], a2, preferred_element_type=jnp.float32)
    mid = jnp.maximum(mid + bm_ref[...], 0.0)         # (NPAIR, NFG)
    inter_ref[...] = _mm_nt(wf_ref[...], mid.astype(bf16)) + bf_ref[...]


# --------------------------------- the wrapper ---------------------------------
def fgnn_forward(roi_features, boxes_in, bboxes_num_in, params):
    """roi_features: (B*T, MAX_N, K*K*D) f32, boxes_in: (B, T, MAX_N, 4)."""
    bf16 = jnp.bfloat16

    roi = roi_features.reshape(TOTAL, KKD)
    roi = jnp.pad(roi, ((0, 0), (0, KKD_PAD - KKD)))          # lane-align 800 -> 896
    boxes = boxes_in.reshape(TOTAL, 4).astype(jnp.float32)

    # additive attention bias: block-diagonal across samples + padded-box columns masked
    valid = (jnp.arange(MAX_N)[None, :] < bboxes_num_in.reshape(BT, 1)).reshape(TOTAL)
    allowed = jnp.logical_and(jnp.asarray(_SAME_SAMPLE), valid[None, :])
    attn_bias = jnp.where(allowed, 0.0, NEG).astype(jnp.float32)

    # weights: bf16 MXU operands (f32 accumulation; LN/softmax/bias stay f32)
    w_emb = jnp.pad(params["w_emb"], ((0, 0), (0, KKD_PAD - KKD))).astype(bf16)
    w_tp = jnp.concatenate([params["wt"].reshape(NG * NFR, NFG),
                            params["wp"].reshape(NG * NFR, NFG)], axis=0).astype(bf16)
    b_tp = jnp.concatenate([params["bt"].reshape(-1), params["bp"].reshape(-1)])[None, :]
    wg = params["wg"].astype(bf16)
    wm = params["wm"]                                         # (NFG, 2*NFG)
    # fused head weight: [Wm1 | Wm2 | Wa] stacked along the output dim
    w_heads = jnp.concatenate(
        [wm[:, :NFG], wm[:, NFG:], params["wa"]], axis=0).astype(bf16)  # (2*NFG+8, NFG)
    wf = params["wf"].astype(bf16)
    bf_col = params["bf"].reshape(2, 1)

    vmem = pl.BlockSpec(memory_space=pltpu.MemorySpace.VMEM)  # whole array, VMEM-resident
    actn, inter = pl.pallas_call(
        _fgnn_kernel,
        in_specs=[vmem] * 19,
        out_specs=(vmem, vmem),
        out_shape=(jax.ShapeDtypeStruct((TOTAL, NUM_ACTIONS), jnp.float32),
                   jax.ShapeDtypeStruct((2, NPAIR), jnp.float32)),
    )(roi, boxes, attn_bias,
      jnp.asarray(_SEL_I, bf16), jnp.asarray(_SEL_J, bf16),
      w_emb, params["b_emb"], params["ln_emb_g"], params["ln_emb_b"],
      w_tp, b_tp, wg, params["ln_gcn_g"], params["ln_gcn_b"],
      w_heads, params["ba"], params["bm"], wf, bf_col)

    # actions: per-sample (N, T*num_actions), concatenated over B*T (T=1).
    actions_scores = actn.reshape(BT * MAX_N, T * NUM_ACTIONS)

    # interactions: rows (bt, i, j) with i != j, row-major bt then i then j.
    interaction_scores = inter.T[jnp.asarray(_OFFDIAG)]       # (BT*N*(N-1), 2)
    return actions_scores, interaction_scores


def _init_params(key):
    ks = jax.random.split(key, 8)

    def kaiming(k, shape, fan_in):
        return (jax.random.normal(k, shape, jnp.float32)
                * np.float32(np.sqrt(2.0 / fan_in)))

    return {
        "w_emb": kaiming(ks[0], (NFB, KKD), KKD),
        "b_emb": jnp.zeros((1, NFB), jnp.float32),
        "ln_emb_g": jnp.ones((1, NFB), jnp.float32),
        "ln_emb_b": jnp.zeros((1, NFB), jnp.float32),
        "wt": kaiming(ks[1], (NG, NFR, NFG), NFG),
        "bt": jnp.zeros((NG, NFR), jnp.float32),
        "wp": kaiming(ks[2], (NG, NFR, NFG), NFG),
        "bp": jnp.zeros((NG, NFR), jnp.float32),
        "wg": kaiming(ks[3], (NG, NFG, NFG), NFG),
        "ln_gcn_g": jnp.ones((NG, NFG), jnp.float32),
        "ln_gcn_b": jnp.zeros((NG, NFG), jnp.float32),
        "wa": kaiming(ks[4], (NUM_ACTIONS, NFG), NFG),
        "ba": jnp.zeros((1, NUM_ACTIONS), jnp.float32),
        "wm": kaiming(ks[5], (NFG, 2 * NFG), 2 * NFG),
        "bm": jnp.zeros((1, NFG), jnp.float32),
        "wf": kaiming(ks[6], (2, NFG), NFG),
        "bf": jnp.zeros((1, 2), jnp.float32),
    }


if __name__ == "__main__":
    key = jax.random.PRNGKey(0)
    k_par, k_roi, k_box = jax.random.split(key, 3)

    params = _init_params(k_par)

    # Synthetic stand-in for backbone + roi_align output (see TODO above).
    roi_features = jax.random.normal(k_roi, (BT, MAX_N, KKD), jnp.float32) * 0.1
    # Boxes in output-grid pixel coordinates (x0, y0, x1, y1).
    boxes_in = jax.random.uniform(
        k_box, (B, T, MAX_N, 4), jnp.float32, minval=0.0, maxval=float(OW))
    bboxes_num_in = jnp.full((B, T), MAX_N, jnp.int32)

    fwd = jax.jit(fgnn_forward)
    actions_scores, interaction_scores = jax.block_until_ready(
        fwd(roi_features, boxes_in, bboxes_num_in, params))

    assert actions_scores.shape == (BT * MAX_N, T * NUM_ACTIONS)
    assert interaction_scores.shape == (BT * MAX_N * (MAX_N - 1), 2)
    assert bool(jnp.all(jnp.isfinite(actions_scores)))
    assert bool(jnp.all(jnp.isfinite(interaction_scores)))
    print("KERNEL_OK")
</pallas_src>

<mosaic_0001>
module attributes {stable_mosaic.version = 11 : i64} {
  func.func @_fgnn_kernel(%arg0: memref<24x896xf32, #tpu.memory_space<vmem>>, %arg1: memref<24x4xf32, #tpu.memory_space<vmem>>, %arg2: memref<24x24xf32, #tpu.memory_space<vmem>>, %arg3: memref<288x24xbf16, #tpu.memory_space<vmem>>, %arg4: memref<288x24xbf16, #tpu.memory_space<vmem>>, %arg5: memref<128x896xbf16, #tpu.memory_space<vmem>>, %arg6: memref<1x128xf32, #tpu.memory_space<vmem>>, %arg7: memref<1x128xf32, #tpu.memory_space<vmem>>, %arg8: memref<1x128xf32, #tpu.memory_space<vmem>>, %arg9: memref<512x128xbf16, #tpu.memory_space<vmem>>, %arg10: memref<1x512xf32, #tpu.memory_space<vmem>>, %arg11: memref<2x128x128xbf16, #tpu.memory_space<vmem>>, %arg12: memref<2x128xf32, #tpu.memory_space<vmem>>, %arg13: memref<2x128xf32, #tpu.memory_space<vmem>>, %arg14: memref<264x128xbf16, #tpu.memory_space<vmem>>, %arg15: memref<1x8xf32, #tpu.memory_space<vmem>>, %arg16: memref<1x128xf32, #tpu.memory_space<vmem>>, %arg17: memref<2x128xbf16, #tpu.memory_space<vmem>>, %arg18: memref<2x1xf32, #tpu.memory_space<vmem>>, %arg19: memref<24x8xf32, #tpu.memory_space<vmem>>, %arg20: memref<2x288xf32, #tpu.memory_space<vmem>>) attributes {dimension_semantics = [], scalar_prefetch = 0 : i64, scratch_operands = 0 : i64, tpu.core_type = #tpu.core_type<tc>} {
    %c0 = arith.constant 0 : index
    %c0_0 = arith.constant 0 : index
    %0 = vector.load %arg0[%c0, %c0_0] : memref<24x896xf32, #tpu.memory_space<vmem>>, vector<24x896xf32>
    %1 = arith.truncf %0 : vector<24x896xf32> to vector<24x896xbf16>
    %c0_1 = arith.constant 0 : index
    %c0_2 = arith.constant 0 : index
    %2 = vector.load %arg5[%c0_1, %c0_2] : memref<128x896xbf16, #tpu.memory_space<vmem>>, vector<128x896xbf16>
    %cst = arith.constant dense<0.000000e+00> : vector<24x128xf32>
    %3 = tpu.matmul %1, %2, %cst {dimension_numbers = #tpu.dot_dimension_numbers<[1], [1], [0], [0], [0, 0, 1, 0], [], []>} : vector<24x896xbf16>, vector<128x896xbf16>, vector<24x128xf32> -> vector<24x128xf32>
    %c0_3 = arith.constant 0 : index
    %c0_4 = arith.constant 0 : index
    %4 = vector.load %arg6[%c0_3, %c0_4] : memref<1x128xf32, #tpu.memory_space<vmem>>, vector<1x128xf32>
    %5 = vector.broadcast %4 : vector<1x128xf32> to vector<24x128xf32>
    %6 = arith.addf %3, %5 : vector<24x128xf32>
    %c0_5 = arith.constant 0 : index
    %c0_6 = arith.constant 0 : index
    %7 = vector.load %arg7[%c0_5, %c0_6] : memref<1x128xf32, #tpu.memory_space<vmem>>, vector<1x128xf32>
    %c0_7 = arith.constant 0 : index
    %c0_8 = arith.constant 0 : index
    %8 = vector.load %arg8[%c0_7, %c0_8] : memref<1x128xf32, #tpu.memory_space<vmem>>, vector<1x128xf32>
    %cst_9 = arith.constant dense<0.000000e+00> : vector<24xf32>
    %9 = vector.multi_reduction <add>, %6, %cst_9 [1] : vector<24x128xf32> to vector<24xf32>
    %10 = vector.shape_cast %9 : vector<24xf32> to vector<24x1xf32>
    %cst_10 = arith.constant 1.280000e+02 : f32
    %11 = vector.broadcast %cst_10 : f32 to vector<24x1xf32>
    %12 = arith.divf %10, %11 : vector<24x1xf32>
    %13 = vector.broadcast %12 : vector<24x1xf32> to vector<24x128xf32>
    %14 = arith.subf %6, %13 : vector<24x128xf32>
    %15 = arith.mulf %14, %14 : vector<24x128xf32>
    %cst_11 = arith.constant dense<0.000000e+00> : vector<24xf32>
    %16 = vector.multi_reduction <add>, %15, %cst_11 [1] : vector<24x128xf32> to vector<24xf32>
    %17 = vector.shape_cast %16 : vector<24xf32> to vector<24x1xf32>
    %cst_12 = arith.constant 1.280000e+02 : f32
    %18 = vector.broadcast %cst_12 : f32 to vector<24x1xf32>
    %19 = arith.divf %17, %18 : vector<24x1xf32>
    %20 = vector.broadcast %12 : vector<24x1xf32> to vector<24x128xf32>
    %21 = arith.subf %6, %20 : vector<24x128xf32>
    %cst_13 = arith.constant 9.99999974E-6 : f32
    %22 = vector.broadcast %cst_13 : f32 to vector<24x1xf32>
    %23 = arith.addf %19, %22 : vector<24x1xf32>
    %24 = math.rsqrt %23 : vector<24x1xf32>
    %25 = vector.broadcast %24 : vector<24x1xf32> to vector<24x128xf32>
    %26 = arith.mulf %21, %25 : vector<24x128xf32>
    %27 = vector.broadcast %7 : vector<1x128xf32> to vector<24x128xf32>
    %28 = arith.mulf %26, %27 : vector<24x128xf32>
    %29 = vector.broadcast %8 : vector<1x128xf32> to vector<24x128xf32>
    %30 = arith.addf %28, %29 : vector<24x128xf32>
    %cst_14 = arith.constant 0.000000e+00 : f32
    %31 = vector.broadcast %cst_14 : f32 to vector<24x128xf32>
    %32 = arith.maximumf %30, %31 : vector<24x128xf32>
    %c0_15 = arith.constant 0 : index
    %c0_16 = arith.constant 0 : index
    %33 = vector.load %arg1[%c0_15, %c0_16] : memref<24x4xf32, #tpu.memory_space<vmem>>, vector<24x4xf32>
    %34 = vector.extract_strided_slice %33 {offsets = [0, 0], sizes = [24, 1], strides = [1, 1]} : vector<24x4xf32> to vector<24x1xf32>
    %35 = vector.extract_strided_slice %33 {offsets = [0, 2], sizes = [24, 1], strides = [1, 1]} : vector<24x4xf32> to vector<24x1xf32>
    %36 = arith.addf %34, %35 : vector<24x1xf32>
    %cst_17 = arith.constant 5.000000e-01 : f32
    %37 = vector.broadcast %cst_17 : f32 to vector<24x1xf32>
    %38 = arith.mulf %36, %37 : vector<24x1xf32>
    %39 = vector.extract_strided_slice %33 {offsets = [0, 1], sizes = [24, 1], strides = [1, 1]} : vector<24x4xf32> to vector<24x1xf32>
    %40 = vector.extract_strided_slice %33 {offsets = [0, 3], sizes = [24, 1], strides = [1, 1]} : vector<24x4xf32> to vector<24x1xf32>
    %41 = arith.addf %39, %40 : vector<24x1xf32>
    %cst_18 = arith.constant 5.000000e-01 : f32
    %42 = vector.broadcast %cst_18 : f32 to vector<24x1xf32>
    %43 = arith.mulf %41, %42 : vector<24x1xf32>
    %44 = tpu.transpose %38, [1, 0] : vector<24x1xf32> -> vector<1x24xf32>
    %45 = vector.broadcast %38 : vector<24x1xf32> to vector<24x24xf32>
    %46 = vector.broadcast %44 : vector<1x24xf32> to vector<24x24xf32>
    %47 = arith.subf %45, %46 : vector<24x24xf32>
    %48 = tpu.transpose %43, [1, 0] : vector<24x1xf32> -> vector<1x24xf32>
    %49 = vector.broadcast %43 : vector<24x1xf32> to vector<24x24xf32>
    %50 = vector.broadcast %48 : vector<1x24xf32> to vector<24x24xf32>
    %51 = arith.subf %49, %50 : vector<24x24xf32>
    %52 = arith.mulf %47, %47 : vector<24x24xf32>
    %53 = arith.mulf %51, %51 : vector<24x24xf32>
    %54 = arith.addf %52, %53 : vector<24x24xf32>
    %cst_19 = arith.constant 1.024000e+01 : f32
    %55 = vector.broadcast %cst_19 : f32 to vector<24x24xf32>
    %56 = arith.cmpf ogt, %54, %55 : vector<24x24xf32>
    %cst_20 = arith.constant -1.000000e+30 : f32
    %cst_21 = arith.constant 0.000000e+00 : f32
    %57 = vector.broadcast %cst_20 : f32 to vector<24x24xf32>
    %58 = vector.broadcast %cst_21 : f32 to vector<24x24xf32>
    %59 = arith.select %56, %57, %58 : vector<24x24xi1>, vector<24x24xf32>
    %c0_22 = arith.constant 0 : index
    %c0_23 = arith.constant 0 : index
    %60 = vector.load %arg2[%c0_22, %c0_23] : memref<24x24xf32, #tpu.memory_space<vmem>>, vector<24x24xf32>
    %61 = arith.addf %59, %60 : vector<24x24xf32>
    %62 = arith.truncf %32 : vector<24x128xf32> to vector<24x128xbf16>
    %c0_24 = arith.constant 0 : index
    %c0_25 = arith.constant 0 : index
    %63 = vector.load %arg9[%c0_24, %c0_25] : memref<512x128xbf16, #tpu.memory_space<vmem>>, vector<512x128xbf16>
    %cst_26 = arith.constant dense<0.000000e+00> : vector<24x512xf32>
    %64 = tpu.matmul %62, %63, %cst_26 {dimension_numbers = #tpu.dot_dimension_numbers<[1], [1], [0], [0], [0, 0, 1, 0], [], []>} : vector<24x128xbf16>, vector<512x128xbf16>, vector<24x512xf32> -> vector<24x512xf32>
    %c0_27 = arith.constant 0 : index
    %c0_28 = arith.constant 0 : index
    %65 = vector.load %arg10[%c0_27, %c0_28] : memref<1x512xf32, #tpu.memory_space<vmem>>, vector<1x512xf32>
    %66 = vector.broadcast %65 : vector<1x512xf32> to vector<24x512xf32>
    %67 = arith.addf %64, %66 : vector<24x512xf32>
    %c0_29 = arith.constant 0 : index
    %c0_30 = arith.constant 0 : index
    %c0_31 = arith.constant 0 : index
    %68 = vector.load %arg11[%c0_29, %c0_30, %c0_31] : memref<2x128x128xbf16, #tpu.memory_space<vmem>>, vector<2x128x128xbf16>
    %c0_32 = arith.constant 0 : index
    %c0_33 = arith.constant 0 : index
    %69 = vector.load %arg12[%c0_32, %c0_33] : memref<2x128xf32, #tpu.memory_space<vmem>>, vector<2x128xf32>
    %c0_34 = arith.constant 0 : index
    %c0_35 = arith.constant 0 : index
    %70 = vector.load %arg13[%c0_34, %c0_35] : memref<2x128xf32, #tpu.memory_space<vmem>>, vector<2x128xf32>
    %cst_36 = arith.constant 0.000000e+00 : f32
    %71 = vector.broadcast %cst_36 : f32 to vector<24x128xf32>
    %72 = vector.extract_strided_slice %67 {offsets = [0, 0], sizes = [24, 128], strides = [1, 1]} : vector<24x512xf32> to vector<24x128xf32>
    %73 = vector.extract_strided_slice %67 {offsets = [0, 256], sizes = [24, 128], strides = [1, 1]} : vector<24x512xf32> to vector<24x128xf32>
    %cst_37 = arith.constant dense<0.000000e+00> : vector<24x24xf32>
    %74 = tpu.matmul %72, %73, %cst_37 {dimension_numbers = #tpu.dot_dimension_numbers<[1], [1], [0], [0], [0, 0, 1, 0], [], []>} : vector<24x128xf32>, vector<24x128xf32>, vector<24x24xf32> -> vector<24x24xf32>
    %cst_38 = arith.constant 0.0883883461 : f32
    %75 = vector.broadcast %cst_38 : f32 to vector<24x24xf32>
    %76 = arith.mulf %74, %75 : vector<24x24xf32>
    %77 = arith.addf %76, %61 : vector<24x24xf32>
    %cst_39 = arith.constant dense<0xFF800000> : vector<24xf32>
    %78 = vector.multi_reduction <maximumf>, %77, %cst_39 [1] : vector<24x24xf32> to vector<24xf32>
    %79 = vector.shape_cast %78 : vector<24xf32> to vector<24x1xf32>
    %80 = vector.broadcast %79 : vector<24x1xf32> to vector<24x24xf32>
    %81 = arith.subf %77, %80 : vector<24x24xf32>
    %82 = math.exp %81 : vector<24x24xf32>
    %cst_40 = arith.constant dense<0.000000e+00> : vector<24xf32>
    %83 = vector.multi_reduction <add>, %82, %cst_40 [1] : vector<24x24xf32> to vector<24xf32>
    %84 = vector.shape_cast %83 : vector<24xf32> to vector<24x1xf32>
    %85 = tpu.reciprocal %84 {approx = true} : vector<24x1xf32> -> vector<24x1xf32>
    %86 = vector.broadcast %85 : vector<24x1xf32> to vector<24x24xf32>
    %87 = arith.mulf %82, %86 : vector<24x24xf32>
    %cst_41 = arith.constant dense<0.000000e+00> : vector<24x128xf32>
    %88 = tpu.matmul %87, %32, %cst_41 {dimension_numbers = #tpu.dot_dimension_numbers<[1], [0], [0], [1], [0, 0, 1, 1], [], []>} : vector<24x24xf32>, vector<24x128xf32>, vector<24x128xf32> -> vector<24x128xf32>
    %89 = arith.truncf %88 : vector<24x128xf32> to vector<24x128xbf16>
    %90 = vector.extract_strided_slice %68 {offsets = [0, 0, 0], sizes = [1, 128, 128], strides = [1, 1, 1]} : vector<2x128x128xbf16> to vector<1x128x128xbf16>
    %91 = vector.shape_cast %90 : vector<1x128x128xbf16> to vector<128x128xbf16>
    %cst_42 = arith.constant dense<0.000000e+00> : vector<24x128xf32>
    %92 = tpu.matmul %89, %91, %cst_42 {dimension_numbers = #tpu.dot_dimension_numbers<[1], [1], [0], [0], [0, 0, 1, 0], [], []>} : vector<24x128xbf16>, vector<128x128xbf16>, vector<24x128xf32> -> vector<24x128xf32>
    %93 = vector.extract_strided_slice %69 {offsets = [0, 0], sizes = [1, 128], strides = [1, 1]} : vector<2x128xf32> to vector<1x128xf32>
    %94 = vector.shape_cast %93 : vector<1x128xf32> to vector<128xf32>
    %95 = vector.shape_cast %94 : vector<128xf32> to vector<1x128xf32>
    %96 = vector.extract_strided_slice %70 {offsets = [0, 0], sizes = [1, 128], strides = [1, 1]} : vector<2x128xf32> to vector<1x128xf32>
    %97 = vector.shape_cast %96 : vector<1x128xf32> to vector<128xf32>
    %98 = vector.shape_cast %97 : vector<128xf32> to vector<1x128xf32>
    %cst_43 = arith.constant dense<0.000000e+00> : vector<24xf32>
    %99 = vector.multi_reduction <add>, %92, %cst_43 [1] : vector<24x128xf32> to vector<24xf32>
    %100 = vector.shape_cast %99 : vector<24xf32> to vector<24x1xf32>
    %cst_44 = arith.constant 1.280000e+02 : f32
    %101 = vector.broadcast %cst_44 : f32 to vector<24x1xf32>
    %102 = arith.divf %100, %101 : vector<24x1xf32>
    %103 = vector.broadcast %102 : vector<24x1xf32> to vector<24x128xf32>
    %104 = arith.subf %92, %103 : vector<24x128xf32>
    %105 = arith.mulf %104, %104 : vector<24x128xf32>
    %cst_45 = arith.constant dense<0.000000e+00> : vector<24xf32>
    %106 = vector.multi_reduction <add>, %105, %cst_45 [1] : vector<24x128xf32> to vector<24xf32>
    %107 = vector.shape_cast %106 : vector<24xf32> to vector<24x1xf32>
    %cst_46 = arith.constant 1.280000e+02 : f32
    %108 = vector.broadcast %cst_46 : f32 to vector<24x1xf32>
    %109 = arith.divf %107, %108 : vector<24x1xf32>
    %110 = vector.broadcast %102 : vector<24x1xf32> to vector<24x128xf32>
    %111 = arith.subf %92, %110 : vector<24x128xf32>
    %cst_47 = arith.constant 9.99999974E-6 : f32
    %112 = vector.broadcast %cst_47 : f32 to vector<24x1xf32>
    %113 = arith.addf %109, %112 : vector<24x1xf32>
    %114 = math.rsqrt %113 : vector<24x1xf32>
    %115 = vector.broadcast %114 : vector<24x1xf32> to vector<24x128xf32>
    %116 = arith.mulf %111, %115 : vector<24x128xf32>
    %117 = vector.broadcast %95 : vector<1x128xf32> to vector<24x128xf32>
    %118 = arith.mulf %116, %117 : vector<24x128xf32>
    %119 = vector.broadcast %98 : vector<1x128xf32> to vector<24x128xf32>
    %120 = arith.addf %118, %119 : vector<24x128xf32>
    %cst_48 = arith.constant 0.000000e+00 : f32
    %121 = vector.broadcast %cst_48 : f32 to vector<24x128xf32>
    %122 = arith.maximumf %120, %121 : vector<24x128xf32>
    %123 = arith.addf %71, %122 : vector<24x128xf32>
    %124 = vector.extract_strided_slice %67 {offsets = [0, 128], sizes = [24, 128], strides = [1, 1]} : vector<24x512xf32> to vector<24x128xf32>
    %125 = vector.extract_strided_slice %67 {offsets = [0, 384], sizes = [24, 128], strides = [1, 1]} : vector<24x512xf32> to vector<24x128xf32>
    %cst_49 = arith.constant dense<0.000000e+00> : vector<24x24xf32>
    %126 = tpu.matmul %124, %125, %cst_49 {dimension_numbers = #tpu.dot_dimension_numbers<[1], [1], [0], [0], [0, 0, 1, 0], [], []>} : vector<24x128xf32>, vector<24x128xf32>, vector<24x24xf32> -> vector<24x24xf32>
    %cst_50 = arith.constant 0.0883883461 : f32
    %127 = vector.broadcast %cst_50 : f32 to vector<24x24xf32>
    %128 = arith.mulf %126, %127 : vector<24x24xf32>
    %129 = arith.addf %128, %61 : vector<24x24xf32>
    %cst_51 = arith.constant dense<0xFF800000> : vector<24xf32>
    %130 = vector.multi_reduction <maximumf>, %129, %cst_51 [1] : vector<24x24xf32> to vector<24xf32>
    %131 = vector.shape_cast %130 : vector<24xf32> to vector<24x1xf32>
    %132 = vector.broadcast %131 : vector<24x1xf32> to vector<24x24xf32>
    %133 = arith.subf %129, %132 : vector<24x24xf32>
    %134 = math.exp %133 : vector<24x24xf32>
    %cst_52 = arith.constant dense<0.000000e+00> : vector<24xf32>
    %135 = vector.multi_reduction <add>, %134, %cst_52 [1] : vector<24x24xf32> to vector<24xf32>
    %136 = vector.shape_cast %135 : vector<24xf32> to vector<24x1xf32>
    %137 = tpu.reciprocal %136 {approx = true} : vector<24x1xf32> -> vector<24x1xf32>
    %138 = vector.broadcast %137 : vector<24x1xf32> to vector<24x24xf32>
    %139 = arith.mulf %134, %138 : vector<24x24xf32>
    %cst_53 = arith.constant dense<0.000000e+00> : vector<24x128xf32>
    %140 = tpu.matmul %139, %32, %cst_53 {dimension_numbers = #tpu.dot_dimension_numbers<[1], [0], [0], [1], [0, 0, 1, 1], [], []>} : vector<24x24xf32>, vector<24x128xf32>, vector<24x128xf32> -> vector<24x128xf32>
    %141 = arith.truncf %140 : vector<24x128xf32> to vector<24x128xbf16>
    %142 = vector.extract_strided_slice %68 {offsets = [1, 0, 0], sizes = [1, 128, 128], strides = [1, 1, 1]} : vector<2x128x128xbf16> to vector<1x128x128xbf16>
    %143 = vector.shape_cast %142 : vector<1x128x128xbf16> to vector<128x128xbf16>
    %cst_54 = arith.constant dense<0.000000e+00> : vector<24x128xf32>
    %144 = tpu.matmul %141, %143, %cst_54 {dimension_numbers = #tpu.dot_dimension_numbers<[1], [1], [0], [0], [0, 0, 1, 0], [], []>} : vector<24x128xbf16>, vector<128x128xbf16>, vector<24x128xf32> -> vector<24x128xf32>
    %145 = vector.extract_strided_slice %69 {offsets = [1, 0], sizes = [1, 128], strides = [1, 1]} : vector<2x128xf32> to vector<1x128xf32>
    %146 = vector.shape_cast %145 : vector<1x128xf32> to vector<128xf32>
    %147 = vector.shape_cast %146 : vector<128xf32> to vector<1x128xf32>
    %148 = vector.extract_strided_slice %70 {offsets = [1, 0], sizes = [1, 128], strides = [1, 1]} : vector<2x128xf32> to vector<1x128xf32>
    %149 = vector.shape_cast %148 : vector<1x128xf32> to vector<128xf32>
    %150 = vector.shape_cast %149 : vector<128xf32> to vector<1x128xf32>
    %cst_55 = arith.constant dense<0.000000e+00> : vector<24xf32>
    %151 = vector.multi_reduction <add>, %144, %cst_55 [1] : vector<24x128xf32> to vector<24xf32>
    %152 = vector.shape_cast %151 : vector<24xf32> to vector<24x1xf32>
    %cst_56 = arith.constant 1.280000e+02 : f32
    %153 = vector.broadcast %cst_56 : f32 to vector<24x1xf32>
    %154 = arith.divf %152, %153 : vector<24x1xf32>
    %155 = vector.broadcast %154 : vector<24x1xf32> to vector<24x128xf32>
    %156 = arith.subf %144, %155 : vector<24x128xf32>
    %157 = arith.mulf %156, %156 : vector<24x128xf32>
    %cst_57 = arith.constant dense<0.000000e+00> : vector<24xf32>
    %158 = vector.multi_reduction <add>, %157, %cst_57 [1] : vector<24x128xf32> to vector<24xf32>
    %159 = vector.shape_cast %158 : vector<24xf32> to vector<24x1xf32>
    %cst_58 = arith.constant 1.280000e+02 : f32
    %160 = vector.broadcast %cst_58 : f32 to vector<24x1xf32>
    %161 = arith.divf %159, %160 : vector<24x1xf32>
    %162 = vector.broadcast %154 : vector<24x1xf32> to vector<24x128xf32>
    %163 = arith.subf %144, %162 : vector<24x128xf32>
    %cst_59 = arith.constant 9.99999974E-6 : f32
    %164 = vector.broadcast %cst_59 : f32 to vector<24x1xf32>
    %165 = arith.addf %161, %164 : vector<24x1xf32>
    %166 = math.rsqrt %165 : vector<24x1xf32>
    %167 = vector.broadcast %166 : vector<24x1xf32> to vector<24x128xf32>
    %168 = arith.mulf %163, %167 : vector<24x128xf32>
    %169 = vector.broadcast %147 : vector<1x128xf32> to vector<24x128xf32>
    %170 = arith.mulf %168, %169 : vector<24x128xf32>
    %171 = vector.broadcast %150 : vector<1x128xf32> to vector<24x128xf32>
    %172 = arith.addf %170, %171 : vector<24x128xf32>
    %cst_60 = arith.constant 0.000000e+00 : f32
    %173 = vector.broadcast %cst_60 : f32 to vector<24x128xf32>
    %174 = arith.maximumf %172, %173 : vector<24x128xf32>
    %175 = arith.addf %123, %174 : vector<24x128xf32>
    %176 = arith.addf %175, %32 : vector<24x128xf32>
    %177 = arith.truncf %176 : vector<24x128xf32> to vector<24x128xbf16>
    %c0_61 = arith.constant 0 : index
    %c0_62 = arith.constant 0 : index
    %178 = vector.load %arg14[%c0_61, %c0_62] : memref<264x128xbf16, #tpu.memory_space<vmem>>, vector<264x128xbf16>
    %cst_63 = arith.constant dense<0.000000e+00> : vector<24x264xf32>
    %179 = tpu.matmul %177, %178, %cst_63 {dimension_numbers = #tpu.dot_dimension_numbers<[1], [1], [0], [0], [0, 0, 1, 0], [], []>} : vector<24x128xbf16>, vector<264x128xbf16>, vector<24x264xf32> -> vector<24x264xf32>
    %180 = vector.extract_strided_slice %179 {offsets = [0, 256], sizes = [24, 8], strides = [1, 1]} : vector<24x264xf32> to vector<24x8xf32>
    %c0_64 = arith.constant 0 : index
    %c0_65 = arith.constant 0 : index
    %181 = vector.load %arg15[%c0_64, %c0_65] : memref<1x8xf32, #tpu.memory_space<vmem>>, vector<1x8xf32>
    %182 = vector.broadcast %181 : vector<1x8xf32> to vector<24x8xf32>
    %183 = arith.addf %180, %182 : vector<24x8xf32>
    %c0_66 = arith.constant 0 : index
    %c0_67 = arith.constant 0 : index
    %184 = vector.load %arg19[%c0_66, %c0_67] : memref<24x8xf32, #tpu.memory_space<vmem>>, vector<24x8xf32>
    tpu.vector_store %arg19[%c0_66, %c0_67], %183 {strides = array<i32>} : memref<24x8xf32, #tpu.memory_space<vmem>>, vector<24x8xf32>,
    %185 = vector.extract_strided_slice %179 {offsets = [0, 0], sizes = [24, 128], strides = [1, 1]} : vector<24x264xf32> to vector<24x128xf32>
    %186 = arith.truncf %185 : vector<24x128xf32> to vector<24x128xbf16>
    %187 = vector.extract_strided_slice %179 {offsets = [0, 128], sizes = [24, 128], strides = [1, 1]} : vector<24x264xf32> to vector<24x128xf32>
    %188 = arith.truncf %187 : vector<24x128xf32> to vector<24x128xbf16>
    %c0_68 = arith.constant 0 : index
    %c0_69 = arith.constant 0 : index
    %189 = vector.load %arg3[%c0_68, %c0_69] : memref<288x24xbf16, #tpu.memory_space<vmem>>, vector<288x24xbf16>
    %cst_70 = arith.constant dense<0.000000e+00> : vector<288x128xf32>
    %190 = tpu.matmul %189, %186, %cst_70 {dimension_numbers = #tpu.dot_dimension_numbers<[1], [0], [0], [1], [0, 0, 1, 1], [], []>} : vector<288x24xbf16>, vector<24x128xbf16>, vector<288x128xf32> -> vector<288x128xf32>
    %c0_71 = arith.constant 0 : index
    %c0_72 = arith.constant 0 : index
    %191 = vector.load %arg4[%c0_71, %c0_72] : memref<288x24xbf16, #tpu.memory_space<vmem>>, vector<288x24xbf16>
    %cst_73 = arith.constant dense<0.000000e+00> : vector<288x128xf32>
    %192 = tpu.matmul %191, %188, %cst_73 {dimension_numbers = #tpu.dot_dimension_numbers<[1], [0], [0], [1], [0, 0, 1, 1], [], []>} : vector<288x24xbf16>, vector<24x128xbf16>, vector<288x128xf32> -> vector<288x128xf32>
    %193 = arith.addf %190, %192 : vector<288x128xf32>
    %c0_74 = arith.constant 0 : index
    %c0_75 = arith.constant 0 : index
    %194 = vector.load %arg16[%c0_74, %c0_75] : memref<1x128xf32, #tpu.memory_space<vmem>>, vector<1x128xf32>
    %195 = vector.broadcast %194 : vector<1x128xf32> to vector<288x128xf32>
    %196 = arith.addf %193, %195 : vector<288x128xf32>
    %cst_76 = arith.constant 0.000000e+00 : f32
    %197 = vector.broadcast %cst_76 : f32 to vector<288x128xf32>
    %198 = arith.maximumf %196, %197 : vector<288x128xf32>
    %c0_77 = arith.constant 0 : index
    %c0_78 = arith.constant 0 : index
    %199 = vector.load %arg17[%c0_77, %c0_78] : memref<2x128xbf16, #tpu.memory_space<vmem>>, vector<2x128xbf16>
    %200 = arith.truncf %198 : vector<288x128xf32> to vector<288x128xbf16>
    %cst_79 = arith.constant dense<0.000000e+00> : vector<2x288xf32>
    %201 = tpu.matmul %199, %200, %cst_79 {dimension_numbers = #tpu.dot_dimension_numbers<[1], [1], [0], [0], [0, 0, 1, 0], [], []>} : vector<2x128xbf16>, vector<288x128xbf16>, vector<2x288xf32> -> vector<2x288xf32>
    %c0_80 = arith.constant 0 : index
    %c0_81 = arith.constant 0 : index
    %202 = vector.load %arg18[%c0_80, %c0_81] : memref<2x1xf32, #tpu.memory_space<vmem>>, vector<2x1xf32>
    %203 = vector.broadcast %202 : vector<2x1xf32> to vector<2x288xf32>
    %204 = arith.addf %201, %203 : vector<2x288xf32>
    %c0_82 = arith.constant 0 : index
    %c0_83 = arith.constant 0 : index
    %205 = vector.load %arg20[%c0_82, %c0_83] : memref<2x288xf32, #tpu.memory_space<vmem>>, vector<2x288xf32>
    tpu.vector_store %arg20[%c0_82, %c0_83], %204 {strides = array<i32>} : memref<2x288xf32, #tpu.memory_space<vmem>>, vector<2x288xf32>,
    return
  }
}

</mosaic_0001>

<llo_original>
// kernel: fgnn_forward.1
$region0: #{fgnn_forward.1}
  #allocation0 [shape = 'u32[]', space=smem, size = 0x4, offset = 0x4, fixed_abs, tag = 'smem constant byte address 0x4 - core index']
  #allocation1 [shape = 'u32[144,128]{1,0:T(1,128)}', space=vmem, size = 0x12000, scoped, tag = 'internal scratch']
  %s0 = inlined_call_operand.vmem [shape: f32[24,896], index: 0, kind: input, shape index: {}]
  %s1 = inlined_call_operand.vmem [shape: f32[24,4], index: 1, kind: input, shape index: {}]
  %s2 = inlined_call_operand.vmem [shape: f32[24,24], index: 2, kind: input, shape index: {}]
  %s3 = inlined_call_operand.vmem [shape: bf16[288,24], index: 3, kind: input, shape index: {}]
  %s4 = inlined_call_operand.vmem [shape: bf16[288,24], index: 4, kind: input, shape index: {}]
  %s5 = inlined_call_operand.vmem [shape: bf16[128,896], index: 5, kind: input, shape index: {}]
  %s6 = inlined_call_operand.vmem [shape: f32[1,128], index: 6, kind: input, shape index: {}]
  %s7 = inlined_call_operand.vmem [shape: f32[1,128], index: 7, kind: input, shape index: {}]
  %s8 = inlined_call_operand.vmem [shape: f32[1,128], index: 8, kind: input, shape index: {}]
  %s9 = inlined_call_operand.vmem [shape: bf16[512,128], index: 9, kind: input, shape index: {}]
  %s10 = inlined_call_operand.vmem [shape: f32[1,512], index: 10, kind: input, shape index: {}]
  %s11 = inlined_call_operand.vmem [shape: bf16[2,128,128], index: 11, kind: input, shape index: {}]
  %s12 = inlined_call_operand.vmem [shape: f32[2,128], index: 12, kind: input, shape index: {}]
  %s13 = inlined_call_operand.vmem [shape: f32[2,128], index: 13, kind: input, shape index: {}]
  %s14 = inlined_call_operand.vmem [shape: bf16[264,128], index: 14, kind: input, shape index: {}]
  %s15 = inlined_call_operand.vmem [shape: f32[1,8], index: 15, kind: input, shape index: {}]
  %s16 = inlined_call_operand.vmem [shape: f32[1,128], index: 16, kind: input, shape index: {}]
  %s17 = inlined_call_operand.vmem [shape: bf16[2,128], index: 17, kind: input, shape index: {}]
  %s18 = inlined_call_operand.vmem [shape: f32[2,1], index: 18, kind: input, shape index: {}]
  %s19 = inlined_call_operand.vmem [shape: f32[24,8], index: 19, kind: output, shape index: {0}]
  %s20 = inlined_call_operand.vmem [shape: f32[2,288], index: 20, kind: output, shape index: {1}]
  %21 = xla_tuple %s19, %s20
  %s22 = sld [smem:[#allocation0]]
  $region94: #{fgnn_forward.1} parent=0
    _
  %s24 = ssub.s32 1, %s22
  %s25 = scalar_select 0, %s24, %s22
  // Predicated region
  $region2: #{fgnn_forward.1} parent=0 // pred_check
    _
  $region3: #{fgnn_forward.1} parent=0 // pred_check_branch
    %27 = sbr.rel (0) target = $region5
  $region4: #{fgnn_forward.1} parent=0 // pred_region
    _
  $region5: #{fgnn_forward.1} parent=0 // pred_fallthru
    _
  // Predicated region
  $region6: #{fgnn_forward.1} parent=0 // pred_check
    _
  $region7: #{fgnn_forward.1} parent=0 // pred_check_branch
    %29 = sbr.rel (0) target = $region9
  $region8: #{fgnn_forward.1} parent=0 // pred_region
    _
  $region9: #{fgnn_forward.1} parent=0 // pred_fallthru
    _
  // Predicated region
  $region10: #{fgnn_forward.1} parent=0 // pred_check
    _
  $region11: #{fgnn_forward.1} parent=0 // pred_check_branch
    %31 = sbr.rel (0) target = $region13
  $region12: #{fgnn_forward.1} parent=0 // pred_region
    _
  $region13: #{fgnn_forward.1} parent=0 // pred_fallthru
    _
  // Predicated region
  $region14: #{fgnn_forward.1} parent=0 // pred_check
    _
  $region15: #{fgnn_forward.1} parent=0 // pred_check_branch
    %33 = sbr.rel (0) target = $region17
  $region16: #{fgnn_forward.1} parent=0 // pred_region
    _
  $region17: #{fgnn_forward.1} parent=0 // pred_fallthru
    _
  // Predicated region
  $region18: #{fgnn_forward.1} parent=0 // pred_check
    _
  $region19: #{fgnn_forward.1} parent=0 // pred_check_branch
    %35 = sbr.rel (0) target = $region21
  $region20: #{fgnn_forward.1} parent=0 // pred_region
    _
  $region21: #{fgnn_forward.1} parent=0 // pred_fallthru
    _
  // Predicated region
  $region22: #{fgnn_forward.1} parent=0 // pred_check
    _
  $region23: #{fgnn_forward.1} parent=0 // pred_check_branch
    %37 = sbr.rel (0) target = $region25
  $region24: #{fgnn_forward.1} parent=0 // pred_region
    _
  $region25: #{fgnn_forward.1} parent=0 // pred_fallthru
    _
  // Predicated region
  $region26: #{fgnn_forward.1} parent=0 // pred_check
    _
  $region27: #{fgnn_forward.1} parent=0 // pred_check_branch
    %39 = sbr.rel (0) target = $region29
  $region28: #{fgnn_forward.1} parent=0 // pred_region
    _
  $region29: #{fgnn_forward.1} parent=0 // pred_fallthru
    _
  // Predicated region
  $region30: #{fgnn_forward.1} parent=0 // pred_check
    _
  $region31: #{fgnn_forward.1} parent=0 // pred_check_branch
    %41 = sbr.rel (0) target = $region33
  $region32: #{fgnn_forward.1} parent=0 // pred_region
    _
  $region33: #{fgnn_forward.1} parent=0 // pred_fallthru
    _
  // Predicated region
  $region34: #{fgnn_forward.1} parent=0 // pred_check
    _
  $region35: #{fgnn_forward.1} parent=0 // pred_check_branch
    %43 = sbr.rel (0) target = $region37
  $region36: #{fgnn_forward.1} parent=0 // pred_region
    _
  $region37: #{fgnn_forward.1} parent=0 // pred_fallthru
    _
  // Predicated region
  $region38: #{fgnn_forward.1} parent=0 // pred_check
    _
  $region39: #{fgnn_forward.1} parent=0 // pred_check_branch
    %45 = sbr.rel (0) target = $region41
  $region40: #{fgnn_forward.1} parent=0 // pred_region
    _
  $region41: #{fgnn_forward.1} parent=0 // pred_fallthru
    _
  // Predicated region
  $region42: #{fgnn_forward.1} parent=0 // pred_check
    _
  $region43: #{fgnn_forward.1} parent=0 // pred_check_branch
    %47 = sbr.rel (0) target = $region45
  $region44: #{fgnn_forward.1} parent=0 // pred_region
    _
  $region45: #{fgnn_forward.1} parent=0 // pred_fallthru
    _
  // Predicated region
  $region46: #{fgnn_forward.1} parent=0 // pred_check
    _
  $region47: #{fgnn_forward.1} parent=0 // pred_check_branch
    %49 = sbr.rel (0) target = $region49
  $region48: #{fgnn_forward.1} parent=0 // pred_region
    _
  $region49: #{fgnn_forward.1} parent=0 // pred_fallthru
    _
  // Predicated region
  $region50: #{fgnn_forward.1} parent=0 // pred_check
    _
  $region51: #{fgnn_forward.1} parent=0 // pred_check_branch
    %51 = sbr.rel (0) target = $region53
  $region52: #{fgnn_forward.1} parent=0 // pred_region
    _
  $region53: #{fgnn_forward.1} parent=0 // pred_fallthru
    _
  // Predicated region
  $region54: #{fgnn_forward.1} parent=0 // pred_check
    _
  $region55: #{fgnn_forward.1} parent=0 // pred_check_branch
    %53 = sbr.rel (0) target = $region57
  $region56: #{fgnn_forward.1} parent=0 // pred_region
    _
  $region57: #{fgnn_forward.1} parent=0 // pred_fallthru
    _
  // Predicated region
  $region58: #{fgnn_forward.1} parent=0 // pred_check
    _
  $region59: #{fgnn_forward.1} parent=0 // pred_check_branch
    %55 = sbr.rel (0) target = $region61
  $region60: #{fgnn_forward.1} parent=0 // pred_region
    _
  $region61: #{fgnn_forward.1} parent=0 // pred_fallthru
    _
  // Predicated region
  $region62: #{fgnn_forward.1} parent=0 // pred_check
    _
  $region63: #{fgnn_forward.1} parent=0 // pred_check_branch
    %57 = sbr.rel (0) target = $region65
  $region64: #{fgnn_forward.1} parent=0 // pred_region
    _
  $region65: #{fgnn_forward.1} parent=0 // pred_fallthru
    _
  // Predicated region
  $region66: #{fgnn_forward.1} parent=0 // pred_check
    _
  $region67: #{fgnn_forward.1} parent=0 // pred_check_branch
    %59 = sbr.rel (0) target = $region69
  $region68: #{fgnn_forward.1} parent=0 // pred_region
    _
  $region69: #{fgnn_forward.1} parent=0 // pred_fallthru
    _
  // Predicated region
  $region70: #{fgnn_forward.1} parent=0 // pred_check
    _
  $region71: #{fgnn_forward.1} parent=0 // pred_check_branch
    %61 = sbr.rel (0) target = $region73
  $region72: #{fgnn_forward.1} parent=0 // pred_region
    _
  $region73: #{fgnn_forward.1} parent=0 // pred_fallthru
    _
  // Predicated region
  $region74: #{fgnn_forward.1} parent=0 // pred_check
    _
  $region75: #{fgnn_forward.1} parent=0 // pred_check_branch
    %63 = sbr.rel (0) target = $region77
  $region76: #{fgnn_forward.1} parent=0 // pred_region
    _
  $region77: #{fgnn_forward.1} parent=0 // pred_fallthru
    _
  %v65 = vld [vmem:[%s0] sm:$0xff]
  %v66 = vld [vmem:[%s0 + $0x8] sm:$0xff]
  %v67 = vld [vmem:[%s0 + $0x10] sm:$0xff]
  %v68 = vld [vmem:[%s0 + $0x18] sm:$0xff]
  %v69 = vld [vmem:[%s0 + $0x20] sm:$0xff]
  %v70 = vld [vmem:[%s0 + $0x28] sm:$0xff]
  %v71 = vld [vmem:[%s0 + $0x30] sm:$0xff]
  %v72 = vld [vmem:[%s0 + $0x38] sm:$0xff]
  %v73 = vld [vmem:[%s0 + $0x40] sm:$0xff]
  %v74 = vld [vmem:[%s0 + $0x48] sm:$0xff]
  %v75 = vld [vmem:[%s0 + $0x50] sm:$0xff]
  %v76 = vld [vmem:[%s0 + $0x58] sm:$0xff]
  %v77 = vld [vmem:[%s0 + $0x60] sm:$0xff]
  %v78 = vld [vmem:[%s0 + $0x68] sm:$0xff]
  %v79 = vld [vmem:[%s0 + $0x70] sm:$0xff]
  %v80 = vld [vmem:[%s0 + $0x78] sm:$0xff]
  %v81 = vld [vmem:[%s0 + $0x80] sm:$0xff]
  %v82 = vld [vmem:[%s0 + $0x88] sm:$0xff]
  %v83 = vld [vmem:[%s0 + $0x90] sm:$0xff]
  %v84 = vld [vmem:[%s0 + $0x98] sm:$0xff]
  %v85 = vld [vmem:[%s0 + $0xa0] sm:$0xff]
  %v86 = vpack.c.bf16 %v72, %v65
  %v87 = vpack.c.bf16 %v73, %v66
  %v88 = vpack.c.bf16 %v74, %v67
  %v89 = vpack.c.bf16 %v75, %v68
  %v90 = vpack.c.bf16 %v76, %v69
  %v91 = vpack.c.bf16 %v77, %v70
  %v92 = vpack.c.bf16 %v78, %v71
  %v93 = vpack.c.bf16 %v79, %v79
  %v94 = vpack.c.bf16 %v80, %v80
  %v95 = vpack.c.bf16 %v81, %v81
  %v96 = vpack.c.bf16 %v82, %v82
  %v97 = vpack.c.bf16 %v83, %v83
  %v98 = vpack.c.bf16 %v84, %v84
  %v99 = vpack.c.bf16 %v85, %v85
  %v100 = vld [vmem:[%s5] sm:$0xff]
  %v101 = vld [vmem:[%s5 + $0x8] sm:$0xff]
  %v102 = vld [vmem:[%s5 + $0x10] sm:$0xff]
  %v103 = vld [vmem:[%s5 + $0x18] sm:$0xf]
  %v104 = vld [vmem:[%s5 + $0x1c] sm:$0xff]
  %v105 = vld [vmem:[%s5 + $0x24] sm:$0xff]
  %v106 = vld [vmem:[%s5 + $0x2c] sm:$0xff]
  %v107 = vld [vmem:[%s5 + $0x34] sm:$0xf]
  %v108 = vld [vmem:[%s5 + $0x38] sm:$0xff]
  %v109 = vld [vmem:[%s5 + $0x40] sm:$0xff]
  %v110 = vld [vmem:[%s5 + $0x48] sm:$0xff]
  %v111 = vld [vmem:[%s5 + $0x50] sm:$0xf]
  %v112 = vld [vmem:[%s5 + $0x54] sm:$0xff]
  %v113 = vld [vmem:[%s5 + $0x5c] sm:$0xff]
  %v114 = vld [vmem:[%s5 + $0x64] sm:$0xff]
  %v115 = vld [vmem:[%s5 + $0x6c] sm:$0xf]
  %v116 = vld [vmem:[%s5 + $0x70] sm:$0xff]
  %v117 = vld [vmem:[%s5 + $0x78] sm:$0xff]
  %v118 = vld [vmem:[%s5 + $0x80] sm:$0xff]
  %v119 = vld [vmem:[%s5 + $0x88] sm:$0xf]
  %v120 = vld [vmem:[%s5 + $0x8c] sm:$0xff]
  %v121 = vld [vmem:[%s5 + $0x94] sm:$0xff]
  %v122 = vld [vmem:[%s5 + $0x9c] sm:$0xff]
  %v123 = vld [vmem:[%s5 + $0xa4] sm:$0xf]
  %v124 = vld [vmem:[%s5 + $0xa8] sm:$0xff]
  %v125 = vld [vmem:[%s5 + $0xb0] sm:$0xff]
  %v126 = vld [vmem:[%s5 + $0xb8] sm:$0xff]
  %v127 = vld [vmem:[%s5 + $0xc0] sm:$0xf]
  %v128 = vld [vmem:[%s5 + $0xc4] sm:$0xff]
  %v129 = vld [vmem:[%s5 + $0xcc] sm:$0xff]
  %v130 = vld [vmem:[%s5 + $0xd4] sm:$0xff]
  %v131 = vld [vmem:[%s5 + $0xdc] sm:$0xf]
  %v132 = vld [vmem:[%s5 + $0xe0] sm:$0xff]
  %v133 = vld [vmem:[%s5 + $0xe8] sm:$0xff]
  %v134 = vld [vmem:[%s5 + $0xf0] sm:$0xff]
  %v135 = vld [vmem:[%s5 + $0xf8] sm:$0xf]
  %v136 = vld [vmem:[%s5 + $0xfc] sm:$0xff]
  %v137 = vld [vmem:[%s5 + $0x104] sm:$0xff]
  %v138 = vld [vmem:[%s5 + $0x10c] sm:$0xff]
  %v139 = vld [vmem:[%s5 + $0x114] sm:$0xf]
  %v140 = vld [vmem:[%s5 + $0x118] sm:$0xff]
  %v141 = vld [vmem:[%s5 + $0x120] sm:$0xff]
  %v142 = vld [vmem:[%s5 + $0x128] sm:$0xff]
  %v143 = vld [vmem:[%s5 + $0x130] sm:$0xf]
  %v144 = vld [vmem:[%s5 + $0x134] sm:$0xff]
  %v145 = vld [vmem:[%s5 + $0x13c] sm:$0xff]
  %v146 = vld [vmem:[%s5 + $0x144] sm:$0xff]
  %v147 = vld [vmem:[%s5 + $0x14c] sm:$0xf]
  %v148 = vld [vmem:[%s5 + $0x150] sm:$0xff]
  %v149 = vld [vmem:[%s5 + $0x158] sm:$0xff]
  %v150 = vld [vmem:[%s5 + $0x160] sm:$0xff]
  %v151 = vld [vmem:[%s5 + $0x168] sm:$0xf]
  %v152 = vld [vmem:[%s5 + $0x16c] sm:$0xff]
  %v153 = vld [vmem:[%s5 + $0x174] sm:$0xff]
  %v154 = vld [vmem:[%s5 + $0x17c] sm:$0xff]
  %v155 = vld [vmem:[%s5 + $0x184] sm:$0xf]
  %v156 = vld [vmem:[%s5 + $0x188] sm:$0xff]
  %v157 = vld [vmem:[%s5 + $0x190] sm:$0xff]
  %v158 = vld [vmem:[%s5 + $0x198] sm:$0xff]
  %v159 = vld [vmem:[%s5 + $0x1a0] sm:$0xf]
  %v160 = vld [vmem:[%s5 + $0x1a4] sm:$0xff]
  %v161 = vld [vmem:[%s5 + $0x1ac] sm:$0xff]
  %v162 = vld [vmem:[%s5 + $0x1b4] sm:$0xff]
  %v163 = vld [vmem:[%s5 + $0x1bc] sm:$0xf]
  %v164 = vld [vmem:[%s6] sm:$0x1]
  %v166 = vlaneseq
  %v167 = vshrl.u32 %v166, 7
  %v168 = vsub.s32 0, %v167
  %v169 = vrot.slane %v164, %v168
  %v235 = vunpack.c.l.b16 %v100
  %v236 = vunpack.c.h.b16 %v100
  %v237 = vunpack.c.l.b16 %v101
  %v238 = vunpack.c.h.b16 %v101
  %v239 = vunpack.c.l.b16 %v102
  %v240 = vunpack.c.h.b16 %v102
  %v241 = vunpack.c.l.b16 %v103
  %v242 = vunpack.c.l.b16 %v104
  %v243 = vunpack.c.h.b16 %v104
  %v244 = vunpack.c.l.b16 %v105
  %v245 = vunpack.c.h.b16 %v105
  %v246 = vunpack.c.l.b16 %v106
  %v247 = vunpack.c.h.b16 %v106
  %v248 = vunpack.c.l.b16 %v107
  %v249 = vunpack.c.l.b16 %v108
  %v250 = vunpack.c.h.b16 %v108
  %v251 = vunpack.c.l.b16 %v109
  %v252 = vunpack.c.h.b16 %v109
  %v253 = vunpack.c.l.b16 %v110
  %v254 = vunpack.c.h.b16 %v110
  %v255 = vunpack.c.l.b16 %v111
  %v256 = vunpack.c.l.b16 %v112
  %v257 = vunpack.c.h.b16 %v112
  %v258 = vunpack.c.l.b16 %v113
  %v259 = vunpack.c.h.b16 %v113
  %v260 = vunpack.c.l.b16 %v114
  %v261 = vunpack.c.h.b16 %v114
  %v262 = vunpack.c.l.b16 %v115
  %v263 = vunpack.c.l.b16 %v116
  %v264 = vunpack.c.h.b16 %v116
  %v265 = vunpack.c.l.b16 %v117
  %v266 = vunpack.c.h.b16 %v117
  %v267 = vunpack.c.l.b16 %v118
  %v268 = vunpack.c.h.b16 %v118
  %v269 = vunpack.c.l.b16 %v119
  %v270 = vunpack.c.l.b16 %v120
  %v271 = vunpack.c.h.b16 %v120
  %v272 = vunpack.c.l.b16 %v121
  %v273 = vunpack.c.h.b16 %v121
  %v274 = vunpack.c.l.b16 %v122
  %v275 = vunpack.c.h.b16 %v122
  %v276 = vunpack.c.l.b16 %v123
  %v277 = vunpack.c.l.b16 %v124
  %v278 = vunpack.c.h.b16 %v124
  %v279 = vunpack.c.l.b16 %v125
  %v280 = vunpack.c.h.b16 %v125
  %v281 = vunpack.c.l.b16 %v126
  %v282 = vunpack.c.h.b16 %v126
  %v283 = vunpack.c.l.b16 %v127
  %v284 = vunpack.c.l.b16 %v128
  %v285 = vunpack.c.h.b16 %v128
  %v286 = vunpack.c.l.b16 %v129
  %v287 = vunpack.c.h.b16 %v129
  %v288 = vunpack.c.l.b16 %v130
  %v289 = vunpack.c.h.b16 %v130
  %v290 = vunpack.c.l.b16 %v131
  %v291 = vunpack.c.l.b16 %v132
  %v292 = vunpack.c.h.b16 %v132
  %v293 = vunpack.c.l.b16 %v133
  %v294 = vunpack.c.h.b16 %v133
  %v295 = vunpack.c.l.b16 %v134
  %v296 = vunpack.c.h.b16 %v134
  %v297 = vunpack.c.l.b16 %v135
  %v298 = vunpack.c.l.b16 %v136
  %v299 = vunpack.c.h.b16 %v136
  %v300 = vunpack.c.l.b16 %v137
  %v301 = vunpack.c.h.b16 %v137
  %v302 = vunpack.c.l.b16 %v138
  %v303 = vunpack.c.h.b16 %v138
  %v304 = vunpack.c.l.b16 %v139
  %v305 = vunpack.c.l.b16 %v140
  %v306 = vunpack.c.h.b16 %v140
  %v307 = vunpack.c.l.b16 %v141
  %v308 = vunpack.c.h.b16 %v141
  %v309 = vunpack.c.l.b16 %v142
  %v310 = vunpack.c.h.b16 %v142
  %v311 = vunpack.c.l.b16 %v143
  %v312 = vunpack.c.l.b16 %v144
  %v313 = vunpack.c.h.b16 %v144
  %v314 = vunpack.c.l.b16 %v145
  %v315 = vunpack.c.h.b16 %v145
  %v316 = vunpack.c.l.b16 %v146
  %v317 = vunpack.c.h.b16 %v146
  %v318 = vunpack.c.l.b16 %v147
  %v319 = vunpack.c.l.b16 %v148
  %v320 = vunpack.c.h.b16 %v148
  %v321 = vunpack.c.l.b16 %v149
  %v322 = vunpack.c.h.b16 %v149
  %v323 = vunpack.c.l.b16 %v150
  %v324 = vunpack.c.h.b16 %v150
  %v325 = vunpack.c.l.b16 %v151
  %v326 = vunpack.c.l.b16 %v152
  %v327 = vunpack.c.h.b16 %v152
  %v328 = vunpack.c.l.b16 %v153
  %v329 = vunpack.c.h.b16 %v153
  %v330 = vunpack.c.l.b16 %v154
  %v331 = vunpack.c.h.b16 %v154
  %v332 = vunpack.c.l.b16 %v155
  %v333 = vunpack.c.l.b16 %v156
  %v334 = vunpack.c.h.b16 %v156
  %v335 = vunpack.c.l.b16 %v157
  %v336 = vunpack.c.h.b16 %v157
  %v337 = vunpack.c.l.b16 %v158
  %v338 = vunpack.c.h.b16 %v158
  %v339 = vunpack.c.l.b16 %v159
  %v340 = vunpack.c.l.b16 %v160
  %v341 = vunpack.c.h.b16 %v160
  %v342 = vunpack.c.l.b16 %v161
  %v343 = vunpack.c.h.b16 %v161
  %v344 = vunpack.c.l.b16 %v162
  %v345 = vunpack.c.h.b16 %v162
  %v346 = vunpack.c.l.b16 %v163
  %v347 = vpack.c.b16 %v242, %v235
  %v348 = vpack.c.b16 %v243, %v236
  %v349 = vpack.c.b16 %v244, %v237
  %v350 = vpack.c.b16 %v245, %v238
  %v351 = vpack.c.b16 %v246, %v239
  %v352 = vpack.c.b16 %v247, %v240
  %v353 = vpack.c.b16 %v248, %v241
  %v354 = vpack.c.b16 %v256, %v249
  %v355 = vpack.c.b16 %v257, %v250
  %v356 = vpack.c.b16 %v258, %v251
  %v357 = vpack.c.b16 %v259, %v252
  %v358 = vpack.c.b16 %v260, %v253
  %v359 = vpack.c.b16 %v261, %v254
  %v360 = vpack.c.b16 %v262, %v255
  %v361 = vpack.c.b16 %v270, %v263
  %v362 = vpack.c.b16 %v271, %v264
  %v363 = vpack.c.b16 %v272, %v265
  %v364 = vpack.c.b16 %v273, %v266
  %v365 = vpack.c.b16 %v274, %v267
  %v366 = vpack.c.b16 %v275, %v268
  %v367 = vpack.c.b16 %v276, %v269
  %v368 = vpack.c.b16 %v284, %v277
  %v369 = vpack.c.b16 %v285, %v278
  %v370 = vpack.c.b16 %v286, %v279
  %v371 = vpack.c.b16 %v287, %v280
  %v372 = vpack.c.b16 %v288, %v281
  %v373 = vpack.c.b16 %v289, %v282
  %v374 = vpack.c.b16 %v290, %v283
  %v375 = vpack.c.b16 %v298, %v291
  %v376 = vpack.c.b16 %v299, %v292
  %v377 = vpack.c.b16 %v300, %v293
  %v378 = vpack.c.b16 %v301, %v294
  %v379 = vpack.c.b16 %v302, %v295
  %v380 = vpack.c.b16 %v303, %v296
  %v381 = vpack.c.b16 %v304, %v297
  %v382 = vpack.c.b16 %v312, %v305
  %v383 = vpack.c.b16 %v313, %v306
  %v384 = vpack.c.b16 %v314, %v307
  %v385 = vpack.c.b16 %v315, %v308
  %v386 = vpack.c.b16 %v316, %v309
  %v387 = vpack.c.b16 %v317, %v310
  %v388 = vpack.c.b16 %v318, %v311
  %v389 = vpack.c.b16 %v326, %v319
  %v390 = vpack.c.b16 %v327, %v320
  %v391 = vpack.c.b16 %v328, %v321
  %v392 = vpack.c.b16 %v329, %v322
  %v393 = vpack.c.b16 %v330, %v323
  %v394 = vpack.c.b16 %v331, %v324
  %v395 = vpack.c.b16 %v332, %v325
  %v396 = vpack.c.b16 %v340, %v333
  %v397 = vpack.c.b16 %v341, %v334
  %v398 = vpack.c.b16 %v342, %v335
  %v399 = vpack.c.b16 %v343, %v336
  %v400 = vpack.c.b16 %v344, %v337
  %v401 = vpack.c.b16 %v345, %v338
  %v402 = vpack.c.b16 %v346, %v339
  %459 = vmatprep.subr.bf16.mxu0 %v348
  %460 = vmatpush1.bf16.xpose.msra.mxu0 %v347
  %461 = vmatprep.subr.bf16.mxu0 %v355
  %462 = vmatpush1.bf16.xpose.msra.mxu0 %v354
  %463 = vmatprep.subr.bf16.mxu0 %v362
  %464 = vmatpush1.bf16.xpose.msra.mxu0 %v361
  %465 = vmatprep.subr.bf16.mxu0 %v369
  %466 = vmatpush1.bf16.xpose.msra.mxu0 %v368
  %467 = vmatprep.subr.bf16.mxu0 %v376
  %468 = vmatpush1.bf16.xpose.msra.mxu0 %v375
  %469 = vmatprep.subr.bf16.mxu0 %v383
  %470 = vmatpush1.bf16.xpose.msra.mxu0 %v382
  %471 = vmatprep.subr.bf16.mxu0 %v390
  %472 = vmatpush1.bf16.xpose.msra.mxu0 %v389
  %473 = vmatprep.subr.bf16.mxu0 %v397
  %474 = vmatpush1.bf16.xpose.msra.mxu0 %v396
  %475 = vmatprep.subr.bf16.mxu0 0
  %476 = vmatpush1.bf16.xpose.msra.mxu0 0
  %477 = vmatprep.subr.bf16.mxu0 0
  %478 = vmatpush1.bf16.xpose.msra.mxu0 0
  %479 = vmatprep.subr.bf16.mxu0 0
  %480 = vmatpush1.bf16.xpose.msra.mxu0 0
  %481 = vmatprep.subr.bf16.mxu0 0
  %482 = vmatpush1.bf16.xpose.msra.mxu0 0
  %483 = vmatprep.subr.bf16.mxu0 0
  %484 = vmatpush1.bf16.xpose.msra.mxu0 0
  %485 = vmatprep.subr.bf16.mxu0 0
  %486 = vmatpush1.bf16.xpose.msra.mxu0 0
  %487 = vmatprep.subr.bf16.mxu0 0
  %488 = vmatpush1.bf16.xpose.msra.mxu0 0
  %489 = vmatprep.subr.bf16.mxu0 0
  %490 = vmatpush1.bf16.xpose.msra.mxu0 0
  %491 = vmatprep.mubr.bf16.mxu0 %v87
  %492 = vmatmul.mubr.bf16.gmra.mrb[0].mxu0 %v86
  %v493 = vpop.f32.mrb[0].mxu0
  %v494 = vadd.f32 %v169, %v493
  %v495 = vpop.f32.mrb[0].mxu0
  %v496 = vpop.f32.mrb[0].mxu0
  %v497 = vadd.f32 %v169, %v496
  %v498 = vpop.f32.mrb[0].mxu0
  %499 = vmatprep.mubr.bf16.mxu0 %v94
  %500 = vmatmul.mubr.bf16.gmra.mrb[0].mxu0 %v93
  %v501 = vpop.f32.mrb[0].mxu0
  %v502 = vadd.f32 %v169, %v501
  %v503 = vpop.f32.mrb[0].mxu0
  %v504 = vpop.f32.mrb[0].mxu0
  %v505 = vpop.f32.mrb[0].mxu0
  %506 = vdwg.mxu0
  %507 = vmatprep.subr.bf16.mxu0 %v350
  %508 = vmatpush1.bf16.xpose.msra.mxu0 %v349
  %509 = vmatprep.subr.bf16.mxu0 %v357
  %510 = vmatpush1.bf16.xpose.msra.mxu0 %v356
  %511 = vmatprep.subr.bf16.mxu0 %v364
  %512 = vmatpush1.bf16.xpose.msra.mxu0 %v363
  %513 = vmatprep.subr.bf16.mxu0 %v371
  %514 = vmatpush1.bf16.xpose.msra.mxu0 %v370
  %515 = vmatprep.subr.bf16.mxu0 %v378
  %516 = vmatpush1.bf16.xpose.msra.mxu0 %v377
  %517 = vmatprep.subr.bf16.mxu0 %v385
  %518 = vmatpush1.bf16.xpose.msra.mxu0 %v384
  %519 = vmatprep.subr.bf16.mxu0 %v392
  %520 = vmatpush1.bf16.xpose.msra.mxu0 %v391
  %521 = vmatprep.subr.bf16.mxu0 %v399
  %522 = vmatpush1.bf16.xpose.msra.mxu0 %v398
  %523 = vmatprep.subr.bf16.mxu0 0
  %524 = vmatpush1.bf16.xpose.msra.mxu0 0
  %525 = vmatprep.subr.bf16.mxu0 0
  %526 = vmatpush1.bf16.xpose.msra.mxu0 0
  %527 = vmatprep.subr.bf16.mxu0 0
  %528 = vmatpush1.bf16.xpose.msra.mxu0 0
  %529 = vmatprep.subr.bf16.mxu0 0
  %530 = vmatpush1.bf16.xpose.msra.mxu0 0
  %531 = vmatprep.subr.bf16.mxu0 0
  %532 = vmatpush1.bf16.xpose.msra.mxu0 0
  %533 = vmatprep.subr.bf16.mxu0 0
  %534 = vmatpush1.bf16.xpose.msra.mxu0 0
  %535 = vmatprep.subr.bf16.mxu0 0
  %536 = vmatpush1.bf16.xpose.msra.mxu0 0
  %537 = vmatprep.subr.bf16.mxu0 0
  %538 = vmatpush1.bf16.xpose.msra.mxu0 0
  %539 = vmatprep.mubr.bf16.mxu0 %v89
  %540 = vmatmul.mubr.bf16.gmra.mrb[0].mxu0 %v88
  %v541 = vpop.f32.mrb[0].mxu0
  %v542 = vadd.f32 %v494, %v541
  %v543 = vpop.f32.mrb[0].mxu0
  %v544 = vpop.f32.mrb[0].mxu0
  %v545 = vadd.f32 %v497, %v544
  %v546 = vpop.f32.mrb[0].mxu0
  %547 = vmatprep.mubr.bf16.mxu0 %v96
  %548 = vmatmul.mubr.bf16.gmra.mrb[0].mxu0 %v95
  %v549 = vpop.f32.mrb[0].mxu0
  %v550 = vadd.f32 %v502, %v549
  %v551 = vpop.f32.mrb[0].mxu0
  %v552 = vpop.f32.mrb[0].mxu0
  %v553 = vpop.f32.mrb[0].mxu0
  %554 = vdwg.mxu0
  %555 = vmatprep.subr.bf16.mxu0 %v352
  %556 = vmatpush1.bf16.xpose.msra.mxu0 %v351
  %557 = vmatprep.subr.bf16.mxu0 %v359
  %558 = vmatpush1.bf16.xpose.msra.mxu0 %v358
  %559 = vmatprep.subr.bf16.mxu0 %v366
  %560 = vmatpush1.bf16.xpose.msra.mxu0 %v365
  %561 = vmatprep.subr.bf16.mxu0 %v373
  %562 = vmatpush1.bf16.xpose.msra.mxu0 %v372
  %563 = vmatprep.subr.bf16.mxu0 %v380
  %564 = vmatpush1.bf16.xpose.msra.mxu0 %v379
  %565 = vmatprep.subr.bf16.mxu0 %v387
  %566 = vmatpush1.bf16.xpose.msra.mxu0 %v386
  %567 = vmatprep.subr.bf16.mxu0 %v394
  %568 = vmatpush1.bf16.xpose.msra.mxu0 %v393
  %569 = vmatprep.subr.bf16.mxu0 %v401
  %570 = vmatpush1.bf16.xpose.msra.mxu0 %v400
  %571 = vmatprep.subr.bf16.mxu0 0
  %572 = vmatpush1.bf16.xpose.msra.mxu0 0
  %573 = vmatprep.subr.bf16.mxu0 0
  %574 = vmatpush1.bf16.xpose.msra.mxu0 0
  %575 = vmatprep.subr.bf16.mxu0 0
  %576 = vmatpush1.bf16.xpose.msra.mxu0 0
  %577 = vmatprep.subr.bf16.mxu0 0
  %578 = vmatpush1.bf16.xpose.msra.mxu0 0
  %579 = vmatprep.subr.bf16.mxu0 0
  %580 = vmatpush1.bf16.xpose.msra.mxu0 0
  %581 = vmatprep.subr.bf16.mxu0 0
  %582 = vmatpush1.bf16.xpose.msra.mxu0 0
  %583 = vmatprep.subr.bf16.mxu0 0
  %584 = vmatpush1.bf16.xpose.msra.mxu0 0
  %585 = vmatprep.subr.bf16.mxu0 0
  %586 = vmatpush1.bf16.xpose.msra.mxu0 0
  %587 = vmatprep.mubr.bf16.mxu0 %v91
  %588 = vmatmul.mubr.bf16.gmra.mrb[0].mxu0 %v90
  %v589 = vpop.f32.mrb[0].mxu0
  %v590 = vadd.f32 %v542, %v589
  %v591 = vpop.f32.mrb[0].mxu0
  %v592 = vpop.f32.mrb[0].mxu0
  %v593 = vadd.f32 %v545, %v592
  %v594 = vpop.f32.mrb[0].mxu0
  %595 = vmatprep.mubr.bf16.mxu0 %v98
  %596 = vmatmul.mubr.bf16.gmra.mrb[0].mxu0 %v97
  %v597 = vpop.f32.mrb[0].mxu0
  %v598 = vadd.f32 %v550, %v597
  %v599 = vpop.f32.mrb[0].mxu0
  %v600 = vpop.f32.mrb[0].mxu0
  %v601 = vpop.f32.mrb[0].mxu0
  %602 = vdwg.mxu0
  %603 = vmatprep.subr.bf16.mxu0 0
  %604 = vmatpush1.bf16.xpose.msra.mxu0 %v353
  %605 = vmatprep.subr.bf16.mxu0 0
  %606 = vmatpush1.bf16.xpose.msra.mxu0 %v360
  %607 = vmatprep.subr.bf16.mxu0 0
  %608 = vmatpush1.bf16.xpose.msra.mxu0 %v367
  %609 = vmatprep.subr.bf16.mxu0 0
  %610 = vmatpush1.bf16.xpose.msra.mxu0 %v374
  %611 = vmatprep.subr.bf16.mxu0 0
  %612 = vmatpush1.bf16.xpose.msra.mxu0 %v381
  %613 = vmatprep.subr.bf16.mxu0 0
  %614 = vmatpush1.bf16.xpose.msra.mxu0 %v388
  %615 = vmatprep.subr.bf16.mxu0 0
  %616 = vmatpush1.bf16.xpose.msra.mxu0 %v395
  %617 = vmatprep.subr.bf16.mxu0 0
  %618 = vmatpush1.bf16.xpose.msra.mxu0 %v402
  %619 = vmatprep.subr.bf16.mxu0 0
  %620 = vmatpush1.bf16.xpose.msra.mxu0 0
  %621 = vmatprep.subr.bf16.mxu0 0
  %622 = vmatpush1.bf16.xpose.msra.mxu0 0
  %623 = vmatprep.subr.bf16.mxu0 0
  %624 = vmatpush1.bf16.xpose.msra.mxu0 0
  %625 = vmatprep.subr.bf16.mxu0 0
  %626 = vmatpush1.bf16.xpose.msra.mxu0 0
  %627 = vmatprep.subr.bf16.mxu0 0
  %628 = vmatpush1.bf16.xpose.msra.mxu0 0
  %629 = vmatprep.subr.bf16.mxu0 0
  %630 = vmatpush1.bf16.xpose.msra.mxu0 0
  %631 = vmatprep.subr.bf16.mxu0 0
  %632 = vmatpush1.bf16.xpose.msra.mxu0 0
  %633 = vmatprep.subr.bf16.mxu0 0
  %634 = vmatpush1.bf16.xpose.msra.mxu0 0
  %635 = vmatprep.mubr.bf16.mxu0 0
  %636 = vmatmul.mubr.bf16.gmra.mrb[0].mxu0 %v92
  %v637 = vpop.f32.mrb[0].mxu0
  %v638 = vadd.f32 %v590, %v637
  %v639 = vpop.f32.mrb[0].mxu0
  %v640 = vpop.f32.mrb[0].mxu0
  %v641 = vadd.f32 %v593, %v640
  %v642 = vpop.f32.mrb[0].mxu0
  %643 = vmatprep.mubr.bf16.mxu0 0
  %644 = vmatmul.mubr.bf16.gmra.mrb[0].mxu0 %v99
  %v645 = vpop.f32.mrb[0].mxu0
  %v646 = vadd.f32 %v598, %v645
  %v647 = vpop.f32.mrb[0].mxu0
  %v648 = vpop.f32.mrb[0].mxu0
  %v649 = vpop.f32.mrb[0].mxu0
  %650 = vdwg.mxu0
  %v651 = vld [vmem:[%s7] sm:$0x1]
  %v652 = vld [vmem:[%s8] sm:$0x1]
  %653 = vadd.xlane.f32.xlu0 %v638
  %v654 = vpop.xlane.xlu0 %653
  %655 = vadd.xlane.f32.xlu0 %v641
  %v656 = vpop.xlane.xlu0 %655
  %657 = vadd.xlane.f32.xlu0 %v646
  %v658 = vpop.xlane.xlu0 %657
  %v659 = vrcp.pop 128.0
  %v660 = vmul.f32 %v654, %v659
  %v661 = vmul.f32 %v656, %v659
  %v662 = vmul.f32 %v658, %v659
  %v663 = vsub.f32 %v638, %v660
  %v664 = vsub.f32 %v641, %v661
  %v665 = vsub.f32 %v646, %v662
  %v666 = vmul.f32 %v663, %v663
  %v667 = vmul.f32 %v664, %v664
  %v668 = vmul.f32 %v665, %v665
  %669 = vadd.xlane.f32.xlu0 %v666
  %v670 = vpop.xlane.xlu0 %669
  %671 = vadd.xlane.f32.xlu0 %v667
  %v672 = vpop.xlane.xlu0 %671
  %673 = vadd.xlane.f32.xlu0 %v668
  %v674 = vpop.xlane.xlu0 %673
  %v675 = vmul.f32 %v670, %v659
  %v676 = vmul.f32 %v672, %v659
  %v677 = vmul.f32 %v674, %v659
  %v678 = vadd.f32 %v675, 1e-05
  %v679 = vadd.f32 %v676, 1e-05
  %v680 = vadd.f32 %v677, 1e-05
  %v681 = vrsqrt.pop %v678
  %v682 = vrsqrt.pop %v679
  %v683 = vrsqrt.pop %v680
  %v684 = vmul.f32 %v663, %v681
  %v685 = vmul.f32 %v664, %v682
  %v686 = vmul.f32 %v665, %v683
  %v688 = vlaneseq
  %v689 = vshrl.u32 %v688, 7
  %v690 = vsub.s32 0, %v689
  %v691 = vrot.slane %v651, %v690
  %v693 = vmul.f32 %v684, %v691
  %v694 = vmul.f32 %v685, %v691
  %v695 = vmul.f32 %v686, %v691
  %v697 = vlaneseq
  %v698 = vshrl.u32 %v697, 7
  %v699 = vsub.s32 0, %v698
  %v700 = vrot.slane %v652, %v699
  %v702 = vadd.f32 %v693, %v700
  %v703 = vadd.f32 %v694, %v700
  %v704 = vadd.f32 %v695, %v700
  %v705 = vmax.f32 %v702, 0.0
  %v706 = vmax.f32 %v703, 0.0
  %v707 = vmax.f32 %v704, 0.0
  %v708 = vld [vmem:[%s1] sm:$0xff]
  %v709 = vld [vmem:[%s1 + $0x8] sm:$0xff]
  %v710 = vld [vmem:[%s1 + $0x10] sm:$0xff]
  %714 = vrot.lane.b32.xlu0 %v708, 126
  %v715 = vpop.permute.xlu0 %714
  %716 = vrot.lane.b32.xlu0 %v709, 126
  %v717 = vpop.permute.xlu0 %716
  %718 = vrot.lane.b32.xlu0 %v710, 126
  %v719 = vpop.permute.xlu0 %718
  %v723 = vadd.f32 %v708, %v715
  %v724 = vadd.f32 %v709, %v717
  %v725 = vadd.f32 %v710, %v719
  %v726 = vmul.f32 %v723, 0.5
  %v727 = vmul.f32 %v724, 0.5
  %v728 = vmul.f32 %v725, 0.5
  %729 = vxpose.xlu0.b32.start [1/16] %v726, 128
  %730 = vxpose.xlu0.b32.cont [2/16] %v727, 128
  %731 = vxpose.xlu0.b32.cont [3/16] %v728, 128
  %732 = vxpose.xlu0.b32.cont [4/16] 0.0, 128
  %733 = vxpose.xlu0.b32.cont [5/16] 0.0, 128
  %734 = vxpose.xlu0.b32.cont [6/16] 0.0, 128
  %735 = vxpose.xlu0.b32.cont [7/16] 0.0, 128
  %736 = vxpose.xlu0.b32.cont [8/16] 0.0, 128
  %737 = vxpose.xlu0.b32.cont [9/16] 0.0, 128
  %738 = vxpose.xlu0.b32.cont [10/16] 0.0, 128
  %739 = vxpose.xlu0.b32.cont [11/16] 0.0, 128
  %740 = vxpose.xlu0.b32.cont [12/16] 0.0, 128
  %741 = vxpose.xlu0.b32.cont [13/16] 0.0, 128
  %742 = vxpose.xlu0.b32.cont [14/16] 0.0, 128
  %743 = vxpose.xlu0.b32.cont [15/16] 0.0, 128
  %744 = vxpose.xlu0.b32.end [16/16] 0.0, 128
  %v745 = vpop.trf.xlu0
  %v746 = vpop.trf.xlu0
  %v747 = vpop.trf.xlu0
  %v748 = vpop.trf.xlu0
  %v749 = vpop.trf.xlu0
  %v750 = vpop.trf.xlu0
  %v751 = vpop.trf.xlu0
  %v752 = vpop.trf.xlu0
  %v753 = vpop.trf.xlu0
  %v754 = vpop.trf.xlu0
  %v755 = vpop.trf.xlu0
  %v756 = vpop.trf.xlu0
  %v757 = vpop.trf.xlu0
  %v758 = vpop.trf.xlu0
  %v759 = vpop.trf.xlu0
  %v760 = vpop.trf.xlu0
  %762 = vset.pattern.permute.xlu0 0
  %763 = vperm.xlu0 %762, %v726
  %v764 = vpop.permute.xlu0 %763
  %767 = vset.pattern.permute.xlu0 0
  %768 = vperm.xlu0 %767, %v727
  %v769 = vpop.permute.xlu0 %768
  %772 = vset.pattern.permute.xlu0 0
  %773 = vperm.xlu0 %772, %v728
  %v774 = vpop.permute.xlu0 %773
  %v776 = vlaneseq
  %v777 = vshrl.u32 %v776, 7
  %v778 = vsub.s32 0, %v777
  %v779 = vrot.slane %v745, %v778
  %v780 = vsub.f32 %v764, %v779
  %v781 = vsub.f32 %v769, %v779
  %v782 = vsub.f32 %v774, %v779
  %783 = vrot.lane.b32.xlu0 %v726, 127
  %v784 = vpop.permute.xlu0 %783
  %785 = vrot.lane.b32.xlu0 %v727, 127
  %v786 = vpop.permute.xlu0 %785
  %787 = vrot.lane.b32.xlu0 %v728, 127
  %v788 = vpop.permute.xlu0 %787
  %792 = vxpose.xlu0.b32.start [1/16] %v784, 128
  %793 = vxpose.xlu0.b32.cont [2/16] %v786, 128
  %794 = vxpose.xlu0.b32.cont [3/16] %v788, 128
  %795 = vxpose.xlu0.b32.cont [4/16] 0.0, 128
  %796 = vxpose.xlu0.b32.cont [5/16] 0.0, 128
  %797 = vxpose.xlu0.b32.cont [6/16] 0.0, 128
  %798 = vxpose.xlu0.b32.cont [7/16] 0.0, 128
  %799 = vxpose.xlu0.b32.cont [8/16] 0.0, 128
  %800 = vxpose.xlu0.b32.cont [9/16] 0.0, 128
  %801 = vxpose.xlu0.b32.cont [10/16] 0.0, 128
  %802 = vxpose.xlu0.b32.cont [11/16] 0.0, 128
  %803 = vxpose.xlu0.b32.cont [12/16] 0.0, 128
  %804 = vxpose.xlu0.b32.cont [13/16] 0.0, 128
  %805 = vxpose.xlu0.b32.cont [14/16] 0.0, 128
  %806 = vxpose.xlu0.b32.cont [15/16] 0.0, 128
  %807 = vxpose.xlu0.b32.end [16/16] 0.0, 128
  %v808 = vpop.trf.xlu0
  %v809 = vpop.trf.xlu0
  %v810 = vpop.trf.xlu0
  %v811 = vpop.trf.xlu0
  %v812 = vpop.trf.xlu0
  %v813 = vpop.trf.xlu0
  %v814 = vpop.trf.xlu0
  %v815 = vpop.trf.xlu0
  %v816 = vpop.trf.xlu0
  %v817 = vpop.trf.xlu0
  %v818 = vpop.trf.xlu0
  %v819 = vpop.trf.xlu0
  %v820 = vpop.trf.xlu0
  %v821 = vpop.trf.xlu0
  %v822 = vpop.trf.xlu0
  %v823 = vpop.trf.xlu0
  %824 = vset.pattern.permute.xlu0 1
  %825 = vperm.xlu0 %824, %v726
  %v826 = vpop.permute.xlu0 %825
  %828 = vset.pattern.permute.xlu0 1
  %829 = vperm.xlu0 %828, %v727
  %v830 = vpop.permute.xlu0 %829
  %832 = vset.pattern.permute.xlu0 1
  %833 = vperm.xlu0 %832, %v728
  %v834 = vpop.permute.xlu0 %833
  %v836 = vlaneseq
  %v837 = vshrl.u32 %v836, 7
  %v838 = vsub.s32 0, %v837
  %v839 = vrot.slane %v808, %v838
  %v840 = vsub.f32 %v826, %v839
  %v841 = vsub.f32 %v830, %v839
  %v842 = vsub.f32 %v834, %v839
  %v843 = vmul.f32 %v780, %v780
  %v844 = vmul.f32 %v781, %v781
  %v845 = vmul.f32 %v782, %v782
  %v846 = vmul.f32 %v840, %v840
  %v847 = vmul.f32 %v841, %v841
  %v848 = vmul.f32 %v842, %v842
  %v849 = vadd.f32 %v843, %v846
  %v850 = vadd.f32 %v844, %v847
  %v851 = vadd.f32 %v845, %v848
  %vm852 = vcmp.gt.f32.partialorder %v849, 10.24
  %vm853 = vcmp.gt.f32.partialorder %v850, 10.24
  %vm854 = vcmp.gt.f32.partialorder %v851, 10.24
  %v855 = vsel %vm852, -1e+30, 0.0
  %v856 = vsel %vm853, -1e+30, 0.0
  %v857 = vsel %vm854, -1e+30, 0.0
  %v858 = vld [vmem:[%s2] sm:$0xff]
  %v859 = vld [vmem:[%s2 + $0x8] sm:$0xff]
  %v860 = vld [vmem:[%s2 + $0x10] sm:$0xff]
  %v861 = vadd.f32 %v855, %v858
  %v862 = vadd.f32 %v856, %v859
  %v863 = vadd.f32 %v857, %v860
  %v864 = vpack.c.bf16 %v706, %v705
  %v865 = vpack.c.bf16 %v707, %v707
  %v866 = vld [vmem:[%s9] sm:$0xf]
  %v867 = vld [vmem:[%s9 + $0x4] sm:$0xf]
  %v868 = vld [vmem:[%s9 + $0x8] sm:$0xf]
  %v869 = vld [vmem:[%s9 + $0xc] sm:$0xf]
  %v870 = vld [vmem:[%s9 + $0x10] sm:$0xf]
  %v871 = vld [vmem:[%s9 + $0x14] sm:$0xf]
  %v872 = vld [vmem:[%s9 + $0x18] sm:$0xf]
  %v873 = vld [vmem:[%s9 + $0x1c] sm:$0xf]
  %v874 = vld [vmem:[%s9 + $0x20] sm:$0xf]
  %v875 = vld [vmem:[%s9 + $0x24] sm:$0xf]
  %v876 = vld [vmem:[%s9 + $0x28] sm:$0xf]
  %v877 = vld [vmem:[%s9 + $0x2c] sm:$0xf]
  %v878 = vld [vmem:[%s9 + $0x30] sm:$0xf]
  %v879 = vld [vmem:[%s9 + $0x34] sm:$0xf]
  %v880 = vld [vmem:[%s9 + $0x38] sm:$0xf]
  %v881 = vld [vmem:[%s9 + $0x3c] sm:$0xf]
  %v882 = vld [vmem:[%s9 + $0x40] sm:$0xf]
  %v883 = vld [vmem:[%s9 + $0x44] sm:$0xf]
  %v884 = vld [vmem:[%s9 + $0x48] sm:$0xf]
  %v885 = vld [vmem:[%s9 + $0x4c] sm:$0xf]
  %v886 = vld [vmem:[%s9 + $0x50] sm:$0xf]
  %v887 = vld [vmem:[%s9 + $0x54] sm:$0xf]
  %v888 = vld [vmem:[%s9 + $0x58] sm:$0xf]
  %v889 = vld [vmem:[%s9 + $0x5c] sm:$0xf]
  %v890 = vld [vmem:[%s9 + $0x60] sm:$0xf]
  %v891 = vld [vmem:[%s9 + $0x64] sm:$0xf]
  %v892 = vld [vmem:[%s9 + $0x68] sm:$0xf]
  %v893 = vld [vmem:[%s9 + $0x6c] sm:$0xf]
  %v894 = vld [vmem:[%s9 + $0x70] sm:$0xf]
  %v895 = vld [vmem:[%s9 + $0x74] sm:$0xf]
  %v896 = vld [vmem:[%s9 + $0x78] sm:$0xf]
  %v897 = vld [vmem:[%s9 + $0x7c] sm:$0xf]
  %v898 = vld [vmem:[%s9 + $0x80] sm:$0xf]
  %v899 = vld [vmem:[%s9 + $0x84] sm:$0xf]
  %v900 = vld [vmem:[%s9 + $0x88] sm:$0xf]
  %v901 = vld [vmem:[%s9 + $0x8c] sm:$0xf]
  %v902 = vld [vmem:[%s9 + $0x90] sm:$0xf]
  %v903 = vld [vmem:[%s9 + $0x94] sm:$0xf]
  %v904 = vld [vmem:[%s9 + $0x98] sm:$0xf]
  %v905 = vld [vmem:[%s9 + $0x9c] sm:$0xf]
  %v906 = vld [vmem:[%s9 + $0xa0] sm:$0xf]
  %v907 = vld [vmem:[%s9 + $0xa4] sm:$0xf]
  %v908 = vld [vmem:[%s9 + $0xa8] sm:$0xf]
  %v909 = vld [vmem:[%s9 + $0xac] sm:$0xf]
  %v910 = vld [vmem:[%s9 + $0xb0] sm:$0xf]
  %v911 = vld [vmem:[%s9 + $0xb4] sm:$0xf]
  %v912 = vld [vmem:[%s9 + $0xb8] sm:$0xf]
  %v913 = vld [vmem:[%s9 + $0xbc] sm:$0xf]
  %v914 = vld [vmem:[%s9 + $0xc0] sm:$0xf]
  %v915 = vld [vmem:[%s9 + $0xc4] sm:$0xf]
  %v916 = vld [vmem:[%s9 + $0xc8] sm:$0xf]
  %v917 = vld [vmem:[%s9 + $0xcc] sm:$0xf]
  %v918 = vld [vmem:[%s9 + $0xd0] sm:$0xf]
  %v919 = vld [vmem:[%s9 + $0xd4] sm:$0xf]
  %v920 = vld [vmem:[%s9 + $0xd8] sm:$0xf]
  %v921 = vld [vmem:[%s9 + $0xdc] sm:$0xf]
  %v922 = vld [vmem:[%s9 + $0xe0] sm:$0xf]
  %v923 = vld [vmem:[%s9 + $0xe4] sm:$0xf]
  %v924 = vld [vmem:[%s9 + $0xe8] sm:$0xf]
  %v925 = vld [vmem:[%s9 + $0xec] sm:$0xf]
  %v926 = vld [vmem:[%s9 + $0xf0] sm:$0xf]
  %v927 = vld [vmem:[%s9 + $0xf4] sm:$0xf]
  %v928 = vld [vmem:[%s9 + $0xf8] sm:$0xf]
  %v929 = vld [vmem:[%s9 + $0xfc] sm:$0xf]
  %v930 = vld [vmem:[%s10] sm:$0xf]
  %v932 = vlaneseq
  %v933 = vshrl.u32 %v932, 7
  %v934 = vsub.s32 0, %v933
  %v935 = vrot.slane %v930, %v934
  %v936 = vlaneseq
  %v937 = vshrl.u32 %v936, 7
  %v938 = vsub.s32 1, %v937
  %v939 = vrot.slane %v930, %v938
  %v940 = vlaneseq
  %v941 = vshrl.u32 %v940, 7
  %v942 = vsub.s32 2, %v941
  %v943 = vrot.slane %v930, %v942
  %v944 = vlaneseq
  %v945 = vshrl.u32 %v944, 7
  %v946 = vsub.s32 3, %v945
  %v947 = vrot.slane %v930, %v946
  %v1016 = vunpack.c.l.b16 %v866
  %v1017 = vunpack.c.l.b16 %v867
  %v1018 = vunpack.c.l.b16 %v868
  %v1019 = vunpack.c.l.b16 %v869
  %v1020 = vunpack.c.l.b16 %v870
  %v1021 = vunpack.c.l.b16 %v871
  %v1022 = vunpack.c.l.b16 %v872
  %v1023 = vunpack.c.l.b16 %v873
  %v1024 = vunpack.c.l.b16 %v874
  %v1025 = vunpack.c.l.b16 %v875
  %v1026 = vunpack.c.l.b16 %v876
  %v1027 = vunpack.c.l.b16 %v877
  %v1028 = vunpack.c.l.b16 %v878
  %v1029 = vunpack.c.l.b16 %v879
  %v1030 = vunpack.c.l.b16 %v880
  %v1031 = vunpack.c.l.b16 %v881
  %v1032 = vunpack.c.l.b16 %v882
  %v1033 = vunpack.c.l.b16 %v883
  %v1034 = vunpack.c.l.b16 %v884
  %v1035 = vunpack.c.l.b16 %v885
  %v1036 = vunpack.c.l.b16 %v886
  %v1037 = vunpack.c.l.b16 %v887
  %v1038 = vunpack.c.l.b16 %v888
  %v1039 = vunpack.c.l.b16 %v889
  %v1040 = vunpack.c.l.b16 %v890
  %v1041 = vunpack.c.l.b16 %v891
  %v1042 = vunpack.c.l.b16 %v892
  %v1043 = vunpack.c.l.b16 %v893
  %v1044 = vunpack.c.l.b16 %v894
  %v1045 = vunpack.c.l.b16 %v895
  %v1046 = vunpack.c.l.b16 %v896
  %v1047 = vunpack.c.l.b16 %v897
  %v1048 = vunpack.c.l.b16 %v898
  %v1049 = vunpack.c.l.b16 %v899
  %v1050 = vunpack.c.l.b16 %v900
  %v1051 = vunpack.c.l.b16 %v901
  %v1052 = vunpack.c.l.b16 %v902
  %v1053 = vunpack.c.l.b16 %v903
  %v1054 = vunpack.c.l.b16 %v904
  %v1055 = vunpack.c.l.b16 %v905
  %v1056 = vunpack.c.l.b16 %v906
  %v1057 = vunpack.c.l.b16 %v907
  %v1058 = vunpack.c.l.b16 %v908
  %v1059 = vunpack.c.l.b16 %v909
  %v1060 = vunpack.c.l.b16 %v910
  %v1061 = vunpack.c.l.b16 %v911
  %v1062 = vunpack.c.l.b16 %v912
  %v1063 = vunpack.c.l.b16 %v913
  %v1064 = vunpack.c.l.b16 %v914
  %v1065 = vunpack.c.l.b16 %v915
  %v1066 = vunpack.c.l.b16 %v916
  %v1067 = vunpack.c.l.b16 %v917
  %v1068 = vunpack.c.l.b16 %v918
  %v1069 = vunpack.c.l.b16 %v919
  %v1070 = vunpack.c.l.b16 %v920
  %v1071 = vunpack.c.l.b16 %v921
  %v1072 = vunpack.c.l.b16 %v922
  %v1073 = vunpack.c.l.b16 %v923
  %v1074 = vunpack.c.l.b16 %v924
  %v1075 = vunpack.c.l.b16 %v925
  %v1076 = vunpack.c.l.b16 %v926
  %v1077 = vunpack.c.l.b16 %v927
  %v1078 = vunpack.c.l.b16 %v928
  %v1079 = vunpack.c.l.b16 %v929
  %v1080 = vpack.c.b16 %v1017, %v1016
  %v1081 = vpack.c.b16 %v1019, %v1018
  %v1082 = vpack.c.b16 %v1021, %v1020
  %v1083 = vpack.c.b16 %v1023, %v1022
  %v1084 = vpack.c.b16 %v1025, %v1024
  %v1085 = vpack.c.b16 %v1027, %v1026
  %v1086 = vpack.c.b16 %v1029, %v1028
  %v1087 = vpack.c.b16 %v1031, %v1030
  %v1088 = vpack.c.b16 %v1033, %v1032
  %v1089 = vpack.c.b16 %v1035, %v1034
  %v1090 = vpack.c.b16 %v1037, %v1036
  %v1091 = vpack.c.b16 %v1039, %v1038
  %v1092 = vpack.c.b16 %v1041, %v1040
  %v1093 = vpack.c.b16 %v1043, %v1042
  %v1094 = vpack.c.b16 %v1045, %v1044
  %v1095 = vpack.c.b16 %v1047, %v1046
  %v1096 = vpack.c.b16 %v1049, %v1048
  %v1097 = vpack.c.b16 %v1051, %v1050
  %v1098 = vpack.c.b16 %v1053, %v1052
  %v1099 = vpack.c.b16 %v1055, %v1054
  %v1100 = vpack.c.b16 %v1057, %v1056
  %v1101 = vpack.c.b16 %v1059, %v1058
  %v1102 = vpack.c.b16 %v1061, %v1060
  %v1103 = vpack.c.b16 %v1063, %v1062
  %v1104 = vpack.c.b16 %v1065, %v1064
  %v1105 = vpack.c.b16 %v1067, %v1066
  %v1106 = vpack.c.b16 %v1069, %v1068
  %v1107 = vpack.c.b16 %v1071, %v1070
  %v1108 = vpack.c.b16 %v1073, %v1072
  %v1109 = vpack.c.b16 %v1075, %v1074
  %v1110 = vpack.c.b16 %v1077, %v1076
  %v1111 = vpack.c.b16 %v1079, %v1078
  %1144 = vmatprep.subr.bf16.mxu0 0
  %1145 = vmatpush1.bf16.xpose.msra.mxu0 %v1080
  %1146 = vmatprep.subr.bf16.mxu0 0
  %1147 = vmatpush1.bf16.xpose.msra.mxu0 %v1081
  %1148 = vmatprep.subr.bf16.mxu0 0
  %1149 = vmatpush1.bf16.xpose.msra.mxu0 %v1082
  %1150 = vmatprep.subr.bf16.mxu0 0
  %1151 = vmatpush1.bf16.xpose.msra.mxu0 %v1083
  %1152 = vmatprep.subr.bf16.mxu0 0
  %1153 = vmatpush1.bf16.xpose.msra.mxu0 %v1084
  %1154 = vmatprep.subr.bf16.mxu0 0
  %1155 = vmatpush1.bf16.xpose.msra.mxu0 %v1085
  %1156 = vmatprep.subr.bf16.mxu0 0
  %1157 = vmatpush1.bf16.xpose.msra.mxu0 %v1086
  %1158 = vmatprep.subr.bf16.mxu0 0
  %1159 = vmatpush1.bf16.xpose.msra.mxu0 %v1087
  %1160 = vmatprep.subr.bf16.mxu0 0
  %1161 = vmatpush1.bf16.xpose.msra.mxu0 %v1088
  %1162 = vmatprep.subr.bf16.mxu0 0
  %1163 = vmatpush1.bf16.xpose.msra.mxu0 %v1089
  %1164 = vmatprep.subr.bf16.mxu0 0
  %1165 = vmatpush1.bf16.xpose.msra.mxu0 %v1090
  %1166 = vmatprep.subr.bf16.mxu0 0
  %1167 = vmatpush1.bf16.xpose.msra.mxu0 %v1091
  %1168 = vmatprep.subr.bf16.mxu0 0
  %1169 = vmatpush1.bf16.xpose.msra.mxu0 %v1092
  %1170 = vmatprep.subr.bf16.mxu0 0
  %1171 = vmatpush1.bf16.xpose.msra.mxu0 %v1093
  %1172 = vmatprep.subr.bf16.mxu0 0
  %1173 = vmatpush1.bf16.xpose.msra.mxu0 %v1094
  %1174 = vmatprep.subr.bf16.mxu0 0
  %1175 = vmatpush1.bf16.xpose.msra.mxu0 %v1095
  %1176 = vmatprep.mubr.bf16.mxu0 0
  %1177 = vmatmul.mubr.bf16.gmra.mrb[0].mxu0 %v864
  %v1178 = vpop.f32.mrb[0].mxu0
  %v1179 = vadd.f32 %v935, %v1178
  %v1180 = vpop.f32.mrb[0].mxu0
  %v1181 = vadd.f32 %v939, %v1180
  %v1182 = vpop.f32.mrb[0].mxu0
  %v1183 = vadd.f32 %v935, %v1182
  %v1184 = vpop.f32.mrb[0].mxu0
  %v1185 = vadd.f32 %v939, %v1184
  %1186 = vmatprep.mubr.bf16.mxu0 0
  %1187 = vmatmul.mubr.bf16.gmra.mrb[0].mxu0 %v865
  %v1188 = vpop.f32.mrb[0].mxu0
  %v1189 = vadd.f32 %v935, %v1188
  %v1190 = vpop.f32.mrb[0].mxu0
  %v1191 = vadd.f32 %v939, %v1190
  %v1192 = vpop.f32.mrb[0].mxu0
  %v1193 = vpop.f32.mrb[0].mxu0
  %1194 = vdwg.mxu0
  %1195 = vmatprep.subr.bf16.mxu0 0
  %1196 = vmatpush1.bf16.xpose.msra.mxu0 %v1096
  %1197 = vmatprep.subr.bf16.mxu0 0
  %1198 = vmatpush1.bf16.xpose.msra.mxu0 %v1097
  %1199 = vmatprep.subr.bf16.mxu0 0
  %1200 = vmatpush1.bf16.xpose.msra.mxu0 %v1098
  %1201 = vmatprep.subr.bf16.mxu0 0
  %1202 = vmatpush1.bf16.xpose.msra.mxu0 %v1099
  %1203 = vmatprep.subr.bf16.mxu0 0
  %1204 = vmatpush1.bf16.xpose.msra.mxu0 %v1100
  %1205 = vmatprep.subr.bf16.mxu0 0
  %1206 = vmatpush1.bf16.xpose.msra.mxu0 %v1101
  %1207 = vmatprep.subr.bf16.mxu0 0
  %1208 = vmatpush1.bf16.xpose.msra.mxu0 %v1102
  %1209 = vmatprep.subr.bf16.mxu0 0
  %1210 = vmatpush1.bf16.xpose.msra.mxu0 %v1103
  %1211 = vmatprep.subr.bf16.mxu0 0
  %1212 = vmatpush1.bf16.xpose.msra.mxu0 %v1104
  %1213 = vmatprep.subr.bf16.mxu0 0
  %1214 = vmatpush1.bf16.xpose.msra.mxu0 %v1105
  %1215 = vmatprep.subr.bf16.mxu0 0
  %1216 = vmatpush1.bf16.xpose.msra.mxu0 %v1106
  %1217 = vmatprep.subr.bf16.mxu0 0
  %1218 = vmatpush1.bf16.xpose.msra.mxu0 %v1107
  %1219 = vmatprep.subr.bf16.mxu0 0
  %1220 = vmatpush1.bf16.xpose.msra.mxu0 %v1108
  %1221 = vmatprep.subr.bf16.mxu0 0
  %1222 = vmatpush1.bf16.xpose.msra.mxu0 %v1109
  %1223 = vmatprep.subr.bf16.mxu0 0
  %1224 = vmatpush1.bf16.xpose.msra.mxu0 %v1110
  %1225 = vmatprep.subr.bf16.mxu0 0
  %1226 = vmatpush1.bf16.xpose.msra.mxu0 %v1111
  %1227 = vmatprep.mubr.bf16.mxu0 0
  %1228 = vmatmul.mubr.bf16.gmra.mrb[0].mxu0 %v864
  %v1229 = vpop.f32.mrb[0].mxu0
  %v1230 = vadd.f32 %v943, %v1229
  %v1231 = vpop.f32.mrb[0].mxu0
  %v1232 = vadd.f32 %v947, %v1231
  %v1233 = vpop.f32.mrb[0].mxu0
  %v1234 = vadd.f32 %v943, %v1233
  %v1235 = vpop.f32.mrb[0].mxu0
  %v1236 = vadd.f32 %v947, %v1235
  %1237 = vmatprep.mubr.bf16.mxu0 0
  %1238 = vmatmul.mubr.bf16.gmra.mrb[0].mxu0 %v865
  %v1239 = vpop.f32.mrb[0].mxu0
  %v1240 = vadd.f32 %v943, %v1239
  %v1241 = vpop.f32.mrb[0].mxu0
  %v1242 = vadd.f32 %v947, %v1241
  %v1243 = vpop.f32.mrb[0].mxu0
  %v1244 = vpop.f32.mrb[0].mxu0
  %1245 = vdwg.mxu0
  %v1246 = vld [vmem:[%s11] sm:$0xf]
  %v1247 = vld [vmem:[%s11 + $0x4] sm:$0xf]
  %v1248 = vld [vmem:[%s11 + $0x8] sm:$0xf]
  %v1249 = vld [vmem:[%s11 + $0xc] sm:$0xf]
  %v1250 = vld [vmem:[%s11 + $0x10] sm:$0xf]
  %v1251 = vld [vmem:[%s11 + $0x14] sm:$0xf]
  %v1252 = vld [vmem:[%s11 + $0x18] sm:$0xf]
  %v1253 = vld [vmem:[%s11 + $0x1c] sm:$0xf]
  %v1254 = vld [vmem:[%s11 + $0x20] sm:$0xf]
  %v1255 = vld [vmem:[%s11 + $0x24] sm:$0xf]
  %v1256 = vld [vmem:[%s11 + $0x28] sm:$0xf]
  %v1257 = vld [vmem:[%s11 + $0x2c] sm:$0xf]
  %v1258 = vld [vmem:[%s11 + $0x30] sm:$0xf]
  %v1259 = vld [vmem:[%s11 + $0x34] sm:$0xf]
  %v1260 = vld [vmem:[%s11 + $0x38] sm:$0xf]
  %v1261 = vld [vmem:[%s11 + $0x3c] sm:$0xf]
  %v1262 = vld [vmem:[%s11 + $0x40] sm:$0xf]
  %v1263 = vld [vmem:[%s11 + $0x44] sm:$0xf]
  %v1264 = vld [vmem:[%s11 + $0x48] sm:$0xf]
  %v1265 = vld [vmem:[%s11 + $0x4c] sm:$0xf]
  %v1266 = vld [vmem:[%s11 + $0x50] sm:$0xf]
  %v1267 = vld [vmem:[%s11 + $0x54] sm:$0xf]
  %v1268 = vld [vmem:[%s11 + $0x58] sm:$0xf]
  %v1269 = vld [vmem:[%s11 + $0x5c] sm:$0xf]
  %v1270 = vld [vmem:[%s11 + $0x60] sm:$0xf]
  %v1271 = vld [vmem:[%s11 + $0x64] sm:$0xf]
  %v1272 = vld [vmem:[%s11 + $0x68] sm:$0xf]
  %v1273 = vld [vmem:[%s11 + $0x6c] sm:$0xf]
  %v1274 = vld [vmem:[%s11 + $0x70] sm:$0xf]
  %v1275 = vld [vmem:[%s11 + $0x74] sm:$0xf]
  %v1276 = vld [vmem:[%s11 + $0x78] sm:$0xf]
  %v1277 = vld [vmem:[%s11 + $0x7c] sm:$0xf]
  %v1278 = vld [vmem:[%s12] sm:$0x3]
  %v1279 = vld [vmem:[%s13] sm:$0x3]
  %1280 = vmatprep.subr.mxu0 0.0
  %1281 = vmatpush1.xpose.msra.mxu0 %v1230
  %1282 = vmatprep.subr.mxu0 0.0
  %1283 = vmatpush1.xpose.msra.mxu0 %v1234
  %1284 = vmatprep.subr.mxu0 0.0
  %1285 = vmatpush1.xpose.msra.mxu0 %v1240
  %1286 = vmatprep.subr.mxu0 0.0
  %1287 = vmatpush1.xpose.msra.mxu0 0.0
  %1288 = vmatprep.subr.mxu0 0.0
  %1289 = vmatpush1.xpose.msra.mxu0 0.0
  %1290 = vmatprep.subr.mxu0 0.0
  %1291 = vmatpush1.xpose.msra.mxu0 0.0
  %1292 = vmatprep.subr.mxu0 0.0
  %1293 = vmatpush1.xpose.msra.mxu0 0.0
  %1294 = vmatprep.subr.mxu0 0.0
  %1295 = vmatpush1.xpose.msra.mxu0 0.0
  %1296 = vmatprep.subr.mxu0 0.0
  %1297 = vmatpush1.xpose.msra.mxu0 0.0
  %1298 = vmatprep.subr.mxu0 0.0
  %1299 = vmatpush1.xpose.msra.mxu0 0.0
  %1300 = vmatprep.subr.mxu0 0.0
  %1301 = vmatpush1.xpose.msra.mxu0 0.0
  %1302 = vmatprep.subr.mxu0 0.0
  %1303 = vmatpush1.xpose.msra.mxu0 0.0
  %1304 = vmatprep.subr.mxu0 0.0
  %1305 = vmatpush1.xpose.msra.mxu0 0.0
  %1306 = vmatprep.subr.mxu0 0.0
  %1307 = vmatpush1.xpose.msra.mxu0 0.0
  %1308 = vmatprep.subr.mxu0 0.0
  %1309 = vmatpush1.xpose.msra.mxu0 0.0
  %1310 = vmatprep.subr.mxu0 0.0
  %1311 = vmatpush1.xpose.msra.mxu0 0.0
  %1312 = vmatprep.subr.mxu0 0.0
  %1313 = vmatpush1.xpose.msra.mxu0 0.0
  %1314 = vmatprep.subr.mxu0 0.0
  %1315 = vmatpush1.xpose.msra.mxu0 0.0
  %1316 = vmatprep.subr.mxu0 0.0
  %1317 = vmatpush1.xpose.msra.mxu0 0.0
  %1318 = vmatprep.subr.mxu0 0.0
  %1319 = vmatpush1.xpose.msra.mxu0 0.0
  %1320 = vmatprep.subr.mxu0 0.0
  %1321 = vmatpush1.xpose.msra.mxu0 0.0
  %1322 = vmatprep.subr.mxu0 0.0
  %1323 = vmatpush1.xpose.msra.mxu0 0.0
  %1324 = vmatprep.subr.mxu0 0.0
  %1325 = vmatpush1.xpose.msra.mxu0 0.0
  %1326 = vmatprep.subr.mxu0 0.0
  %1327 = vmatpush1.xpose.msra.mxu0 0.0
  %1328 = vmatprep.subr.mxu0 0.0
  %1329 = vmatpush1.xpose.msra.mxu0 0.0
  %1330 = vmatprep.subr.mxu0 0.0
  %1331 = vmatpush1.xpose.msra.mxu0 0.0
  %1332 = vmatprep.subr.mxu0 0.0
  %1333 = vmatpush1.xpose.msra.mxu0 0.0
  %1334 = vmatprep.subr.mxu0 0.0
  %1335 = vmatpush1.xpose.msra.mxu0 0.0
  %1336 = vmatprep.subr.mxu0 0.0
  %1337 = vmatpush1.xpose.msra.mxu0 0.0
  %1338 = vmatprep.subr.mxu0 0.0
  %1339 = vmatpush1.xpose.msra.mxu0 0.0
  %1340 = vmatprep.subr.mxu0 0.0
  %1341 = vmatpush1.xpose.msra.mxu0 0.0
  %1342 = vmatprep.subr.mxu0 0.0
  %1343 = vmatpush1.xpose.msra.mxu0 0.0
  %1344 = vmatprep.mubr.f32.mxu0 0.0
  %1345 = vmatmul.mubr.f32.gmra.mrb[0].mxu0 %v1179
  %v1346 = vpop.f32.mrb[0].mxu0
  %v1347 = vadd.f32 0.0, %v1346
  %v1348 = vpop.f32.mrb[0].mxu0
  %1349 = vmatprep.mubr.f32.mxu0 0.0
  %1350 = vmatmul.mubr.f32.gmra.mrb[0].mxu0 %v1183
  %v1351 = vpop.f32.mrb[0].mxu0
  %v1352 = vadd.f32 0.0, %v1351
  %v1353 = vpop.f32.mrb[0].mxu0
  %1354 = vmatprep.mubr.f32.mxu0 0.0
  %1355 = vmatmul.mubr.f32.gmra.mrb[0].mxu0 %v1189
  %v1356 = vpop.f32.mrb[0].mxu0
  %v1357 = vadd.f32 0.0, %v1356
  %v1358 = vpop.f32.mrb[0].mxu0
  %1359 = vdwg.mxu0
  %v1360 = vmul.f32 %v1347, 0.088388346
  %v1361 = vmul.f32 %v1352, 0.088388346
  %v1362 = vmul.f32 %v1357, 0.088388346
  %v1363 = vadd.f32 %v1360, %v861
  %v1364 = vadd.f32 %v1361, %v862
  %v1365 = vadd.f32 %v1362, %v863
  %vm1366 = vcmask 195584
  %v1367 = vsel %vm1366, %v1363, -inf
  %1368 = vmax.xlane.f32.xlu0 %v1367
  %v1369 = vpop.xlane.xlu0 %1368
  %v1370 = vsel %vm1366, %v1364, -inf
  %1371 = vmax.xlane.f32.xlu0 %v1370
  %v1372 = vpop.xlane.xlu0 %1371
  %v1373 = vsel %vm1366, %v1365, -inf
  %1374 = vmax.xlane.f32.xlu0 %v1373
  %v1375 = vpop.xlane.xlu0 %1374
  %v1376 = vsub.f32 %v1363, %v1369
  %v1377 = vsub.f32 %v1364, %v1372
  %v1378 = vsub.f32 %v1365, %v1375
  %v1379 = vmul.f32 %v1376, 1.442695
  %v1380 = vpow.pop %v1379
  %v1381 = vmul.f32 %v1377, 1.442695
  %v1382 = vpow.pop %v1381
  %v1383 = vmul.f32 %v1378, 1.442695
  %v1384 = vpow.pop %v1383
  %v1385 = vsel %vm1366, %v1380, 0.0
  %1386 = vadd.xlane.f32.xlu0 %v1385
  %v1387 = vpop.xlane.xlu0 %1386
  %v1388 = vsel %vm1366, %v1382, 0.0
  %1389 = vadd.xlane.f32.xlu0 %v1388
  %v1390 = vpop.xlane.xlu0 %1389
  %v1391 = vsel %vm1366, %v1384, 0.0
  %1392 = vadd.xlane.f32.xlu0 %v1391
  %v1393 = vpop.xlane.xlu0 %1392
  %v1394 = vrcp.pop %v1387
  %v1395 = vrcp.pop %v1390
  %v1396 = vrcp.pop %v1393
  %v1397 = vmul.f32 %v1380, %v1394
  %v1398 = vmul.f32 %v1382, %v1395
  %v1399 = vmul.f32 %v1384, %v1396
  %v1401 = vsel %vm1366, %v1397, 0
  %v1404 = vsel %vm1366, %v1398, 0
  %v1407 = vsel %vm1366, %v1399, 0
  %1409 = vmatprep.subr.mxu0 0.0
  %1410 = vmatpush1.msra.mxu0 %v705
  %1411 = vmatprep.subr.mxu0 0.0
  %1412 = vmatpush1.msra.mxu0 %v706
  %1413 = vmatprep.subr.mxu0 0.0
  %1414 = vmatpush1.msra.mxu0 %v707
  %1415 = vmatprep.subr.mxu0 0.0
  %1416 = vmatpush1.msra.mxu0 0.0
  %1417 = vmatprep.subr.mxu0 0.0
  %1418 = vmatpush1.msra.mxu0 0.0
  %1419 = vmatprep.subr.mxu0 0.0
  %1420 = vmatpush1.msra.mxu0 0.0
  %1421 = vmatprep.subr.mxu0 0.0
  %1422 = vmatpush1.msra.mxu0 0.0
  %1423 = vmatprep.subr.mxu0 0.0
  %1424 = vmatpush1.msra.mxu0 0.0
  %1425 = vmatprep.subr.mxu0 0.0
  %1426 = vmatpush1.msra.mxu0 0.0
  %1427 = vmatprep.subr.mxu0 0.0
  %1428 = vmatpush1.msra.mxu0 0.0
  %1429 = vmatprep.subr.mxu0 0.0
  %1430 = vmatpush1.msra.mxu0 0.0
  %1431 = vmatprep.subr.mxu0 0.0
  %1432 = vmatpush1.msra.mxu0 0.0
  %1433 = vmatprep.subr.mxu0 0.0
  %1434 = vmatpush1.msra.mxu0 0.0
  %1435 = vmatprep.subr.mxu0 0.0
  %1436 = vmatpush1.msra.mxu0 0.0
  %1437 = vmatprep.subr.mxu0 0.0
  %1438 = vmatpush1.msra.mxu0 0.0
  %1439 = vmatprep.subr.mxu0 0.0
  %1440 = vmatpush1.msra.mxu0 0.0
  %1441 = vmatprep.subr.mxu0 0.0
  %1442 = vmatpush1.msra.mxu0 0.0
  %1443 = vmatprep.subr.mxu0 0.0
  %1444 = vmatpush1.msra.mxu0 0.0
  %1445 = vmatprep.subr.mxu0 0.0
  %1446 = vmatpush1.msra.mxu0 0.0
  %1447 = vmatprep.subr.mxu0 0.0
  %1448 = vmatpush1.msra.mxu0 0.0
  %1449 = vmatprep.subr.mxu0 0.0
  %1450 = vmatpush1.msra.mxu0 0.0
  %1451 = vmatprep.subr.mxu0 0.0
  %1452 = vmatpush1.msra.mxu0 0.0
  %1453 = vmatprep.subr.mxu0 0.0
  %1454 = vmatpush1.msra.mxu0 0.0
  %1455 = vmatprep.subr.mxu0 0.0
  %1456 = vmatpush1.msra.mxu0 0.0
  %1457 = vmatprep.subr.mxu0 0.0
  %1458 = vmatpush1.msra.mxu0 0.0
  %1459 = vmatprep.subr.mxu0 0.0
  %1460 = vmatpush1.msra.mxu0 0.0
  %1461 = vmatprep.subr.mxu0 0.0
  %1462 = vmatpush1.msra.mxu0 0.0
  %1463 = vmatprep.subr.mxu0 0.0
  %1464 = vmatpush1.msra.mxu0 0.0
  %1465 = vmatprep.subr.mxu0 0.0
  %1466 = vmatpush1.msra.mxu0 0.0
  %1467 = vmatprep.subr.mxu0 0.0
  %1468 = vmatpush1.msra.mxu0 0.0
  %1469 = vmatprep.subr.mxu0 0.0
  %1470 = vmatpush1.msra.mxu0 0.0
  %1471 = vmatprep.subr.mxu0 0.0
  %1472 = vmatpush1.msra.mxu0 0.0
  %1473 = vmatprep.mubr.f32.mxu0 0.0
  %1474 = vmatmul.mubr.f32.gmra.mrb[0].mxu0 %v1401
  %v1475 = vpop.f32.mrb[0].mxu0
  %v1476 = vadd.f32 0.0, %v1475
  %v1477 = vpop.f32.mrb[0].mxu0
  %1478 = vmatprep.mubr.f32.mxu0 0.0
  %1479 = vmatmul.mubr.f32.gmra.mrb[0].mxu0 %v1404
  %v1480 = vpop.f32.mrb[0].mxu0
  %v1481 = vadd.f32 0.0, %v1480
  %v1482 = vpop.f32.mrb[0].mxu0
  %1483 = vmatprep.mubr.f32.mxu0 0.0
  %1484 = vmatmul.mubr.f32.gmra.mrb[0].mxu0 %v1407
  %v1485 = vpop.f32.mrb[0].mxu0
  %v1486 = vadd.f32 0.0, %v1485
  %v1487 = vpop.f32.mrb[0].mxu0
  %1488 = vdwg.mxu0
  %v1489 = vpack.c.bf16 %v1481, %v1476
  %v1490 = vpack.c.bf16 %v1486, %v1486
  %v1507 = vunpack.c.l.b16 %v1246
  %v1508 = vunpack.c.l.b16 %v1247
  %v1509 = vunpack.c.l.b16 %v1248
  %v1510 = vunpack.c.l.b16 %v1249
  %v1511 = vunpack.c.l.b16 %v1250
  %v1512 = vunpack.c.l.b16 %v1251
  %v1513 = vunpack.c.l.b16 %v1252
  %v1514 = vunpack.c.l.b16 %v1253
  %v1515 = vunpack.c.l.b16 %v1254
  %v1516 = vunpack.c.l.b16 %v1255
  %v1517 = vunpack.c.l.b16 %v1256
  %v1518 = vunpack.c.l.b16 %v1257
  %v1519 = vunpack.c.l.b16 %v1258
  %v1520 = vunpack.c.l.b16 %v1259
  %v1521 = vunpack.c.l.b16 %v1260
  %v1522 = vunpack.c.l.b16 %v1261
  %v1523 = vpack.c.b16 %v1508, %v1507
  %v1524 = vpack.c.b16 %v1510, %v1509
  %v1525 = vpack.c.b16 %v1512, %v1511
  %v1526 = vpack.c.b16 %v1514, %v1513
  %v1527 = vpack.c.b16 %v1516, %v1515
  %v1528 = vpack.c.b16 %v1518, %v1517
  %v1529 = vpack.c.b16 %v1520, %v1519
  %v1530 = vpack.c.b16 %v1522, %v1521
  %1539 = vmatprep.subr.bf16.mxu0 0
  %1540 = vmatpush1.bf16.xpose.msra.mxu0 %v1523
  %1541 = vmatprep.subr.bf16.mxu0 0
  %1542 = vmatpush1.bf16.xpose.msra.mxu0 %v1524
  %1543 = vmatprep.subr.bf16.mxu0 0
  %1544 = vmatpush1.bf16.xpose.msra.mxu0 %v1525
  %1545 = vmatprep.subr.bf16.mxu0 0
  %1546 = vmatpush1.bf16.xpose.msra.mxu0 %v1526
  %1547 = vmatprep.subr.bf16.mxu0 0
  %1548 = vmatpush1.bf16.xpose.msra.mxu0 %v1527
  %1549 = vmatprep.subr.bf16.mxu0 0
  %1550 = vmatpush1.bf16.xpose.msra.mxu0 %v1528
  %1551 = vmatprep.subr.bf16.mxu0 0
  %1552 = vmatpush1.bf16.xpose.msra.mxu0 %v1529
  %1553 = vmatprep.subr.bf16.mxu0 0
  %1554 = vmatpush1.bf16.xpose.msra.mxu0 %v1530
  %1555 = vmatprep.subr.bf16.mxu0 0
  %1556 = vmatpush1.bf16.xpose.msra.mxu0 0
  %1557 = vmatprep.subr.bf16.mxu0 0
  %1558 = vmatpush1.bf16.xpose.msra.mxu0 0
  %1559 = vmatprep.subr.bf16.mxu0 0
  %1560 = vmatpush1.bf16.xpose.msra.mxu0 0
  %1561 = vmatprep.subr.bf16.mxu0 0
  %1562 = vmatpush1.bf16.xpose.msra.mxu0 0
  %1563 = vmatprep.subr.bf16.mxu0 0
  %1564 = vmatpush1.bf16.xpose.msra.mxu0 0
  %1565 = vmatprep.subr.bf16.mxu0 0
  %1566 = vmatpush1.bf16.xpose.msra.mxu0 0
  %1567 = vmatprep.subr.bf16.mxu0 0
  %1568 = vmatpush1.bf16.xpose.msra.mxu0 0
  %1569 = vmatprep.subr.bf16.mxu0 0
  %1570 = vmatpush1.bf16.xpose.msra.mxu0 0
  %1571 = vmatprep.mubr.bf16.mxu0 0
  %1572 = vmatmul.mubr.bf16.gmra.mrb[0].mxu0 %v1489
  %v1573 = vpop.f32.mrb[0].mxu0
  %v1574 = vadd.f32 0.0, %v1573
  %v1575 = vpop.f32.mrb[0].mxu0
  %v1576 = vpop.f32.mrb[0].mxu0
  %v1577 = vadd.f32 0.0, %v1576
  %v1578 = vpop.f32.mrb[0].mxu0
  %1579 = vmatprep.mubr.bf16.mxu0 0
  %1580 = vmatmul.mubr.bf16.gmra.mrb[0].mxu0 %v1490
  %v1581 = vpop.f32.mrb[0].mxu0
  %v1582 = vadd.f32 0.0, %v1581
  %v1583 = vpop.f32.mrb[0].mxu0
  %v1584 = vpop.f32.mrb[0].mxu0
  %v1585 = vpop.f32.mrb[0].mxu0
  %1586 = vdwg.mxu0
  %1587 = vadd.xlane.f32.xlu0 %v1574
  %v1588 = vpop.xlane.xlu0 %1587
  %1589 = vadd.xlane.f32.xlu0 %v1577
  %v1590 = vpop.xlane.xlu0 %1589
  %1591 = vadd.xlane.f32.xlu0 %v1582
  %v1592 = vpop.xlane.xlu0 %1591
  %v1593 = vmul.f32 %v1588, %v659
  %v1594 = vmul.f32 %v1590, %v659
  %v1595 = vmul.f32 %v1592, %v659
  %v1596 = vsub.f32 %v1574, %v1593
  %v1597 = vsub.f32 %v1577, %v1594
  %v1598 = vsub.f32 %v1582, %v1595
  %v1599 = vmul.f32 %v1596, %v1596
  %v1600 = vmul.f32 %v1597, %v1597
  %v1601 = vmul.f32 %v1598, %v1598
  %1602 = vadd.xlane.f32.xlu0 %v1599
  %v1603 = vpop.xlane.xlu0 %1602
  %1604 = vadd.xlane.f32.xlu0 %v1600
  %v1605 = vpop.xlane.xlu0 %1604
  %1606 = vadd.xlane.f32.xlu0 %v1601
  %v1607 = vpop.xlane.xlu0 %1606
  %v1608 = vmul.f32 %v1603, %v659
  %v1609 = vmul.f32 %v1605, %v659
  %v1610 = vmul.f32 %v1607, %v659
  %v1611 = vadd.f32 %v1608, 1e-05
  %v1612 = vadd.f32 %v1609, 1e-05
  %v1613 = vadd.f32 %v1610, 1e-05
  %v1614 = vrsqrt.pop %v1611
  %v1615 = vrsqrt.pop %v1612
  %v1616 = vrsqrt.pop %v1613
  %v1617 = vmul.f32 %v1596, %v1614
  %v1618 = vmul.f32 %v1597, %v1615
  %v1619 = vmul.f32 %v1598, %v1616
  %v1620 = vlaneseq
  %v1621 = vshrl.u32 %v1620, 7
  %v1622 = vsub.s32 0, %v1621
  %v1623 = vrot.slane %v1278, %v1622
  %v1624 = vmul.f32 %v1617, %v1623
  %v1625 = vmul.f32 %v1618, %v1623
  %v1626 = vmul.f32 %v1619, %v1623
  %v1627 = vlaneseq
  %v1628 = vshrl.u32 %v1627, 7
  %v1629 = vsub.s32 0, %v1628
  %v1630 = vrot.slane %v1279, %v1629
  %v1631 = vadd.f32 %v1624, %v1630
  %v1632 = vadd.f32 %v1625, %v1630
  %v1633 = vadd.f32 %v1626, %v1630
  %v1634 = vmax.f32 %v1631, 0.0
  %v1635 = vmax.f32 %v1632, 0.0
  %v1636 = vmax.f32 %v1633, 0.0
  %v1637 = vadd.f32 %v1634, 0.0
  %v1638 = vadd.f32 %v1635, 0.0
  %v1639 = vadd.f32 %v1636, 0.0
  %1640 = vmatprep.subr.mxu0 0.0
  %1641 = vmatpush1.xpose.msra.mxu0 %v1232
  %1642 = vmatprep.subr.mxu0 0.0
  %1643 = vmatpush1.xpose.msra.mxu0 %v1236
  %1644 = vmatprep.subr.mxu0 0.0
  %1645 = vmatpush1.xpose.msra.mxu0 %v1242
  %1646 = vmatprep.subr.mxu0 0.0
  %1647 = vmatpush1.xpose.msra.mxu0 0.0
  %1648 = vmatprep.subr.mxu0 0.0
  %1649 = vmatpush1.xpose.msra.mxu0 0.0
  %1650 = vmatprep.subr.mxu0 0.0
  %1651 = vmatpush1.xpose.msra.mxu0 0.0
  %1652 = vmatprep.subr.mxu0 0.0
  %1653 = vmatpush1.xpose.msra.mxu0 0.0
  %1654 = vmatprep.subr.mxu0 0.0
  %1655 = vmatpush1.xpose.msra.mxu0 0.0
  %1656 = vmatprep.subr.mxu0 0.0
  %1657 = vmatpush1.xpose.msra.mxu0 0.0
  %1658 = vmatprep.subr.mxu0 0.0
  %1659 = vmatpush1.xpose.msra.mxu0 0.0
  %1660 = vmatprep.subr.mxu0 0.0
  %1661 = vmatpush1.xpose.msra.mxu0 0.0
  %1662 = vmatprep.subr.mxu0 0.0
  %1663 = vmatpush1.xpose.msra.mxu0 0.0
  %1664 = vmatprep.subr.mxu0 0.0
  %1665 = vmatpush1.xpose.msra.mxu0 0.0
  %1666 = vmatprep.subr.mxu0 0.0
  %1667 = vmatpush1.xpose.msra.mxu0 0.0
  %1668 = vmatprep.subr.mxu0 0.0
  %1669 = vmatpush1.xpose.msra.mxu0 0.0
  %1670 = vmatprep.subr.mxu0 0.0
  %1671 = vmatpush1.xpose.msra.mxu0 0.0
  %1672 = vmatprep.subr.mxu0 0.0
  %1673 = vmatpush1.xpose.msra.mxu0 0.0
  %1674 = vmatprep.subr.mxu0 0.0
  %1675 = vmatpush1.xpose.msra.mxu0 0.0
  %1676 = vmatprep.subr.mxu0 0.0
  %1677 = vmatpush1.xpose.msra.mxu0 0.0
  %1678 = vmatprep.subr.mxu0 0.0
  %1679 = vmatpush1.xpose.msra.mxu0 0.0
  %1680 = vmatprep.subr.mxu0 0.0
  %1681 = vmatpush1.xpose.msra.mxu0 0.0
  %1682 = vmatprep.subr.mxu0 0.0
  %1683 = vmatpush1.xpose.msra.mxu0 0.0
  %1684 = vmatprep.subr.mxu0 0.0
  %1685 = vmatpush1.xpose.msra.mxu0 0.0
  %1686 = vmatprep.subr.mxu0 0.0
  %1687 = vmatpush1.xpose.msra.mxu0 0.0
  %1688 = vmatprep.subr.mxu0 0.0
  %1689 = vmatpush1.xpose.msra.mxu0 0.0
  %1690 = vmatprep.subr.mxu0 0.0
  %1691 = vmatpush1.xpose.msra.mxu0 0.0
  %1692 = vmatprep.subr.mxu0 0.0
  %1693 = vmatpush1.xpose.msra.mxu0 0.0
  %1694 = vmatprep.subr.mxu0 0.0
  %1695 = vmatpush1.xpose.msra.mxu0 0.0
  %1696 = vmatprep.subr.mxu0 0.0
  %1697 = vmatpush1.xpose.msra.mxu0 0.0
  %1698 = vmatprep.subr.mxu0 0.0
  %1699 = vmatpush1.xpose.msra.mxu0 0.0
  %1700 = vmatprep.subr.mxu0 0.0
  %1701 = vmatpush1.xpose.msra.mxu0 0.0
  %1702 = vmatprep.subr.mxu0 0.0
  %1703 = vmatpush1.xpose.msra.mxu0 0.0
  %1704 = vmatprep.mubr.f32.mxu0 0.0
  %1705 = vmatmul.mubr.f32.gmra.mrb[0].mxu0 %v1181
  %v1706 = vpop.f32.mrb[0].mxu0
  %v1707 = vadd.f32 0.0, %v1706
  %v1708 = vpop.f32.mrb[0].mxu0
  %1709 = vmatprep.mubr.f32.mxu0 0.0
  %1710 = vmatmul.mubr.f32.gmra.mrb[0].mxu0 %v1185
  %v1711 = vpop.f32.mrb[0].mxu0
  %v1712 = vadd.f32 0.0, %v1711
  %v1713 = vpop.f32.mrb[0].mxu0
  %1714 = vmatprep.mubr.f32.mxu0 0.0
  %1715 = vmatmul.mubr.f32.gmra.mrb[0].mxu0 %v1191
  %v1716 = vpop.f32.mrb[0].mxu0
  %v1717 = vadd.f32 0.0, %v1716
  %v1718 = vpop.f32.mrb[0].mxu0
  %1719 = vdwg.mxu0
  %v1720 = vmul.f32 %v1707, 0.088388346
  %v1721 = vmul.f32 %v1712, 0.088388346
  %v1722 = vmul.f32 %v1717, 0.088388346
  %v1723 = vadd.f32 %v1720, %v861
  %v1724 = vadd.f32 %v1721, %v862
  %v1725 = vadd.f32 %v1722, %v863
  %v1726 = vsel %vm1366, %v1723, -inf
  %1727 = vmax.xlane.f32.xlu0 %v1726
  %v1728 = vpop.xlane.xlu0 %1727
  %v1729 = vsel %vm1366, %v1724, -inf
  %1730 = vmax.xlane.f32.xlu0 %v1729
  %v1731 = vpop.xlane.xlu0 %1730
  %v1732 = vsel %vm1366, %v1725, -inf
  %1733 = vmax.xlane.f32.xlu0 %v1732
  %v1734 = vpop.xlane.xlu0 %1733
  %v1735 = vsub.f32 %v1723, %v1728
  %v1736 = vsub.f32 %v1724, %v1731
  %v1737 = vsub.f32 %v1725, %v1734
  %v1738 = vmul.f32 %v1735, 1.442695
  %v1739 = vpow.pop %v1738
  %v1740 = vmul.f32 %v1736, 1.442695
  %v1741 = vpow.pop %v1740
  %v1742 = vmul.f32 %v1737, 1.442695
  %v1743 = vpow.pop %v1742
  %v1744 = vsel %vm1366, %v1739, 0.0
  %1745 = vadd.xlane.f32.xlu0 %v1744
  %v1746 = vpop.xlane.xlu0 %1745
  %v1747 = vsel %vm1366, %v1741, 0.0
  %1748 = vadd.xlane.f32.xlu0 %v1747
  %v1749 = vpop.xlane.xlu0 %1748
  %v1750 = vsel %vm1366, %v1743, 0.0
  %1751 = vadd.xlane.f32.xlu0 %v1750
  %v1752 = vpop.xlane.xlu0 %1751
  %v1753 = vrcp.pop %v1746
  %v1754 = vrcp.pop %v1749
  %v1755 = vrcp.pop %v1752
  %v1756 = vmul.f32 %v1739, %v1753
  %v1757 = vmul.f32 %v1741, %v1754
  %v1758 = vmul.f32 %v1743, %v1755
  %v1760 = vsel %vm1366, %v1756, 0
  %v1763 = vsel %vm1366, %v1757, 0
  %v1766 = vsel %vm1366, %v1758, 0
  %1768 = vmatprep.subr.mxu0 0.0
  %1769 = vmatpush1.msra.mxu0 %v705
  %1770 = vmatprep.subr.mxu0 0.0
  %1771 = vmatpush1.msra.mxu0 %v706
  %1772 = vmatprep.subr.mxu0 0.0
  %1773 = vmatpush1.msra.mxu0 %v707
  %1774 = vmatprep.subr.mxu0 0.0
  %1775 = vmatpush1.msra.mxu0 0.0
  %1776 = vmatprep.subr.mxu0 0.0
  %1777 = vmatpush1.msra.mxu0 0.0
  %1778 = vmatprep.subr.mxu0 0.0
  %1779 = vmatpush1.msra.mxu0 0.0
  %1780 = vmatprep.subr.mxu0 0.0
  %1781 = vmatpush1.msra.mxu0 0.0
  %1782 = vmatprep.subr.mxu0 0.0
  %1783 = vmatpush1.msra.mxu0 0.0
  %1784 = vmatprep.subr.mxu0 0.0
  %1785 = vmatpush1.msra.mxu0 0.0
  %1786 = vmatprep.subr.mxu0 0.0
  %1787 = vmatpush1.msra.mxu0 0.0
  %1788 = vmatprep.subr.mxu0 0.0
  %1789 = vmatpush1.msra.mxu0 0.0
  %1790 = vmatprep.subr.mxu0 0.0
  %1791 = vmatpush1.msra.mxu0 0.0
  %1792 = vmatprep.subr.mxu0 0.0
  %1793 = vmatpush1.msra.mxu0 0.0
  %1794 = vmatprep.subr.mxu0 0.0
  %1795 = vmatpush1.msra.mxu0 0.0
  %1796 = vmatprep.subr.mxu0 0.0
  %1797 = vmatpush1.msra.mxu0 0.0
  %1798 = vmatprep.subr.mxu0 0.0
  %1799 = vmatpush1.msra.mxu0 0.0
  %1800 = vmatprep.subr.mxu0 0.0
  %1801 = vmatpush1.msra.mxu0 0.0
  %1802 = vmatprep.subr.mxu0 0.0
  %1803 = vmatpush1.msra.mxu0 0.0
  %1804 = vmatprep.subr.mxu0 0.0
  %1805 = vmatpush1.msra.mxu0 0.0
  %1806 = vmatprep.subr.mxu0 0.0
  %1807 = vmatpush1.msra.mxu0 0.0
  %1808 = vmatprep.subr.mxu0 0.0
  %1809 = vmatpush1.msra.mxu0 0.0
  %1810 = vmatprep.subr.mxu0 0.0
  %1811 = vmatpush1.msra.mxu0 0.0
  %1812 = vmatprep.subr.mxu0 0.0
  %1813 = vmatpush1.msra.mxu0 0.0
  %1814 = vmatprep.subr.mxu0 0.0
  %1815 = vmatpush1.msra.mxu0 0.0
  %1816 = vmatprep.subr.mxu0 0.0
  %1817 = vmatpush1.msra.mxu0 0.0
  %1818 = vmatprep.subr.mxu0 0.0
  %1819 = vmatpush1.msra.mxu0 0.0
  %1820 = vmatprep.subr.mxu0 0.0
  %1821 = vmatpush1.msra.mxu0 0.0
  %1822 = vmatprep.subr.mxu0 0.0
  %1823 = vmatpush1.msra.mxu0 0.0
  %1824 = vmatprep.subr.mxu0 0.0
  %1825 = vmatpush1.msra.mxu0 0.0
  %1826 = vmatprep.subr.mxu0 0.0
  %1827 = vmatpush1.msra.mxu0 0.0
  %1828 = vmatprep.subr.mxu0 0.0
  %1829 = vmatpush1.msra.mxu0 0.0
  %1830 = vmatprep.subr.mxu0 0.0
  %1831 = vmatpush1.msra.mxu0 0.0
  %1832 = vmatprep.mubr.f32.mxu0 0.0
  %1833 = vmatmul.mubr.f32.gmra.mrb[0].mxu0 %v1760
  %v1834 = vpop.f32.mrb[0].mxu0
  %v1835 = vadd.f32 0.0, %v1834
  %v1836 = vpop.f32.mrb[0].mxu0
  %1837 = vmatprep.mubr.f32.mxu0 0.0
  %1838 = vmatmul.mubr.f32.gmra.mrb[0].mxu0 %v1763
  %v1839 = vpop.f32.mrb[0].mxu0
  %v1840 = vadd.f32 0.0, %v1839
  %v1841 = vpop.f32.mrb[0].mxu0
  %1842 = vmatprep.mubr.f32.mxu0 0.0
  %1843 = vmatmul.mubr.f32.gmra.mrb[0].mxu0 %v1766
  %v1844 = vpop.f32.mrb[0].mxu0
  %v1845 = vadd.f32 0.0, %v1844
  %v1846 = vpop.f32.mrb[0].mxu0
  %1847 = vdwg.mxu0
  %v1848 = vpack.c.bf16 %v1840, %v1835
  %v1849 = vpack.c.bf16 %v1845, %v1845
  %v1866 = vunpack.c.l.b16 %v1262
  %v1867 = vunpack.c.l.b16 %v1263
  %v1868 = vunpack.c.l.b16 %v1264
  %v1869 = vunpack.c.l.b16 %v1265
  %v1870 = vunpack.c.l.b16 %v1266
  %v1871 = vunpack.c.l.b16 %v1267
  %v1872 = vunpack.c.l.b16 %v1268
  %v1873 = vunpack.c.l.b16 %v1269
  %v1874 = vunpack.c.l.b16 %v1270
  %v1875 = vunpack.c.l.b16 %v1271
  %v1876 = vunpack.c.l.b16 %v1272
  %v1877 = vunpack.c.l.b16 %v1273
  %v1878 = vunpack.c.l.b16 %v1274
  %v1879 = vunpack.c.l.b16 %v1275
  %v1880 = vunpack.c.l.b16 %v1276
  %v1881 = vunpack.c.l.b16 %v1277
  %v1882 = vpack.c.b16 %v1867, %v1866
  %v1883 = vpack.c.b16 %v1869, %v1868
  %v1884 = vpack.c.b16 %v1871, %v1870
  %v1885 = vpack.c.b16 %v1873, %v1872
  %v1886 = vpack.c.b16 %v1875, %v1874
  %v1887 = vpack.c.b16 %v1877, %v1876
  %v1888 = vpack.c.b16 %v1879, %v1878
  %v1889 = vpack.c.b16 %v1881, %v1880
  %1898 = vmatprep.subr.bf16.mxu0 0
  %1899 = vmatpush1.bf16.xpose.msra.mxu0 %v1882
  %1900 = vmatprep.subr.bf16.mxu0 0
  %1901 = vmatpush1.bf16.xpose.msra.mxu0 %v1883
  %1902 = vmatprep.subr.bf16.mxu0 0
  %1903 = vmatpush1.bf16.xpose.msra.mxu0 %v1884
  %1904 = vmatprep.subr.bf16.mxu0 0
  %1905 = vmatpush1.bf16.xpose.msra.mxu0 %v1885
  %1906 = vmatprep.subr.bf16.mxu0 0
  %1907 = vmatpush1.bf16.xpose.msra.mxu0 %v1886
  %1908 = vmatprep.subr.bf16.mxu0 0
  %1909 = vmatpush1.bf16.xpose.msra.mxu0 %v1887
  %1910 = vmatprep.subr.bf16.mxu0 0
  %1911 = vmatpush1.bf16.xpose.msra.mxu0 %v1888
  %1912 = vmatprep.subr.bf16.mxu0 0
  %1913 = vmatpush1.bf16.xpose.msra.mxu0 %v1889
  %1914 = vmatprep.subr.bf16.mxu0 0
  %1915 = vmatpush1.bf16.xpose.msra.mxu0 0
  %1916 = vmatprep.subr.bf16.mxu0 0
  %1917 = vmatpush1.bf16.xpose.msra.mxu0 0
  %1918 = vmatprep.subr.bf16.mxu0 0
  %1919 = vmatpush1.bf16.xpose.msra.mxu0 0
  %1920 = vmatprep.subr.bf16.mxu0 0
  %1921 = vmatpush1.bf16.xpose.msra.mxu0 0
  %1922 = vmatprep.subr.bf16.mxu0 0
  %1923 = vmatpush1.bf16.xpose.msra.mxu0 0
  %1924 = vmatprep.subr.bf16.mxu0 0
  %1925 = vmatpush1.bf16.xpose.msra.mxu0 0
  %1926 = vmatprep.subr.bf16.mxu0 0
  %1927 = vmatpush1.bf16.xpose.msra.mxu0 0
  %1928 = vmatprep.subr.bf16.mxu0 0
  %1929 = vmatpush1.bf16.xpose.msra.mxu0 0
  %1930 = vmatprep.mubr.bf16.mxu0 0
  %1931 = vmatmul.mubr.bf16.gmra.mrb[0].mxu0 %v1848
  %v1932 = vpop.f32.mrb[0].mxu0
  %v1933 = vadd.f32 0.0, %v1932
  %v1934 = vpop.f32.mrb[0].mxu0
  %v1935 = vpop.f32.mrb[0].mxu0
  %v1936 = vadd.f32 0.0, %v1935
  %v1937 = vpop.f32.mrb[0].mxu0
  %1938 = vmatprep.mubr.bf16.mxu0 0
  %1939 = vmatmul.mubr.bf16.gmra.mrb[0].mxu0 %v1849
  %v1940 = vpop.f32.mrb[0].mxu0
  %v1941 = vadd.f32 0.0, %v1940
  %v1942 = vpop.f32.mrb[0].mxu0
  %v1943 = vpop.f32.mrb[0].mxu0
  %v1944 = vpop.f32.mrb[0].mxu0
  %1945 = vdwg.mxu0
  %1946 = vadd.xlane.f32.xlu0 %v1933
  %v1947 = vpop.xlane.xlu0 %1946
  %1948 = vadd.xlane.f32.xlu0 %v1936
  %v1949 = vpop.xlane.xlu0 %1948
  %1950 = vadd.xlane.f32.xlu0 %v1941
  %v1951 = vpop.xlane.xlu0 %1950
  %v1952 = vmul.f32 %v1947, %v659
  %v1953 = vmul.f32 %v1949, %v659
  %v1954 = vmul.f32 %v1951, %v659
  %v1955 = vsub.f32 %v1933, %v1952
  %v1956 = vsub.f32 %v1936, %v1953
  %v1957 = vsub.f32 %v1941, %v1954
  %v1958 = vmul.f32 %v1955, %v1955
  %v1959 = vmul.f32 %v1956, %v1956
  %v1960 = vmul.f32 %v1957, %v1957
  %1961 = vadd.xlane.f32.xlu0 %v1958
  %v1962 = vpop.xlane.xlu0 %1961
  %1963 = vadd.xlane.f32.xlu0 %v1959
  %v1964 = vpop.xlane.xlu0 %1963
  %1965 = vadd.xlane.f32.xlu0 %v1960
  %v1966 = vpop.xlane.xlu0 %1965
  %v1967 = vmul.f32 %v1962, %v659
  %v1968 = vmul.f32 %v1964, %v659
  %v1969 = vmul.f32 %v1966, %v659
  %v1970 = vadd.f32 %v1967, 1e-05
  %v1971 = vadd.f32 %v1968, 1e-05
  %v1972 = vadd.f32 %v1969, 1e-05
  %v1973 = vrsqrt.pop %v1970
  %v1974 = vrsqrt.pop %v1971
  %v1975 = vrsqrt.pop %v1972
  %v1976 = vmul.f32 %v1955, %v1973
  %v1977 = vmul.f32 %v1956, %v1974
  %v1978 = vmul.f32 %v1957, %v1975
  %v1979 = vlaneseq
  %v1980 = vshrl.u32 %v1979, 7
  %v1981 = vsub.s32 1, %v1980
  %v1982 = vrot.slane %v1278, %v1981
  %v1983 = vmul.f32 %v1976, %v1982
  %v1984 = vmul.f32 %v1977, %v1982
  %v1985 = vmul.f32 %v1978, %v1982
  %v1986 = vlaneseq
  %v1987 = vshrl.u32 %v1986, 7
  %v1988 = vsub.s32 1, %v1987
  %v1989 = vrot.slane %v1279, %v1988
  %v1990 = vadd.f32 %v1983, %v1989
  %v1991 = vadd.f32 %v1984, %v1989
  %v1992 = vadd.f32 %v1985, %v1989
  %v1993 = vmax.f32 %v1990, 0.0
  %v1994 = vmax.f32 %v1991, 0.0
  %v1995 = vmax.f32 %v1992, 0.0
  %v1996 = vadd.f32 %v1637, %v1993
  %v1997 = vadd.f32 %v1638, %v1994
  %v1998 = vadd.f32 %v1639, %v1995
  %v1999 = vadd.f32 %v1996, %v705
  %v2000 = vadd.f32 %v1997, %v706
  %v2001 = vadd.f32 %v1998, %v707
  %v2002 = vpack.c.bf16 %v2000, %v1999
  %v2003 = vpack.c.bf16 %v2001, %v2001
  %v2004 = vld [vmem:[%s14] sm:$0xf]
  %v2005 = vld [vmem:[%s14 + $0x4] sm:$0xf]
  %v2006 = vld [vmem:[%s14 + $0x8] sm:$0xf]
  %v2007 = vld [vmem:[%s14 + $0xc] sm:$0xf]
  %v2008 = vld [vmem:[%s14 + $0x10] sm:$0xf]
  %v2009 = vld [vmem:[%s14 + $0x14] sm:$0xf]
  %v2010 = vld [vmem:[%s14 + $0x18] sm:$0xf]
  %v2011 = vld [vmem:[%s14 + $0x1c] sm:$0xf]
  %v2012 = vld [vmem:[%s14 + $0x20] sm:$0xf]
  %v2013 = vld [vmem:[%s14 + $0x24] sm:$0xf]
  %v2014 = vld [vmem:[%s14 + $0x28] sm:$0xf]
  %v2015 = vld [vmem:[%s14 + $0x2c] sm:$0xf]
  %v2016 = vld [vmem:[%s14 + $0x30] sm:$0xf]
  %v2017 = vld [vmem:[%s14 + $0x34] sm:$0xf]
  %v2018 = vld [vmem:[%s14 + $0x38] sm:$0xf]
  %v2019 = vld [vmem:[%s14 + $0x3c] sm:$0xf]
  %v2020 = vld [vmem:[%s14 + $0x40] sm:$0xf]
  %v2021 = vld [vmem:[%s14 + $0x44] sm:$0xf]
  %v2022 = vld [vmem:[%s14 + $0x48] sm:$0xf]
  %v2023 = vld [vmem:[%s14 + $0x4c] sm:$0xf]
  %v2024 = vld [vmem:[%s14 + $0x50] sm:$0xf]
  %v2025 = vld [vmem:[%s14 + $0x54] sm:$0xf]
  %v2026 = vld [vmem:[%s14 + $0x58] sm:$0xf]
  %v2027 = vld [vmem:[%s14 + $0x5c] sm:$0xf]
  %v2028 = vld [vmem:[%s14 + $0x60] sm:$0xf]
  %v2029 = vld [vmem:[%s14 + $0x64] sm:$0xf]
  %v2030 = vld [vmem:[%s14 + $0x68] sm:$0xf]
  %v2031 = vld [vmem:[%s14 + $0x6c] sm:$0xf]
  %v2032 = vld [vmem:[%s14 + $0x70] sm:$0xf]
  %v2033 = vld [vmem:[%s14 + $0x74] sm:$0xf]
  %v2034 = vld [vmem:[%s14 + $0x78] sm:$0xf]
  %v2035 = vld [vmem:[%s14 + $0x7c] sm:$0xf]
  %v2036 = vld [vmem:[%s14 + $0x80] sm:$0xf]
  %v2070 = vunpack.c.l.b16 %v2004
  %v2071 = vunpack.c.l.b16 %v2005
  %v2072 = vunpack.c.l.b16 %v2006
  %v2073 = vunpack.c.l.b16 %v2007
  %v2074 = vunpack.c.l.b16 %v2008
  %v2075 = vunpack.c.l.b16 %v2009
  %v2076 = vunpack.c.l.b16 %v2010
  %v2077 = vunpack.c.l.b16 %v2011
  %v2078 = vunpack.c.l.b16 %v2012
  %v2079 = vunpack.c.l.b16 %v2013
  %v2080 = vunpack.c.l.b16 %v2014
  %v2081 = vunpack.c.l.b16 %v2015
  %v2082 = vunpack.c.l.b16 %v2016
  %v2083 = vunpack.c.l.b16 %v2017
  %v2084 = vunpack.c.l.b16 %v2018
  %v2085 = vunpack.c.l.b16 %v2019
  %v2086 = vunpack.c.l.b16 %v2020
  %v2087 = vunpack.c.l.b16 %v2021
  %v2088 = vunpack.c.l.b16 %v2022
  %v2089 = vunpack.c.l.b16 %v2023
  %v2090 = vunpack.c.l.b16 %v2024
  %v2091 = vunpack.c.l.b16 %v2025
  %v2092 = vunpack.c.l.b16 %v2026
  %v2093 = vunpack.c.l.b16 %v2027
  %v2094 = vunpack.c.l.b16 %v2028
  %v2095 = vunpack.c.l.b16 %v2029
  %v2096 = vunpack.c.l.b16 %v2030
  %v2097 = vunpack.c.l.b16 %v2031
  %v2098 = vunpack.c.l.b16 %v2032
  %v2099 = vunpack.c.l.b16 %v2033
  %v2100 = vunpack.c.l.b16 %v2034
  %v2101 = vunpack.c.l.b16 %v2035
  %v2102 = vunpack.c.l.b16 %v2036
  %v2103 = vpack.c.b16 %v2071, %v2070
  %v2104 = vpack.c.b16 %v2073, %v2072
  %v2105 = vpack.c.b16 %v2075, %v2074
  %v2106 = vpack.c.b16 %v2077, %v2076
  %v2107 = vpack.c.b16 %v2079, %v2078
  %v2108 = vpack.c.b16 %v2081, %v2080
  %v2109 = vpack.c.b16 %v2083, %v2082
  %v2110 = vpack.c.b16 %v2085, %v2084
  %v2111 = vpack.c.b16 %v2087, %v2086
  %v2112 = vpack.c.b16 %v2089, %v2088
  %v2113 = vpack.c.b16 %v2091, %v2090
  %v2114 = vpack.c.b16 %v2093, %v2092
  %v2115 = vpack.c.b16 %v2095, %v2094
  %v2116 = vpack.c.b16 %v2097, %v2096
  %v2117 = vpack.c.b16 %v2099, %v2098
  %v2118 = vpack.c.b16 %v2101, %v2100
  %v2119 = vpack.c.b16 %v2102, %v2102
  %2137 = vmatprep.subr.bf16.mxu0 0
  %2138 = vmatpush1.bf16.xpose.msra.mxu0 %v2103
  %2139 = vmatprep.subr.bf16.mxu0 0
  %2140 = vmatpush1.bf16.xpose.msra.mxu0 %v2104
  %2141 = vmatprep.subr.bf16.mxu0 0
  %2142 = vmatpush1.bf16.xpose.msra.mxu0 %v2105
  %2143 = vmatprep.subr.bf16.mxu0 0
  %2144 = vmatpush1.bf16.xpose.msra.mxu0 %v2106
  %2145 = vmatprep.subr.bf16.mxu0 0
  %2146 = vmatpush1.bf16.xpose.msra.mxu0 %v2107
  %2147 = vmatprep.subr.bf16.mxu0 0
  %2148 = vmatpush1.bf16.xpose.msra.mxu0 %v2108
  %2149 = vmatprep.subr.bf16.mxu0 0
  %2150 = vmatpush1.bf16.xpose.msra.mxu0 %v2109
  %2151 = vmatprep.subr.bf16.mxu0 0
  %2152 = vmatpush1.bf16.xpose.msra.mxu0 %v2110
  %2153 = vmatprep.subr.bf16.mxu0 0
  %2154 = vmatpush1.bf16.xpose.msra.mxu0 %v2111
  %2155 = vmatprep.subr.bf16.mxu0 0
  %2156 = vmatpush1.bf16.xpose.msra.mxu0 %v2112
  %2157 = vmatprep.subr.bf16.mxu0 0
  %2158 = vmatpush1.bf16.xpose.msra.mxu0 %v2113
  %2159 = vmatprep.subr.bf16.mxu0 0
  %2160 = vmatpush1.bf16.xpose.msra.mxu0 %v2114
  %2161 = vmatprep.subr.bf16.mxu0 0
  %2162 = vmatpush1.bf16.xpose.msra.mxu0 %v2115
  %2163 = vmatprep.subr.bf16.mxu0 0
  %2164 = vmatpush1.bf16.xpose.msra.mxu0 %v2116
  %2165 = vmatprep.subr.bf16.mxu0 0
  %2166 = vmatpush1.bf16.xpose.msra.mxu0 %v2117
  %2167 = vmatprep.subr.bf16.mxu0 0
  %2168 = vmatpush1.bf16.xpose.msra.mxu0 %v2118
  %2169 = vmatprep.mubr.bf16.mxu0 0
  %2170 = vmatmul.mubr.bf16.gmra.mrb[0].mxu0 %v2002
  %v2171 = vpop.f32.mrb[0].mxu0
  %v2172 = vadd.f32 0.0, %v2171
  %v2173 = vpop.f32.mrb[0].mxu0
  %v2174 = vadd.f32 0.0, %v2173
  %v2175 = vpop.f32.mrb[0].mxu0
  %v2176 = vadd.f32 0.0, %v2175
  %v2177 = vpop.f32.mrb[0].mxu0
  %v2178 = vadd.f32 0.0, %v2177
  %2179 = vmatprep.mubr.bf16.mxu0 0
  %2180 = vmatmul.mubr.bf16.gmra.mrb[0].mxu0 %v2003
  %v2181 = vpop.f32.mrb[0].mxu0
  %v2182 = vadd.f32 0.0, %v2181
  %v2183 = vpop.f32.mrb[0].mxu0
  %v2184 = vadd.f32 0.0, %v2183
  %v2185 = vpop.f32.mrb[0].mxu0
  %v2186 = vpop.f32.mrb[0].mxu0
  %2187 = vdwg.mxu0
  %2188 = vmatprep.subr.bf16.mxu0 0
  %2189 = vmatpush1.bf16.xpose.msra.mxu0 %v2119
  %2190 = vmatprep.subr.bf16.mxu0 0
  %2191 = vmatpush1.bf16.xpose.msra.mxu0 0
  %2192 = vmatprep.subr.bf16.mxu0 0
  %2193 = vmatpush1.bf16.xpose.msra.mxu0 0
  %2194 = vmatprep.subr.bf16.mxu0 0
  %2195 = vmatpush1.bf16.xpose.msra.mxu0 0
  %2196 = vmatprep.subr.bf16.mxu0 0
  %2197 = vmatpush1.bf16.xpose.msra.mxu0 0
  %2198 = vmatprep.subr.bf16.mxu0 0
  %2199 = vmatpush1.bf16.xpose.msra.mxu0 0
  %2200 = vmatprep.subr.bf16.mxu0 0
  %2201 = vmatpush1.bf16.xpose.msra.mxu0 0
  %2202 = vmatprep.subr.bf16.mxu0 0
  %2203 = vmatpush1.bf16.xpose.msra.mxu0 0
  %2204 = vmatprep.subr.bf16.mxu0 0
  %2205 = vmatpush1.bf16.xpose.msra.mxu0 0
  %2206 = vmatprep.subr.bf16.mxu0 0
  %2207 = vmatpush1.bf16.xpose.msra.mxu0 0
  %2208 = vmatprep.subr.bf16.mxu0 0
  %2209 = vmatpush1.bf16.xpose.msra.mxu0 0
  %2210 = vmatprep.subr.bf16.mxu0 0
  %2211 = vmatpush1.bf16.xpose.msra.mxu0 0
  %2212 = vmatprep.subr.bf16.mxu0 0
  %2213 = vmatpush1.bf16.xpose.msra.mxu0 0
  %2214 = vmatprep.subr.bf16.mxu0 0
  %2215 = vmatpush1.bf16.xpose.msra.mxu0 0
  %2216 = vmatprep.subr.bf16.mxu0 0
  %2217 = vmatpush1.bf16.xpose.msra.mxu0 0
  %2218 = vmatprep.subr.bf16.mxu0 0
  %2219 = vmatpush1.bf16.xpose.msra.mxu0 0
  %2220 = vmatprep.mubr.bf16.mxu0 0
  %2221 = vmatmul.mubr.bf16.gmra.mrb[0].mxu0 %v2002
  %v2222 = vpop.f32.mrb[0].mxu0
  %v2223 = vadd.f32 0.0, %v2222
  %v2224 = vpop.f32.mrb[0].mxu0
  %v2225 = vpop.f32.mrb[0].mxu0
  %v2226 = vadd.f32 0.0, %v2225
  %v2227 = vpop.f32.mrb[0].mxu0
  %2228 = vmatprep.mubr.bf16.mxu0 0
  %2229 = vmatmul.mubr.bf16.gmra.mrb[0].mxu0 %v2003
  %v2230 = vpop.f32.mrb[0].mxu0
  %v2231 = vadd.f32 0.0, %v2230
  %v2232 = vpop.f32.mrb[0].mxu0
  %v2233 = vpop.f32.mrb[0].mxu0
  %v2234 = vpop.f32.mrb[0].mxu0
  %2235 = vdwg.mxu0
  %v2236 = vld [vmem:[%s15] sm:$0x1]
  %v2238 = vlaneseq
  %v2239 = vshrl.u32 %v2238, 7
  %v2240 = vsub.s32 0, %v2239
  %v2241 = vrot.slane %v2236, %v2240
  %v2243 = vadd.f32 %v2223, %v2241
  %v2244 = vadd.f32 %v2226, %v2241
  %v2245 = vadd.f32 %v2231, %v2241
  %vm2246 = vcmask 64512
  %2247 = vst.msk [vmem:[%s19] sm:$0xff] %vm2246, %v2243
  %2248 = vst.msk [vmem:[%s19 + $0x8] sm:$0xff] %vm2246, %v2244
  %2249 = vst.msk [vmem:[%s19 + $0x10] sm:$0xff] %vm2246, %v2245
  %v2250 = vpack.c.bf16 %v2176, %v2172
  %v2251 = vpack.c.bf16 %v2182, %v2182
  %v2252 = vpack.c.bf16 %v2178, %v2174
  %v2253 = vpack.c.bf16 %v2184, %v2184
  %v2254 = vld [vmem:[%s3] sm:$0xf]
  %v2255 = vld [vmem:[%s3 + $0x4] sm:$0xf]
  %v2256 = vld [vmem:[%s3 + $0x8] sm:$0xf]
  %v2257 = vld [vmem:[%s3 + $0xc] sm:$0xf]
  %v2258 = vld [vmem:[%s3 + $0x10] sm:$0xf]
  %v2259 = vld [vmem:[%s3 + $0x14] sm:$0xf]
  %v2260 = vld [vmem:[%s3 + $0x18] sm:$0xf]
  %v2261 = vld [vmem:[%s3 + $0x1c] sm:$0xf]
  %v2262 = vld [vmem:[%s3 + $0x20] sm:$0xf]
  %v2263 = vld [vmem:[%s3 + $0x24] sm:$0xf]
  %v2264 = vld [vmem:[%s3 + $0x28] sm:$0xf]
  %v2265 = vld [vmem:[%s3 + $0x2c] sm:$0xf]
  %v2266 = vld [vmem:[%s3 + $0x30] sm:$0xf]
  %v2267 = vld [vmem:[%s3 + $0x34] sm:$0xf]
  %v2268 = vld [vmem:[%s3 + $0x38] sm:$0xf]
  %v2269 = vld [vmem:[%s3 + $0x3c] sm:$0xf]
  %v2270 = vld [vmem:[%s3 + $0x40] sm:$0xf]
  %v2271 = vld [vmem:[%s3 + $0x44] sm:$0xf]
  %v2272 = vld [vmem:[%s3 + $0x48] sm:$0xf]
  %v2273 = vld [vmem:[%s3 + $0x4c] sm:$0xf]
  %v2274 = vld [vmem:[%s3 + $0x50] sm:$0xf]
  %v2275 = vld [vmem:[%s3 + $0x54] sm:$0xf]
  %v2276 = vld [vmem:[%s3 + $0x58] sm:$0xf]
  %v2277 = vld [vmem:[%s3 + $0x5c] sm:$0xf]
  %v2278 = vld [vmem:[%s3 + $0x60] sm:$0xf]
  %v2279 = vld [vmem:[%s3 + $0x64] sm:$0xf]
  %v2280 = vld [vmem:[%s3 + $0x68] sm:$0xf]
  %v2281 = vld [vmem:[%s3 + $0x6c] sm:$0xf]
  %v2282 = vld [vmem:[%s3 + $0x70] sm:$0xf]
  %v2283 = vld [vmem:[%s3 + $0x74] sm:$0xf]
  %v2284 = vld [vmem:[%s3 + $0x78] sm:$0xf]
  %v2285 = vld [vmem:[%s3 + $0x7c] sm:$0xf]
  %v2286 = vld [vmem:[%s3 + $0x80] sm:$0xf]
  %v2287 = vld [vmem:[%s3 + $0x84] sm:$0xf]
  %v2288 = vld [vmem:[%s3 + $0x88] sm:$0xf]
  %v2289 = vld [vmem:[%s3 + $0x8c] sm:$0xf]
  %v2290 = vld [vmem:[%s4] sm:$0xf]
  %v2291 = vld [vmem:[%s4 + $0x4] sm:$0xf]
  %v2292 = vld [vmem:[%s4 + $0x8] sm:$0xf]
  %v2293 = vld [vmem:[%s4 + $0xc] sm:$0xf]
  %v2294 = vld [vmem:[%s4 + $0x10] sm:$0xf]
  %v2295 = vld [vmem:[%s4 + $0x14] sm:$0xf]
  %v2296 = vld [vmem:[%s4 + $0x18] sm:$0xf]
  %v2297 = vld [vmem:[%s4 + $0x1c] sm:$0xf]
  %v2298 = vld [vmem:[%s4 + $0x20] sm:$0xf]
  %v2299 = vld [vmem:[%s4 + $0x24] sm:$0xf]
  %v2300 = vld [vmem:[%s4 + $0x28] sm:$0xf]
  %v2301 = vld [vmem:[%s4 + $0x2c] sm:$0xf]
  %v2302 = vld [vmem:[%s4 + $0x30] sm:$0xf]
  %v2303 = vld [vmem:[%s4 + $0x34] sm:$0xf]
  %v2304 = vld [vmem:[%s4 + $0x38] sm:$0xf]
  %v2305 = vld [vmem:[%s4 + $0x3c] sm:$0xf]
  %v2306 = vld [vmem:[%s4 + $0x40] sm:$0xf]
  %v2307 = vld [vmem:[%s4 + $0x44] sm:$0xf]
  %v2308 = vld [vmem:[%s4 + $0x48] sm:$0xf]
  %v2309 = vld [vmem:[%s4 + $0x4c] sm:$0xf]
  %v2310 = vld [vmem:[%s4 + $0x50] sm:$0xf]
  %v2311 = vld [vmem:[%s4 + $0x54] sm:$0xf]
  %v2312 = vld [vmem:[%s4 + $0x58] sm:$0xf]
  %v2313 = vld [vmem:[%s4 + $0x5c] sm:$0xf]
  %v2314 = vld [vmem:[%s4 + $0x60] sm:$0xf]
  %v2315 = vld [vmem:[%s4 + $0x64] sm:$0xf]
  %v2316 = vld [vmem:[%s4 + $0x68] sm:$0xf]
  %v2317 = vld [vmem:[%s4 + $0x6c] sm:$0xf]
  %v2318 = vld [vmem:[%s4 + $0x70] sm:$0xf]
  %v2319 = vld [vmem:[%s4 + $0x74] sm:$0xf]
  %v2320 = vld [vmem:[%s4 + $0x78] sm:$0xf]
  %v2321 = vld [vmem:[%s4 + $0x7c] sm:$0xf]
  %v2322 = vld [vmem:[%s4 + $0x80] sm:$0xf]
  %v2323 = vld [vmem:[%s4 + $0x84] sm:$0xf]
  %v2324 = vld [vmem:[%s4 + $0x88] sm:$0xf]
  %v2325 = vld [vmem:[%s4 + $0x8c] sm:$0xf]
  %v2362 = vunpack.c.l.b16 %v2290
  %v2363 = vunpack.c.l.b16 %v2291
  %v2364 = vunpack.c.l.b16 %v2292
  %v2365 = vunpack.c.l.b16 %v2293
  %v2366 = vunpack.c.l.b16 %v2294
  %v2367 = vunpack.c.l.b16 %v2295
  %v2368 = vunpack.c.l.b16 %v2296
  %v2369 = vunpack.c.l.b16 %v2297
  %v2370 = vunpack.c.l.b16 %v2298
  %v2371 = vunpack.c.l.b16 %v2299
  %v2372 = vunpack.c.l.b16 %v2300
  %v2373 = vunpack.c.l.b16 %v2301
  %v2374 = vunpack.c.l.b16 %v2302
  %v2375 = vunpack.c.l.b16 %v2303
  %v2376 = vunpack.c.l.b16 %v2304
  %v2377 = vunpack.c.l.b16 %v2305
  %v2378 = vunpack.c.l.b16 %v2306
  %v2379 = vunpack.c.l.b16 %v2307
  %v2380 = vunpack.c.l.b16 %v2308
  %v2381 = vunpack.c.l.b16 %v2309
  %v2382 = vunpack.c.l.b16 %v2310
  %v2383 = vunpack.c.l.b16 %v2311
  %v2384 = vunpack.c.l.b16 %v2312
  %v2385 = vunpack.c.l.b16 %v2313
  %v2386 = vunpack.c.l.b16 %v2314
  %v2387 = vunpack.c.l.b16 %v2315
  %v2388 = vunpack.c.l.b16 %v2316
  %v2389 = vunpack.c.l.b16 %v2317
  %v2390 = vunpack.c.l.b16 %v2318
  %v2391 = vunpack.c.l.b16 %v2319
  %v2392 = vunpack.c.l.b16 %v2320
  %v2393 = vunpack.c.l.b16 %v2321
  %v2394 = vunpack.c.l.b16 %v2322
  %v2395 = vunpack.c.l.b16 %v2323
  %v2396 = vunpack.c.l.b16 %v2324
  %v2397 = vunpack.c.l.b16 %v2325
  %v2398 = vpack.c.b16 %v2363, %v2362
  %v2399 = vpack.c.b16 %v2365, %v2364
  %v2400 = vpack.c.b16 %v2367, %v2366
  %v2401 = vpack.c.b16 %v2369, %v2368
  %v2402 = vpack.c.b16 %v2371, %v2370
  %v2403 = vpack.c.b16 %v2373, %v2372
  %v2404 = vpack.c.b16 %v2375, %v2374
  %v2405 = vpack.c.b16 %v2377, %v2376
  %v2406 = vpack.c.b16 %v2379, %v2378
  %v2407 = vpack.c.b16 %v2381, %v2380
  %v2408 = vpack.c.b16 %v2383, %v2382
  %v2409 = vpack.c.b16 %v2385, %v2384
  %v2410 = vpack.c.b16 %v2387, %v2386
  %v2411 = vpack.c.b16 %v2389, %v2388
  %v2412 = vpack.c.b16 %v2391, %v2390
  %v2413 = vpack.c.b16 %v2393, %v2392
  %v2414 = vpack.c.b16 %v2395, %v2394
  %v2415 = vpack.c.b16 %v2397, %v2396
  %v2417 = vsel %vm1366, %v2398, 0
  %v2420 = vsel %vm1366, %v2399, 0
  %v2423 = vsel %vm1366, %v2400, 0
  %v2426 = vsel %vm1366, %v2401, 0
  %v2429 = vsel %vm1366, %v2402, 0
  %v2432 = vsel %vm1366, %v2403, 0
  %v2435 = vsel %vm1366, %v2404, 0
  %v2438 = vsel %vm1366, %v2405, 0
  %v2441 = vsel %vm1366, %v2406, 0
  %v2444 = vsel %vm1366, %v2407, 0
  %v2447 = vsel %vm1366, %v2408, 0
  %v2450 = vsel %vm1366, %v2409, 0
  %v2453 = vsel %vm1366, %v2410, 0
  %v2456 = vsel %vm1366, %v2411, 0
  %v2459 = vsel %vm1366, %v2412, 0
  %v2462 = vsel %vm1366, %v2413, 0
  %v2465 = vsel %vm1366, %v2414, 0
  %v2468 = vsel %vm1366, %v2415, 0
  %vm2470 = vcmask 1043456
  %v2472 = vsel %vm2470, %v2253, 0
  %2474 = vmatprep.subr.bf16.mxu0 0
  %2475 = vmatpush1.bf16.msra.mxu0 %v2252
  %2476 = vmatprep.subr.bf16.mxu0 0
  %2477 = vmatpush1.bf16.msra.mxu0 %v2472
  %2478 = vmatprep.subr.bf16.mxu0 0
  %2479 = vmatpush1.bf16.msra.mxu0 0
  %2480 = vmatprep.subr.bf16.mxu0 0
  %2481 = vmatpush1.bf16.msra.mxu0 0
  %2482 = vmatprep.subr.bf16.mxu0 0
  %2483 = vmatpush1.bf16.msra.mxu0 0
  %2484 = vmatprep.subr.bf16.mxu0 0
  %2485 = vmatpush1.bf16.msra.mxu0 0
  %2486 = vmatprep.subr.bf16.mxu0 0
  %2487 = vmatpush1.bf16.msra.mxu0 0
  %2488 = vmatprep.subr.bf16.mxu0 0
  %2489 = vmatpush1.bf16.msra.mxu0 0
  %2490 = vmatprep.subr.bf16.mxu0 0
  %2491 = vmatpush1.bf16.msra.mxu0 0
  %2492 = vmatprep.subr.bf16.mxu0 0
  %2493 = vmatpush1.bf16.msra.mxu0 0
  %2494 = vmatprep.subr.bf16.mxu0 0
  %2495 = vmatpush1.bf16.msra.mxu0 0
  %2496 = vmatprep.subr.bf16.mxu0 0
  %2497 = vmatpush1.bf16.msra.mxu0 0
  %2498 = vmatprep.subr.bf16.mxu0 0
  %2499 = vmatpush1.bf16.msra.mxu0 0
  %2500 = vmatprep.subr.bf16.mxu0 0
  %2501 = vmatpush1.bf16.msra.mxu0 0
  %2502 = vmatprep.subr.bf16.mxu0 0
  %2503 = vmatpush1.bf16.msra.mxu0 0
  %2504 = vmatprep.subr.bf16.mxu0 0
  %2505 = vmatpush1.bf16.msra.mxu0 0
  %2506 = vmatprep.mubr.bf16.mxu0 0
  %2507 = vmatmul.mubr.bf16.gmra.mrb[0].mxu0 %v2417
  %v2508 = vpop.f32.mrb[0].mxu0
  %v2509 = vadd.f32 0.0, %v2508
  %v2510 = vpop.f32.mrb[0].mxu0
  %v2511 = vpop.f32.mrb[0].mxu0
  %v2512 = vadd.f32 0.0, %v2511
  %v2513 = vpop.f32.mrb[0].mxu0
  %2514 = vmatprep.mubr.bf16.mxu0 0
  %2515 = vmatmul.mubr.bf16.gmra.mrb[0].mxu0 %v2420
  %v2516 = vpop.f32.mrb[0].mxu0
  %v2517 = vadd.f32 0.0, %v2516
  %v2518 = vpop.f32.mrb[0].mxu0
  %v2519 = vpop.f32.mrb[0].mxu0
  %v2520 = vadd.f32 0.0, %v2519
  %v2521 = vpop.f32.mrb[0].mxu0
  %2522 = vmatprep.mubr.bf16.mxu0 0
  %2523 = vmatmul.mubr.bf16.gmra.mrb[0].mxu0 %v2423
  %v2524 = vpop.f32.mrb[0].mxu0
  %v2525 = vadd.f32 0.0, %v2524
  %v2526 = vpop.f32.mrb[0].mxu0
  %v2527 = vpop.f32.mrb[0].mxu0
  %v2528 = vadd.f32 0.0, %v2527
  %v2529 = vpop.f32.mrb[0].mxu0
  %2530 = vmatprep.mubr.bf16.mxu0 0
  %2531 = vmatmul.mubr.bf16.gmra.mrb[0].mxu0 %v2426
  %v2532 = vpop.f32.mrb[0].mxu0
  %v2533 = vadd.f32 0.0, %v2532
  %v2534 = vpop.f32.mrb[0].mxu0
  %v2535 = vpop.f32.mrb[0].mxu0
  %v2536 = vadd.f32 0.0, %v2535
  %v2537 = vpop.f32.mrb[0].mxu0
  %2538 = vmatprep.mubr.bf16.mxu0 0
  %2539 = vmatmul.mubr.bf16.gmra.mrb[0].mxu0 %v2429
  %v2540 = vpop.f32.mrb[0].mxu0
  %v2541 = vadd.f32 0.0, %v2540
  %v2542 = vpop.f32.mrb[0].mxu0
  %v2543 = vpop.f32.mrb[0].mxu0
  %v2544 = vadd.f32 0.0, %v2543
  %v2545 = vpop.f32.mrb[0].mxu0
  %2546 = vmatprep.mubr.bf16.mxu0 0
  %2547 = vmatmul.mubr.bf16.gmra.mrb[0].mxu0 %v2432
  %v2548 = vpop.f32.mrb[0].mxu0
  %v2549 = vadd.f32 0.0, %v2548
  %v2550 = vpop.f32.mrb[0].mxu0
  %v2551 = vpop.f32.mrb[0].mxu0
  %v2552 = vadd.f32 0.0, %v2551
  %v2553 = vpop.f32.mrb[0].mxu0
  %2554 = vmatprep.mubr.bf16.mxu0 0
  %2555 = vmatmul.mubr.bf16.gmra.mrb[0].mxu0 %v2435
  %v2556 = vpop.f32.mrb[0].mxu0
  %v2557 = vadd.f32 0.0, %v2556
  %v2558 = vpop.f32.mrb[0].mxu0
  %v2559 = vpop.f32.mrb[0].mxu0
  %v2560 = vadd.f32 0.0, %v2559
  %v2561 = vpop.f32.mrb[0].mxu0
  %2562 = vmatprep.mubr.bf16.mxu0 0
  %2563 = vmatmul.mubr.bf16.gmra.mrb[0].mxu0 %v2438
  %v2564 = vpop.f32.mrb[0].mxu0
  %v2565 = vadd.f32 0.0, %v2564
  %v2566 = vpop.f32.mrb[0].mxu0
  %v2567 = vpop.f32.mrb[0].mxu0
  %v2568 = vadd.f32 0.0, %v2567
  %v2569 = vpop.f32.mrb[0].mxu0
  %2570 = vmatprep.mubr.bf16.mxu0 0
  %2571 = vmatmul.mubr.bf16.gmra.mrb[0].mxu0 %v2441
  %v2572 = vpop.f32.mrb[0].mxu0
  %v2573 = vadd.f32 0.0, %v2572
  %v2574 = vpop.f32.mrb[0].mxu0
  %v2575 = vpop.f32.mrb[0].mxu0
  %v2576 = vadd.f32 0.0, %v2575
  %v2577 = vpop.f32.mrb[0].mxu0
  %2578 = vmatprep.mubr.bf16.mxu0 0
  %2579 = vmatmul.mubr.bf16.gmra.mrb[0].mxu0 %v2444
  %v2580 = vpop.f32.mrb[0].mxu0
  %v2581 = vadd.f32 0.0, %v2580
  %v2582 = vpop.f32.mrb[0].mxu0
  %v2583 = vpop.f32.mrb[0].mxu0
  %v2584 = vadd.f32 0.0, %v2583
  %v2585 = vpop.f32.mrb[0].mxu0
  %2586 = vmatprep.mubr.bf16.mxu0 0
  %2587 = vmatmul.mubr.bf16.gmra.mrb[0].mxu0 %v2447
  %v2588 = vpop.f32.mrb[0].mxu0
  %v2589 = vadd.f32 0.0, %v2588
  %v2590 = vpop.f32.mrb[0].mxu0
  %v2591 = vpop.f32.mrb[0].mxu0
  %v2592 = vadd.f32 0.0, %v2591
  %v2593 = vpop.f32.mrb[0].mxu0
  %2594 = vmatprep.mubr.bf16.mxu0 0
  %2595 = vmatmul.mubr.bf16.gmra.mrb[0].mxu0 %v2450
  %v2596 = vpop.f32.mrb[0].mxu0
  %v2597 = vadd.f32 0.0, %v2596
  %v2598 = vpop.f32.mrb[0].mxu0
  %v2599 = vpop.f32.mrb[0].mxu0
  %v2600 = vadd.f32 0.0, %v2599
  %v2601 = vpop.f32.mrb[0].mxu0
  %2602 = vmatprep.mubr.bf16.mxu0 0
  %2603 = vmatmul.mubr.bf16.gmra.mrb[0].mxu0 %v2453
  %v2604 = vpop.f32.mrb[0].mxu0
  %v2605 = vadd.f32 0.0, %v2604
  %v2606 = vpop.f32.mrb[0].mxu0
  %v2607 = vpop.f32.mrb[0].mxu0
  %v2608 = vadd.f32 0.0, %v2607
  %v2609 = vpop.f32.mrb[0].mxu0
  %2610 = vmatprep.mubr.bf16.mxu0 0
  %2611 = vmatmul.mubr.bf16.gmra.mrb[0].mxu0 %v2456
  %v2612 = vpop.f32.mrb[0].mxu0
  %v2613 = vadd.f32 0.0, %v2612
  %v2614 = vpop.f32.mrb[0].mxu0
  %v2615 = vpop.f32.mrb[0].mxu0
  %v2616 = vadd.f32 0.0, %v2615
  %v2617 = vpop.f32.mrb[0].mxu0
  %2618 = vmatprep.mubr.bf16.mxu0 0
  %2619 = vmatmul.mubr.bf16.gmra.mrb[0].mxu0 %v2459
  %v2620 = vpop.f32.mrb[0].mxu0
  %v2621 = vadd.f32 0.0, %v2620
  %v2622 = vpop.f32.mrb[0].mxu0
  %v2623 = vpop.f32.mrb[0].mxu0
  %v2624 = vadd.f32 0.0, %v2623
  %v2625 = vpop.f32.mrb[0].mxu0
  %2626 = vmatprep.mubr.bf16.mxu0 0
  %2627 = vmatmul.mubr.bf16.gmra.mrb[0].mxu0 %v2462
  %v2628 = vpop.f32.mrb[0].mxu0
  %v2629 = vadd.f32 0.0, %v2628
  %v2630 = vpop.f32.mrb[0].mxu0
  %v2631 = vpop.f32.mrb[0].mxu0
  %v2632 = vadd.f32 0.0, %v2631
  %v2633 = vpop.f32.mrb[0].mxu0
  %2634 = vmatprep.mubr.bf16.mxu0 0
  %2635 = vmatmul.mubr.bf16.gmra.mrb[0].mxu0 %v2465
  %v2636 = vpop.f32.mrb[0].mxu0
  %v2637 = vadd.f32 0.0, %v2636
  %v2638 = vpop.f32.mrb[0].mxu0
  %v2639 = vpop.f32.mrb[0].mxu0
  %v2640 = vadd.f32 0.0, %v2639
  %v2641 = vpop.f32.mrb[0].mxu0
  %2642 = vmatprep.mubr.bf16.mxu0 0
  %2643 = vmatmul.mubr.bf16.gmra.mrb[0].mxu0 %v2468
  %v2644 = vpop.f32.mrb[0].mxu0
  %v2645 = vadd.f32 0.0, %v2644
  %v2646 = vpop.f32.mrb[0].mxu0
  %v2647 = vpop.f32.mrb[0].mxu0
  %v2648 = vadd.f32 0.0, %v2647
  %v2649 = vpop.f32.mrb[0].mxu0
  %2650 = vdwg.mxu0
  %v2687 = vunpack.c.l.b16 %v2254
  %v2688 = vunpack.c.l.b16 %v2255
  %v2689 = vunpack.c.l.b16 %v2256
  %v2690 = vunpack.c.l.b16 %v2257
  %v2691 = vunpack.c.l.b16 %v2258
  %v2692 = vunpack.c.l.b16 %v2259
  %v2693 = vunpack.c.l.b16 %v2260
  %v2694 = vunpack.c.l.b16 %v2261
  %v2695 = vunpack.c.l.b16 %v2262
  %v2696 = vunpack.c.l.b16 %v2263
  %v2697 = vunpack.c.l.b16 %v2264
  %v2698 = vunpack.c.l.b16 %v2265
  %v2699 = vunpack.c.l.b16 %v2266
  %v2700 = vunpack.c.l.b16 %v2267
  %v2701 = vunpack.c.l.b16 %v2268
  %v2702 = vunpack.c.l.b16 %v2269
  %v2703 = vunpack.c.l.b16 %v2270
  %v2704 = vunpack.c.l.b16 %v2271
  %v2705 = vunpack.c.l.b16 %v2272
  %v2706 = vunpack.c.l.b16 %v2273
  %v2707 = vunpack.c.l.b16 %v2274
  %v2708 = vunpack.c.l.b16 %v2275
  %v2709 = vunpack.c.l.b16 %v2276
  %v2710 = vunpack.c.l.b16 %v2277
  %v2711 = vunpack.c.l.b16 %v2278
  %v2712 = vunpack.c.l.b16 %v2279
  %v2713 = vunpack.c.l.b16 %v2280
  %v2714 = vunpack.c.l.b16 %v2281
  %v2715 = vunpack.c.l.b16 %v2282
  %v2716 = vunpack.c.l.b16 %v2283
  %v2717 = vunpack.c.l.b16 %v2284
  %v2718 = vunpack.c.l.b16 %v2285
  %v2719 = vunpack.c.l.b16 %v2286
  %v2720 = vunpack.c.l.b16 %v2287
  %v2721 = vunpack.c.l.b16 %v2288
  %v2722 = vunpack.c.l.b16 %v2289
  %v2723 = vpack.c.b16 %v2688, %v2687
  %v2724 = vpack.c.b16 %v2690, %v2689
  %v2725 = vpack.c.b16 %v2692, %v2691
  %v2726 = vpack.c.b16 %v2694, %v2693
  %v2727 = vpack.c.b16 %v2696, %v2695
  %v2728 = vpack.c.b16 %v2698, %v2697
  %v2729 = vpack.c.b16 %v2700, %v2699
  %v2730 = vpack.c.b16 %v2702, %v2701
  %v2731 = vpack.c.b16 %v2704, %v2703
  %v2732 = vpack.c.b16 %v2706, %v2705
  %v2733 = vpack.c.b16 %v2708, %v2707
  %v2734 = vpack.c.b16 %v2710, %v2709
  %v2735 = vpack.c.b16 %v2712, %v2711
  %v2736 = vpack.c.b16 %v2714, %v2713
  %v2737 = vpack.c.b16 %v2716, %v2715
  %v2738 = vpack.c.b16 %v2718, %v2717
  %v2739 = vpack.c.b16 %v2720, %v2719
  %v2740 = vpack.c.b16 %v2722, %v2721
  %v2742 = vsel %vm1366, %v2723, 0
  %v2745 = vsel %vm1366, %v2724, 0
  %v2748 = vsel %vm1366, %v2725, 0
  %v2751 = vsel %vm1366, %v2726, 0
  %v2754 = vsel %vm1366, %v2727, 0
  %v2757 = vsel %vm1366, %v2728, 0
  %v2760 = vsel %vm1366, %v2729, 0
  %v2763 = vsel %vm1366, %v2730, 0
  %v2766 = vsel %vm1366, %v2731, 0
  %v2769 = vsel %vm1366, %v2732, 0
  %v2772 = vsel %vm1366, %v2733, 0
  %v2775 = vsel %vm1366, %v2734, 0
  %v2778 = vsel %vm1366, %v2735, 0
  %v2781 = vsel %vm1366, %v2736, 0
  %v2784 = vsel %vm1366, %v2737, 0
  %v2787 = vsel %vm1366, %v2738, 0
  %v2790 = vsel %vm1366, %v2739, 0
  %v2793 = vsel %vm1366, %v2740, 0
  %v2796 = vsel %vm2470, %v2251, 0
  %2798 = vmatprep.subr.bf16.mxu0 0
  %2799 = vmatpush1.bf16.msra.mxu0 %v2250
  %2800 = vmatprep.subr.bf16.mxu0 0
  %2801 = vmatpush1.bf16.msra.mxu0 %v2796
  %2802 = vmatprep.subr.bf16.mxu0 0
  %2803 = vmatpush1.bf16.msra.mxu0 0
  %2804 = vmatprep.subr.bf16.mxu0 0
  %2805 = vmatpush1.bf16.msra.mxu0 0
  %2806 = vmatprep.subr.bf16.mxu0 0
  %2807 = vmatpush1.bf16.msra.mxu0 0
  %2808 = vmatprep.subr.bf16.mxu0 0
  %2809 = vmatpush1.bf16.msra.mxu0 0
  %2810 = vmatprep.subr.bf16.mxu0 0
  %2811 = vmatpush1.bf16.msra.mxu0 0
  %2812 = vmatprep.subr.bf16.mxu0 0
  %2813 = vmatpush1.bf16.msra.mxu0 0
  %2814 = vmatprep.subr.bf16.mxu0 0
  %2815 = vmatpush1.bf16.msra.mxu0 0
  %2816 = vmatprep.subr.bf16.mxu0 0
  %2817 = vmatpush1.bf16.msra.mxu0 0
  %2818 = vmatprep.subr.bf16.mxu0 0
  %2819 = vmatpush1.bf16.msra.mxu0 0
  %2820 = vmatprep.subr.bf16.mxu0 0
  %2821 = vmatpush1.bf16.msra.mxu0 0
  %2822 = vmatprep.subr.bf16.mxu0 0
  %2823 = vmatpush1.bf16.msra.mxu0 0
  %2824 = vmatprep.subr.bf16.mxu0 0
  %2825 = vmatpush1.bf16.msra.mxu0 0
  %2826 = vmatprep.subr.bf16.mxu0 0
  %2827 = vmatpush1.bf16.msra.mxu0 0
  %2828 = vmatprep.subr.bf16.mxu0 0
  %2829 = vmatpush1.bf16.msra.mxu0 0
  %2830 = vmatprep.mubr.bf16.mxu0 0
  %2831 = vmatmul.mubr.bf16.gmra.mrb[0].mxu0 %v2742
  %v2832 = vpop.f32.mrb[0].mxu0
  %v2833 = vadd.f32 %v2509, %v2832
  %v2834 = vpop.f32.mrb[0].mxu0
  %v2835 = vpop.f32.mrb[0].mxu0
  %v2836 = vadd.f32 %v2512, %v2835
  %v2837 = vpop.f32.mrb[0].mxu0
  %2838 = vmatprep.mubr.bf16.mxu0 0
  %2839 = vmatmul.mubr.bf16.gmra.mrb[0].mxu0 %v2745
  %v2840 = vpop.f32.mrb[0].mxu0
  %v2841 = vadd.f32 %v2517, %v2840
  %v2842 = vpop.f32.mrb[0].mxu0
  %v2843 = vpop.f32.mrb[0].mxu0
  %v2844 = vadd.f32 %v2520, %v2843
  %v2845 = vpop.f32.mrb[0].mxu0
  %2846 = vmatprep.mubr.bf16.mxu0 0
  %2847 = vmatmul.mubr.bf16.gmra.mrb[0].mxu0 %v2748
  %v2848 = vpop.f32.mrb[0].mxu0
  %v2849 = vadd.f32 %v2525, %v2848
  %v2850 = vpop.f32.mrb[0].mxu0
  %v2851 = vpop.f32.mrb[0].mxu0
  %v2852 = vadd.f32 %v2528, %v2851
  %v2853 = vpop.f32.mrb[0].mxu0
  %2854 = vmatprep.mubr.bf16.mxu0 0
  %2855 = vmatmul.mubr.bf16.gmra.mrb[0].mxu0 %v2751
  %v2856 = vpop.f32.mrb[0].mxu0
  %v2857 = vadd.f32 %v2533, %v2856
  %v2858 = vpop.f32.mrb[0].mxu0
  %v2859 = vpop.f32.mrb[0].mxu0
  %v2860 = vadd.f32 %v2536, %v2859
  %v2861 = vpop.f32.mrb[0].mxu0
  %2862 = vmatprep.mubr.bf16.mxu0 0
  %2863 = vmatmul.mubr.bf16.gmra.mrb[0].mxu0 %v2754
  %v2864 = vpop.f32.mrb[0].mxu0
  %v2865 = vadd.f32 %v2541, %v2864
  %v2866 = vpop.f32.mrb[0].mxu0
  %v2867 = vpop.f32.mrb[0].mxu0
  %v2868 = vadd.f32 %v2544, %v2867
  %v2869 = vpop.f32.mrb[0].mxu0
  %2870 = vmatprep.mubr.bf16.mxu0 0
  %2871 = vmatmul.mubr.bf16.gmra.mrb[0].mxu0 %v2757
  %v2872 = vpop.f32.mrb[0].mxu0
  %v2873 = vadd.f32 %v2549, %v2872
  %v2874 = vpop.f32.mrb[0].mxu0
  %v2875 = vpop.f32.mrb[0].mxu0
  %v2876 = vadd.f32 %v2552, %v2875
  %v2877 = vpop.f32.mrb[0].mxu0
  %2878 = vmatprep.mubr.bf16.mxu0 0
  %2879 = vmatmul.mubr.bf16.gmra.mrb[0].mxu0 %v2760
  %v2880 = vpop.f32.mrb[0].mxu0
  %v2881 = vadd.f32 %v2557, %v2880
  %v2882 = vpop.f32.mrb[0].mxu0
  %v2883 = vpop.f32.mrb[0].mxu0
  %v2884 = vadd.f32 %v2560, %v2883
  %v2885 = vpop.f32.mrb[0].mxu0
  %2886 = vmatprep.mubr.bf16.mxu0 0
  %2887 = vmatmul.mubr.bf16.gmra.mrb[0].mxu0 %v2763
  %v2888 = vpop.f32.mrb[0].mxu0
  %v2889 = vadd.f32 %v2565, %v2888
  %v2890 = vpop.f32.mrb[0].mxu0
  %v2891 = vpop.f32.mrb[0].mxu0
  %v2892 = vadd.f32 %v2568, %v2891
  %v2893 = vpop.f32.mrb[0].mxu0
  %2894 = vmatprep.mubr.bf16.mxu0 0
  %2895 = vmatmul.mubr.bf16.gmra.mrb[0].mxu0 %v2766
  %v2896 = vpop.f32.mrb[0].mxu0
  %v2897 = vadd.f32 %v2573, %v2896
  %v2898 = vpop.f32.mrb[0].mxu0
  %v2899 = vpop.f32.mrb[0].mxu0
  %v2900 = vadd.f32 %v2576, %v2899
  %v2901 = vpop.f32.mrb[0].mxu0
  %2902 = vmatprep.mubr.bf16.mxu0 0
  %2903 = vmatmul.mubr.bf16.gmra.mrb[0].mxu0 %v2769
  %v2904 = vpop.f32.mrb[0].mxu0
  %v2905 = vadd.f32 %v2581, %v2904
  %v2906 = vpop.f32.mrb[0].mxu0
  %v2907 = vpop.f32.mrb[0].mxu0
  %v2908 = vadd.f32 %v2584, %v2907
  %v2909 = vpop.f32.mrb[0].mxu0
  %2910 = vmatprep.mubr.bf16.mxu0 0
  %2911 = vmatmul.mubr.bf16.gmra.mrb[0].mxu0 %v2772
  %v2912 = vpop.f32.mrb[0].mxu0
  %v2913 = vadd.f32 %v2589, %v2912
  %v2914 = vpop.f32.mrb[0].mxu0
  %v2915 = vpop.f32.mrb[0].mxu0
  %v2916 = vadd.f32 %v2592, %v2915
  %v2917 = vpop.f32.mrb[0].mxu0
  %2918 = vmatprep.mubr.bf16.mxu0 0
  %2919 = vmatmul.mubr.bf16.gmra.mrb[0].mxu0 %v2775
  %v2920 = vpop.f32.mrb[0].mxu0
  %v2921 = vadd.f32 %v2597, %v2920
  %v2922 = vpop.f32.mrb[0].mxu0
  %v2923 = vpop.f32.mrb[0].mxu0
  %v2924 = vadd.f32 %v2600, %v2923
  %v2925 = vpop.f32.mrb[0].mxu0
  %2926 = vmatprep.mubr.bf16.mxu0 0
  %2927 = vmatmul.mubr.bf16.gmra.mrb[0].mxu0 %v2778
  %v2928 = vpop.f32.mrb[0].mxu0
  %v2929 = vadd.f32 %v2605, %v2928
  %v2930 = vpop.f32.mrb[0].mxu0
  %v2931 = vpop.f32.mrb[0].mxu0
  %v2932 = vadd.f32 %v2608, %v2931
  %v2933 = vpop.f32.mrb[0].mxu0
  %2934 = vmatprep.mubr.bf16.mxu0 0
  %2935 = vmatmul.mubr.bf16.gmra.mrb[0].mxu0 %v2781
  %v2936 = vpop.f32.mrb[0].mxu0
  %v2937 = vadd.f32 %v2613, %v2936
  %v2938 = vpop.f32.mrb[0].mxu0
  %v2939 = vpop.f32.mrb[0].mxu0
  %v2940 = vadd.f32 %v2616, %v2939
  %v2941 = vpop.f32.mrb[0].mxu0
  %2942 = vmatprep.mubr.bf16.mxu0 0
  %2943 = vmatmul.mubr.bf16.gmra.mrb[0].mxu0 %v2784
  %v2944 = vpop.f32.mrb[0].mxu0
  %v2945 = vadd.f32 %v2621, %v2944
  %v2946 = vpop.f32.mrb[0].mxu0
  %v2947 = vpop.f32.mrb[0].mxu0
  %v2948 = vadd.f32 %v2624, %v2947
  %v2949 = vpop.f32.mrb[0].mxu0
  %2950 = vmatprep.mubr.bf16.mxu0 0
  %2951 = vmatmul.mubr.bf16.gmra.mrb[0].mxu0 %v2787
  %v2952 = vpop.f32.mrb[0].mxu0
  %v2953 = vadd.f32 %v2629, %v2952
  %v2954 = vpop.f32.mrb[0].mxu0
  %v2955 = vpop.f32.mrb[0].mxu0
  %v2956 = vadd.f32 %v2632, %v2955
  %v2957 = vpop.f32.mrb[0].mxu0
  %2958 = vmatprep.mubr.bf16.mxu0 0
  %2959 = vmatmul.mubr.bf16.gmra.mrb[0].mxu0 %v2790
  %v2960 = vpop.f32.mrb[0].mxu0
  %v2961 = vadd.f32 %v2637, %v2960
  %v2962 = vpop.f32.mrb[0].mxu0
  %v2963 = vpop.f32.mrb[0].mxu0
  %v2964 = vadd.f32 %v2640, %v2963
  %v2965 = vpop.f32.mrb[0].mxu0
  %2966 = vmatprep.mubr.bf16.mxu0 0
  %2967 = vmatmul.mubr.bf16.gmra.mrb[0].mxu0 %v2793
  %v2968 = vpop.f32.mrb[0].mxu0
  %v2969 = vadd.f32 %v2645, %v2968
  %v2970 = vpop.f32.mrb[0].mxu0
  %v2971 = vpop.f32.mrb[0].mxu0
  %v2972 = vadd.f32 %v2648, %v2971
  %v2973 = vpop.f32.mrb[0].mxu0
  %2974 = vdwg.mxu0
  %v2975 = vld [vmem:[%s16] sm:$0x1]
  %v2977 = vlaneseq
  %v2978 = vshrl.u32 %v2977, 7
  %v2979 = vsub.s32 0, %v2978
  %v2980 = vrot.slane %v2975, %v2979
  %v2982 = vadd.f32 %v2833, %v2980
  %v2983 = vadd.f32 %v2836, %v2980
  %v2984 = vadd.f32 %v2841, %v2980
  %v2985 = vadd.f32 %v2844, %v2980
  %v2986 = vadd.f32 %v2849, %v2980
  %v2987 = vadd.f32 %v2852, %v2980
  %v2988 = vadd.f32 %v2857, %v2980
  %v2989 = vadd.f32 %v2860, %v2980
  %v2990 = vadd.f32 %v2865, %v2980
  %v2991 = vadd.f32 %v2868, %v2980
  %v2992 = vadd.f32 %v2873, %v2980
  %v2993 = vadd.f32 %v2876, %v2980
  %v2994 = vadd.f32 %v2881, %v2980
  %v2995 = vadd.f32 %v2884, %v2980
  %v2996 = vadd.f32 %v2889, %v2980
  %v2997 = vadd.f32 %v2892, %v2980
  %v2998 = vadd.f32 %v2897, %v2980
  %v2999 = vadd.f32 %v2900, %v2980
  %v3000 = vadd.f32 %v2905, %v2980
  %v3001 = vadd.f32 %v2908, %v2980
  %v3002 = vadd.f32 %v2913, %v2980
  %v3003 = vadd.f32 %v2916, %v2980
  %v3004 = vadd.f32 %v2921, %v2980
  %v3005 = vadd.f32 %v2924, %v2980
  %v3006 = vadd.f32 %v2929, %v2980
  %v3007 = vadd.f32 %v2932, %v2980
  %v3008 = vadd.f32 %v2937, %v2980
  %v3009 = vadd.f32 %v2940, %v2980
  %v3010 = vadd.f32 %v2945, %v2980
  %v3011 = vadd.f32 %v2948, %v2980
  %v3012 = vadd.f32 %v2953, %v2980
  %v3013 = vadd.f32 %v2956, %v2980
  %v3014 = vadd.f32 %v2961, %v2980
  %v3015 = vadd.f32 %v2964, %v2980
  %v3016 = vadd.f32 %v2969, %v2980
  %v3017 = vadd.f32 %v2972, %v2980
  %v3018 = vmax.f32 %v2982, 0.0
  %v3019 = vmax.f32 %v2983, 0.0
  %v3020 = vmax.f32 %v2984, 0.0
  %v3021 = vmax.f32 %v2985, 0.0
  %v3022 = vmax.f32 %v2986, 0.0
  %v3023 = vmax.f32 %v2987, 0.0
  %v3024 = vmax.f32 %v2988, 0.0
  %v3025 = vmax.f32 %v2989, 0.0
  %v3026 = vmax.f32 %v2990, 0.0
  %v3027 = vmax.f32 %v2991, 0.0
  %v3028 = vmax.f32 %v2992, 0.0
  %v3029 = vmax.f32 %v2993, 0.0
  %v3030 = vmax.f32 %v2994, 0.0
  %v3031 = vmax.f32 %v2995, 0.0
  %v3032 = vmax.f32 %v2996, 0.0
  %v3033 = vmax.f32 %v2997, 0.0
  %v3034 = vmax.f32 %v2998, 0.0
  %v3035 = vmax.f32 %v2999, 0.0
  %v3036 = vmax.f32 %v3000, 0.0
  %v3037 = vmax.f32 %v3001, 0.0
  %v3038 = vmax.f32 %v3002, 0.0
  %v3039 = vmax.f32 %v3003, 0.0
  %v3040 = vmax.f32 %v3004, 0.0
  %v3041 = vmax.f32 %v3005, 0.0
  %v3042 = vmax.f32 %v3006, 0.0
  %v3043 = vmax.f32 %v3007, 0.0
  %v3044 = vmax.f32 %v3008, 0.0
  %v3045 = vmax.f32 %v3009, 0.0
  %v3046 = vmax.f32 %v3010, 0.0
  %v3047 = vmax.f32 %v3011, 0.0
  %v3048 = vmax.f32 %v3012, 0.0
  %v3049 = vmax.f32 %v3013, 0.0
  %v3050 = vmax.f32 %v3014, 0.0
  %v3051 = vmax.f32 %v3015, 0.0
  %v3052 = vmax.f32 %v3016, 0.0
  %v3053 = vmax.f32 %v3017, 0.0
  %v3054 = vld [vmem:[%s17] sm:$0x1]
  %v3055 = vpack.c.bf16 %v3019, %v3018
  %v3056 = vpack.c.bf16 %v3021, %v3020
  %v3057 = vpack.c.bf16 %v3023, %v3022
  %v3058 = vpack.c.bf16 %v3025, %v3024
  %v3059 = vpack.c.bf16 %v3027, %v3026
  %v3060 = vpack.c.bf16 %v3029, %v3028
  %v3061 = vpack.c.bf16 %v3031, %v3030
  %v3062 = vpack.c.bf16 %v3033, %v3032
  %v3063 = vpack.c.bf16 %v3035, %v3034
  %v3064 = vpack.c.bf16 %v3037, %v3036
  %v3065 = vpack.c.bf16 %v3039, %v3038
  %v3066 = vpack.c.bf16 %v3041, %v3040
  %v3067 = vpack.c.bf16 %v3043, %v3042
  %v3068 = vpack.c.bf16 %v3045, %v3044
  %v3069 = vpack.c.bf16 %v3047, %v3046
  %v3070 = vpack.c.bf16 %v3049, %v3048
  %v3071 = vpack.c.bf16 %v3051, %v3050
  %v3072 = vpack.c.bf16 %v3053, %v3052
  %v3073 = vld [vmem:[%s18] sm:$0x3]
  %3075 = vset.pattern.permute.xlu0 0
  %3076 = vperm.xlu0 %3075, %v3073
  %v3077 = vpop.permute.xlu0 %3076
  %3079 = vmatprep.subr.bf16.mxu0 0
  %3080 = vmatpush1.bf16.xpose.msra.mxu0 %v3055
  %3081 = vmatprep.subr.bf16.mxu0 0
  %3082 = vmatpush1.bf16.xpose.msra.mxu0 %v3056
  %3083 = vmatprep.subr.bf16.mxu0 0
  %3084 = vmatpush1.bf16.xpose.msra.mxu0 %v3057
  %3085 = vmatprep.subr.bf16.mxu0 0
  %3086 = vmatpush1.bf16.xpose.msra.mxu0 %v3058
  %3087 = vmatprep.subr.bf16.mxu0 0
  %3088 = vmatpush1.bf16.xpose.msra.mxu0 %v3059
  %3089 = vmatprep.subr.bf16.mxu0 0
  %3090 = vmatpush1.bf16.xpose.msra.mxu0 %v3060
  %3091 = vmatprep.subr.bf16.mxu0 0
  %3092 = vmatpush1.bf16.xpose.msra.mxu0 %v3061
  %3093 = vmatprep.subr.bf16.mxu0 0
  %3094 = vmatpush1.bf16.xpose.msra.mxu0 %v3062
  %3095 = vmatprep.subr.bf16.mxu0 0
  %3096 = vmatpush1.bf16.xpose.msra.mxu0 %v3063
  %3097 = vmatprep.subr.bf16.mxu0 0
  %3098 = vmatpush1.bf16.xpose.msra.mxu0 %v3064
  %3099 = vmatprep.subr.bf16.mxu0 0
  %3100 = vmatpush1.bf16.xpose.msra.mxu0 %v3065
  %3101 = vmatprep.subr.bf16.mxu0 0
  %3102 = vmatpush1.bf16.xpose.msra.mxu0 %v3066
  %3103 = vmatprep.subr.bf16.mxu0 0
  %3104 = vmatpush1.bf16.xpose.msra.mxu0 %v3067
  %3105 = vmatprep.subr.bf16.mxu0 0
  %3106 = vmatpush1.bf16.xpose.msra.mxu0 %v3068
  %3107 = vmatprep.subr.bf16.mxu0 0
  %3108 = vmatpush1.bf16.xpose.msra.mxu0 %v3069
  %3109 = vmatprep.subr.bf16.mxu0 0
  %3110 = vmatpush1.bf16.xpose.msra.mxu0 %v3070
  %3111 = vmatprep.mubr.bf16.mxu0 0
  %3112 = vmatmul.mubr.bf16.gmra.mrb[0].mxu0 %v3054
  %v3113 = vpop.f32.mrb[0].mxu0
  %v3114 = vadd.f32 %v3077, %v3113
  %v3115 = vpop.f32.mrb[0].mxu0
  %v3116 = vadd.f32 %v3077, %v3115
  %v3117 = vpop.f32.mrb[0].mxu0
  %v3118 = vpop.f32.mrb[0].mxu0
  %3119 = vdwg.mxu0
  %3120 = vmatprep.subr.bf16.mxu0 0
  %3121 = vmatpush1.bf16.xpose.msra.mxu0 %v3071
  %3122 = vmatprep.subr.bf16.mxu0 0
  %3123 = vmatpush1.bf16.xpose.msra.mxu0 %v3072
  %3124 = vmatprep.subr.bf16.mxu0 0
  %3125 = vmatpush1.bf16.xpose.msra.mxu0 0
  %3126 = vmatprep.subr.bf16.mxu0 0
  %3127 = vmatpush1.bf16.xpose.msra.mxu0 0
  %3128 = vmatprep.subr.bf16.mxu0 0
  %3129 = vmatpush1.bf16.xpose.msra.mxu0 0
  %3130 = vmatprep.subr.bf16.mxu0 0
  %3131 = vmatpush1.bf16.xpose.msra.mxu0 0
  %3132 = vmatprep.subr.bf16.mxu0 0
  %3133 = vmatpush1.bf16.xpose.msra.mxu0 0
  %3134 = vmatprep.subr.bf16.mxu0 0
  %3135 = vmatpush1.bf16.xpose.msra.mxu0 0
  %3136 = vmatprep.subr.bf16.mxu0 0
  %3137 = vmatpush1.bf16.xpose.msra.mxu0 0
  %3138 = vmatprep.subr.bf16.mxu0 0
  %3139 = vmatpush1.bf16.xpose.msra.mxu0 0
  %3140 = vmatprep.subr.bf16.mxu0 0
  %3141 = vmatpush1.bf16.xpose.msra.mxu0 0
  %3142 = vmatprep.subr.bf16.mxu0 0
  %3143 = vmatpush1.bf16.xpose.msra.mxu0 0
  %3144 = vmatprep.subr.bf16.mxu0 0
  %3145 = vmatpush1.bf16.xpose.msra.mxu0 0
  %3146 = vmatprep.subr.bf16.mxu0 0
  %3147 = vmatpush1.bf16.xpose.msra.mxu0 0
  %3148 = vmatprep.subr.bf16.mxu0 0
  %3149 = vmatpush1.bf16.xpose.msra.mxu0 0
  %3150 = vmatprep.subr.bf16.mxu0 0
  %3151 = vmatpush1.bf16.xpose.msra.mxu0 0
  %3152 = vmatprep.mubr.bf16.mxu0 0
  %3153 = vmatmul.mubr.bf16.gmra.mrb[0].mxu0 %v3054
  %v3154 = vpop.f32.mrb[0].mxu0
  %v3155 = vadd.f32 %v3077, %v3154
  %v3156 = vpop.f32.mrb[0].mxu0
  %v3157 = vpop.f32.mrb[0].mxu0
  %v3158 = vpop.f32.mrb[0].mxu0
  %3159 = vdwg.mxu0
  %v3163 = vcombine.low %v3114, %v3116
  %v3165 = vunpack.c.l.s4 1983009808
  %v3166 = vunpack.c.0.s8 %v3165
  %v3167 = vlaneseq
  %v3168 = vshrl.u32 %v3167, 7
  %v3169 = vsub.s32 %v3166, %v3168
  %v3170 = vrot.slane %v3163, %v3169
  %v3172 = vunpack.c.l.s4 1983009808
  %v3173 = vunpack.c.0.s8 %v3172
  %v3174 = vlaneseq
  %v3175 = vshrl.u32 %v3174, 7
  %v3176 = vsub.s32 %v3173, %v3175
  %v3177 = vrot.slane %v3155, %v3176
  %v3178 = vcombine.low %v3170, %v3177
  %vm3180 = vcmask 1041408
  %vm3181 = vcmask 1043458
  %vm3182 = vmor %vm3181, %vm3180
  %vm3183 = vcmask 259076
  %vm3184 = vmor %vm3183, %vm3182
  %3185 = vst.msk [vmem:[%s20] sm:$0x3f] %vm3184, %v3178
  // Predicated region
  $region78: #{fgnn_forward.1} parent=0 // pred_check
    _
  $region79: #{fgnn_forward.1} parent=0 // pred_check_branch
    %3187 = sbr.rel (0) target = $region81
  $region80: #{fgnn_forward.1} parent=0 // pred_region
    _
  $region81: #{fgnn_forward.1} parent=0 // pred_fallthru
    _
  // Predicated region
  $region82: #{fgnn_forward.1} parent=0 // pred_check
    _
  $region83: #{fgnn_forward.1} parent=0 // pred_check_branch
    %3189 = sbr.rel (0) target = $region85
  $region84: #{fgnn_forward.1} parent=0 // pred_region
    _
  $region85: #{fgnn_forward.1} parent=0 // pred_fallthru
    _
  // Predicated region
  $region86: #{fgnn_forward.1} parent=0 // pred_check
    _
  $region87: #{fgnn_forward.1} parent=0 // pred_check_branch
    %3191 = sbr.rel (0) target = $region89
  $region88: #{fgnn_forward.1} parent=0 // pred_region
    _
  $region89: #{fgnn_forward.1} parent=0 // pred_fallthru
    _
  // Predicated region
  $region90: #{fgnn_forward.1} parent=0 // pred_check
    _
  $region91: #{fgnn_forward.1} parent=0 // pred_check_branch
    %3193 = sbr.rel (0) target = $region93
  $region92: #{fgnn_forward.1} parent=0 // pred_region
    _
  $region93: #{fgnn_forward.1} parent=0 // pred_fallthru
    _

</llo_original>
